<compile_context>
chip_gen: v7x
topology: tpu7x:2x2x1
jax: 0.10.0
libtpu: 0.0.40
codegen_flags: <defaults>
</compile_context>

<pallas_src>
import math

import jax
import jax.numpy as jnp
from jax.experimental import pallas as pl
from jax.experimental.pallas import tpu as pltpu

# ----------------------------- config ---------------------------------------
B = 2
SEQ_LEN = 8                    # stand-in for the reference t=75
CHANNELS = 1
IMG = 64                       # stand-in for image_size=720
PATCH = 16                     # stand-in for patch_size=72
FEAT_DIM = 64                  # dim
DIM_HEAD = FEAT_DIM            # heads=1 -> inner dim == dim
MLP_DIM = 32
MLP_PAD = 128                  # zero-padded MLP hidden width (lane-dense)
NUM_CLASSES = 24
NC_PAD = 128                   # lane-dense fc1 output, sliced to NUM_CLASSES
PATCH_DIM = CHANNELS * PATCH * PATCH
NUM_PATCHES = (IMG // PATCH) ** 2
SEQ_TOK = NUM_PATCHES + 1      # cls + patches (positional table size)
LN_EPS = 1e-5

# rows of the packed (12, FEAT_DIM) parameter table
_LNE_G, _LNE_B = 0, 1          # LN after patch-embedding linear
_LNA_G, _LNA_B = 2, 3          # pre-attention LN
_LNF_G, _LNF_B = 4, 5          # pre-MLP LN
_LNO_G, _LNO_B = 6, 7          # final LN (before cls pooling)
_B_PATCH, _B_O, _B_FF2, _CLS = 8, 9, 10, 11


# ------------------------- fused encoder + fc1 kernel ------------------------
def _ln(x, g, b):
    """LayerNorm over the last (lane) dim, f32 math."""
    x = x.astype(jnp.float32)
    mu = jnp.mean(x, axis=-1, keepdims=True)
    var = jnp.mean(jnp.square(x - mu), axis=-1, keepdims=True)
    return (x - mu) * jax.lax.rsqrt(var + LN_EPS) * g + b


def _encoder_kernel(patches_ref, ln_pd_ref, w_patch_ref, vec_d_ref, pos_ref,
                    w_qkv_ref, w_o_ref, w_ff1_ref, b_ff1_ref, w_ff2_ref,
                    fc_w_ref, fc_b_ref, out_ref):
    """One batch element: t frames -> ViT cls embeddings -> fused fc1 logits."""
    t, p, pd = patches_ref.shape
    d = w_patch_ref.shape[1]
    dh = w_qkv_ref.shape[2]
    bf16, f32 = jnp.bfloat16, jnp.float32

    lnp_g, lnp_b = ln_pd_ref[0:1, :], ln_pd_ref[1:2, :]
    lne_g, lne_b = vec_d_ref[_LNE_G:_LNE_G + 1, :], vec_d_ref[_LNE_B:_LNE_B + 1, :]
    lna_g, lna_b = vec_d_ref[_LNA_G:_LNA_G + 1, :], vec_d_ref[_LNA_B:_LNA_B + 1, :]
    lnf_g, lnf_b = vec_d_ref[_LNF_G:_LNF_G + 1, :], vec_d_ref[_LNF_B:_LNF_B + 1, :]
    lno_g, lno_b = vec_d_ref[_LNO_G:_LNO_G + 1, :], vec_d_ref[_LNO_B:_LNO_B + 1, :]
    b_patch = vec_d_ref[_B_PATCH:_B_PATCH + 1, :]
    b_o = vec_d_ref[_B_O:_B_O + 1, :]
    b_ff2 = vec_d_ref[_B_FF2:_B_FF2 + 1, :]
    cls_tok = vec_d_ref[_CLS:_CLS + 1, :]

    # ---- patch embedding on ALL t*p tokens as one flat 2-D MXU matmul ----
    pat = patches_ref[...].astype(f32).reshape(t * p, pd)       # bf16 DMA -> f32
    h = _ln(pat, lnp_g, lnp_b)
    emb = jnp.dot(h.astype(bf16), w_patch_ref[...],
                  preferred_element_type=f32) + b_patch         # (t*p, d)
    emb = _ln(emb, lne_g, lne_b)

    # ---- positional embedding (pos[0] = cls slot, pos[1:] = patch slots) ----
    x3 = emb.reshape(t, p, d) + pos_ref[1:, :]                  # (t, p, d)

    # ---- keys / values over all patch tokens (flat 2-D MXU matmuls) ----
    h_att = _ln(x3, lna_g, lna_b).reshape(t * p, d).astype(bf16)
    k = jnp.dot(h_att, w_qkv_ref[1], preferred_element_type=f32)   # (t*p, dh)
    v = jnp.dot(h_att, w_qkv_ref[2], preferred_element_type=f32)   # (t*p, dh)

    # ---- cls row (shared across frames): its query / key / value ----
    cls_x = cls_tok + pos_ref[0:1, :]                           # (1, d)
    h_cls = _ln(cls_x, lna_g, lna_b).astype(bf16)
    q_cls = jnp.dot(h_cls, w_qkv_ref[0], preferred_element_type=f32)   # (1, dh)
    k_cls = jnp.dot(h_cls, w_qkv_ref[1], preferred_element_type=f32)
    v_cls = jnp.dot(h_cls, w_qkv_ref[2], preferred_element_type=f32)

    # ---- cls-query attention: scores for all patch tokens at once, then a
    #      frame-local (block-diagonal) softmax and one (t,t*p)@(t*p,dh) MXU
    #      matmul for P @ V.  Only the cls row is needed downstream. ----
    scale = 1.0 / math.sqrt(dh)
    s_all = jnp.einsum("qd,kd->qk", q_cls.astype(bf16), k.astype(bf16),
                       preferred_element_type=f32) * scale      # (1, t*p)
    s_cc = jnp.sum(q_cls * k_cls, axis=-1, keepdims=True) * scale   # (1, 1)

    row = jax.lax.broadcasted_iota(jnp.int32, (t, t * p), 0)
    col = jax.lax.broadcasted_iota(jnp.int32, (t, t * p), 1)
    own = (col >= row * p) & (col < (row + 1) * p)               # frame-local mask
    s_mat = jnp.where(own, s_all, -1e30)                         # (t, t*p)

    m = jnp.maximum(jnp.max(s_mat, axis=-1, keepdims=True), s_cc)   # (t, 1)
    e_mat = jnp.exp(s_mat - m)                                   # masked -> 0
    e_cc = jnp.exp(s_cc - m)                                     # (t, 1)
    inv = pl.reciprocal(jnp.sum(e_mat, axis=-1, keepdims=True) + e_cc,
                        approx=True)
    attn = jnp.dot((e_mat * inv).astype(bf16), v.astype(bf16),
                   preferred_element_type=f32) + (e_cc * inv) * v_cls   # (t, dh)

    # ---- cls-row output projection, residuals, padded MLP, final LN ----
    proj = jnp.dot(attn.astype(bf16), w_o_ref[...],
                   preferred_element_type=f32) + b_o             # (t, d)
    xc = cls_x + proj                                            # residual
    hff = _ln(xc, lnf_g, lnf_b)
    hff = jax.nn.gelu(jnp.dot(hff.astype(bf16), w_ff1_ref[...],
                              preferred_element_type=f32) + b_ff1_ref[...])
    hff = jnp.dot(hff.astype(bf16), w_ff2_ref[...],
                  preferred_element_type=f32) + b_ff2
    xc = xc + hff                                                # residual
    xo = _ln(xc, lno_g, lno_b)                                   # (t, d) cls embeds

    # ---- fused fc1 epilogue: logits = concat_t(cls_embed) @ W + b.
    #      Done as t tiny (1,d)@(d,NC_PAD) accumulations (static unroll) to
    #      avoid a sublane->lane relayout of (t,d) into (1, t*d). ----
    acc = fc_b_ref[...]                                          # (1, NC_PAD)
    xo_b = xo.astype(bf16)
    for ti in range(t):
        acc = acc + jnp.dot(xo_b[ti:ti + 1, :], fc_w_ref[ti],
                            preferred_element_type=f32)
    out_ref[0] = acc


# ------------------------------- wrapper -------------------------------------
def _const_spec(arr):
    nd = arr.ndim
    return pl.BlockSpec(arr.shape, lambda i, _nd=nd: (0,) * _nd)


def encoder_forward(patches, params):
    """patches: (B*t, NUM_PATCHES, PATCH_DIM) bf16 -> logits (B, 1, NC_PAD)."""
    n, p, pd = patches.shape
    t = SEQ_LEN
    assert n % t == 0, (n, t)
    b = n // t
    weights = (params["ln_pd"], params["w_patch"], params["vec_d"],
               params["pos"], params["w_qkv"], params["w_o"],
               params["w_ff1"], params["b_ff1"], params["w_ff2"],
               params["fc_w"], params["fc_b"])
    in_specs = [pl.BlockSpec((t, p, pd), lambda i: (i, 0, 0))]
    in_specs += [_const_spec(w) for w in weights]
    return pl.pallas_call(
        _encoder_kernel,
        grid=(b,),                      # one batch element (t frames) per step
        in_specs=in_specs,
        out_specs=pl.BlockSpec((1, 1, NC_PAD), lambda i: (i, 0, 0)),
        out_shape=jax.ShapeDtypeStruct((b, 1, NC_PAD), jnp.float32),
        compiler_params=pltpu.CompilerParams(
            dimension_semantics=("parallel",),   # both v7x TCs get a step
            vmem_limit_bytes=32 * 1024 * 1024),
    )(patches, *weights)


def extract_patches(imgs):
    """(N,C,H,W) -> (N, NUM_PATCHES, PATCH_DIM): 'b c (h p1)(w p2)->b (h w)(p1 p2 c)'."""
    n, c, hh, ww = imgs.shape
    hp, wp = hh // PATCH, ww // PATCH
    x = imgs.reshape(n, c, hp, PATCH, wp, PATCH)
    x = x.transpose(0, 2, 4, 3, 5, 1)            # n, hp, wp, p1, p2, c
    return x.reshape(n, hp * wp, PATCH * PATCH * c)


def forward(x, params):
    b, t = x.shape[0], x.shape[1]
    imgs = x.reshape(b * t, x.shape[2], x.shape[3], x.shape[4])   # (b*t,C,H,W)
    patches = extract_patches(imgs).astype(jnp.bfloat16)          # bf16 DMA
    logits = encoder_forward(patches, params)                     # (b, 1, NC_PAD)
    return logits[:, 0, :NUM_CLASSES]


# --------------------------- parameter init ----------------------------------
def init_params(key):
    ks = iter(jax.random.split(key, 10))
    f32, bf16 = jnp.float32, jnp.bfloat16
    nrm = lambda shape, s=0.02: (jax.random.normal(next(ks), shape) * s).astype(f32)
    d, pd, dh, mlp = FEAT_DIM, PATCH_DIM, DIM_HEAD, MLP_DIM
    ones_d, zeros_d = jnp.ones((1, d), f32), jnp.zeros((1, d), f32)

    ln_pd = jnp.concatenate([jnp.ones((1, pd), f32), jnp.zeros((1, pd), f32)], 0)
    vec_d = jnp.concatenate([
        ones_d, zeros_d,        # lne g, b
        ones_d, zeros_d,        # lna g, b
        ones_d, zeros_d,        # lnf g, b
        ones_d, zeros_d,        # lno g, b
        zeros_d,                # b_patch
        zeros_d,                # b_o
        zeros_d,                # b_ff2
        nrm((1, d)),            # cls token
    ], 0)                                                         # (12, d)

    fc_w = jnp.pad(nrm((SEQ_LEN, d, NUM_CLASSES)),
                   ((0, 0), (0, 0), (0, NC_PAD - NUM_CLASSES)))

    return {
        "ln_pd": ln_pd,
        "vec_d": vec_d,
        "pos": nrm((SEQ_TOK, d)),
        "w_patch": nrm((pd, d)).astype(bf16),
        "w_qkv": nrm((3, d, dh)).astype(bf16),   # Q / K / V stacked (bias-free)
        "w_o": nrm((dh, d)).astype(bf16),
        # MLP hidden zero-padded 32 -> 128: mathematically exact, lane-dense
        "w_ff1": jnp.pad(nrm((d, mlp)), ((0, 0), (0, MLP_PAD - mlp))).astype(bf16),
        "b_ff1": jnp.zeros((1, MLP_PAD), f32),
        "w_ff2": jnp.pad(nrm((mlp, d)), ((0, MLP_PAD - mlp), (0, 0))).astype(bf16),
        # fc1 stored as (t, d, NC_PAD); class dim padded to 128 lanes
        "fc_w": fc_w.astype(bf16),
        "fc_b": jnp.zeros((1, NC_PAD), f32),
    }


# --------------------------------- main ---------------------------------------
if __name__ == "__main__":
    key = jax.random.PRNGKey(0)
    k_param, k_x = jax.random.split(key)
    params = init_params(k_param)
    # input: (batch, seq, channels=1, H, W) frame sequence
    x = jax.random.normal(k_x, (B, SEQ_LEN, CHANNELS, IMG, IMG), dtype=jnp.float32)

    out = jax.jit(forward)(x, params)
    out = jax.block_until_ready(out)
    assert out.shape == (B, NUM_CLASSES), out.shape
    assert bool(jnp.all(jnp.isfinite(out)))
    print("KERNEL_OK")
</pallas_src>

<mosaic_0001>
module attributes {stable_mosaic.version = 11 : i64} {
  func.func @_encoder_kernel(%arg0: i32, %arg1: memref<8x16x256xbf16, #tpu.memory_space<vmem>>, %arg2: memref<2x256xf32, #tpu.memory_space<vmem>>, %arg3: memref<256x64xbf16, #tpu.memory_space<vmem>>, %arg4: memref<12x64xf32, #tpu.memory_space<vmem>>, %arg5: memref<17x64xf32, #tpu.memory_space<vmem>>, %arg6: memref<3x64x64xbf16, #tpu.memory_space<vmem>>, %arg7: memref<64x64xbf16, #tpu.memory_space<vmem>>, %arg8: memref<64x128xbf16, #tpu.memory_space<vmem>>, %arg9: memref<1x128xf32, #tpu.memory_space<vmem>>, %arg10: memref<128x64xbf16, #tpu.memory_space<vmem>>, %arg11: memref<8x64x128xbf16, #tpu.memory_space<vmem>>, %arg12: memref<1x128xf32, #tpu.memory_space<vmem>>, %arg13: memref<1x1x128xf32, #tpu.memory_space<vmem>>) attributes {dimension_semantics = [#tpu.dimension_semantics<parallel>], iteration_bounds = array<i64: 2>, scalar_prefetch = 0 : i64, scratch_operands = 0 : i64, tpu.core_type = #tpu.core_type<tc>, window_params = [{transform_indices = @transform_0, window_bounds = array<i64: 8, 16, 256>}, {pipeline_mode = #tpu.pipeline_mode<synchronous>, transform_indices = @transform_1, window_bounds = array<i64: 2, 256>}, {pipeline_mode = #tpu.pipeline_mode<synchronous>, transform_indices = @transform_2, window_bounds = array<i64: 256, 64>}, {pipeline_mode = #tpu.pipeline_mode<synchronous>, transform_indices = @transform_3, window_bounds = array<i64: 12, 64>}, {pipeline_mode = #tpu.pipeline_mode<synchronous>, transform_indices = @transform_4, window_bounds = array<i64: 17, 64>}, {pipeline_mode = #tpu.pipeline_mode<synchronous>, transform_indices = @transform_5, window_bounds = array<i64: 3, 64, 64>}, {pipeline_mode = #tpu.pipeline_mode<synchronous>, transform_indices = @transform_6, window_bounds = array<i64: 64, 64>}, {pipeline_mode = #tpu.pipeline_mode<synchronous>, transform_indices = @transform_7, window_bounds = array<i64: 64, 128>}, {pipeline_mode = #tpu.pipeline_mode<synchronous>, transform_indices = @transform_8, window_bounds = array<i64: 1, 128>}, {pipeline_mode = #tpu.pipeline_mode<synchronous>, transform_indices = @transform_9, window_bounds = array<i64: 128, 64>}, {pipeline_mode = #tpu.pipeline_mode<synchronous>, transform_indices = @transform_10, window_bounds = array<i64: 8, 64, 128>}, {pipeline_mode = #tpu.pipeline_mode<synchronous>, transform_indices = @transform_11, window_bounds = array<i64: 1, 128>}, {transform_indices = @transform_12, window_bounds = array<i64: 1, 1, 128>}]} {
    %c0 = arith.constant 0 : index
    %c0_0 = arith.constant 0 : index
    %0 = vector.load %arg2[%c0, %c0_0] : memref<2x256xf32, #tpu.memory_space<vmem>>, vector<1x256xf32>
    %c1 = arith.constant 1 : index
    %c0_1 = arith.constant 0 : index
    %1 = vector.load %arg2[%c1, %c0_1] : memref<2x256xf32, #tpu.memory_space<vmem>>, vector<1x256xf32>
    %c0_2 = arith.constant 0 : index
    %c0_3 = arith.constant 0 : index
    %2 = vector.load %arg4[%c0_2, %c0_3] : memref<12x64xf32, #tpu.memory_space<vmem>>, vector<1x64xf32>
    %c1_4 = arith.constant 1 : index
    %c0_5 = arith.constant 0 : index
    %3 = vector.load %arg4[%c1_4, %c0_5] : memref<12x64xf32, #tpu.memory_space<vmem>>, vector<1x64xf32>
    %c2 = arith.constant 2 : index
    %c0_6 = arith.constant 0 : index
    %4 = vector.load %arg4[%c2, %c0_6] : memref<12x64xf32, #tpu.memory_space<vmem>>, vector<1x64xf32>
    %c3 = arith.constant 3 : index
    %c0_7 = arith.constant 0 : index
    %5 = vector.load %arg4[%c3, %c0_7] : memref<12x64xf32, #tpu.memory_space<vmem>>, vector<1x64xf32>
    %c4 = arith.constant 4 : index
    %c0_8 = arith.constant 0 : index
    %6 = vector.load %arg4[%c4, %c0_8] : memref<12x64xf32, #tpu.memory_space<vmem>>, vector<1x64xf32>
    %c5 = arith.constant 5 : index
    %c0_9 = arith.constant 0 : index
    %7 = vector.load %arg4[%c5, %c0_9] : memref<12x64xf32, #tpu.memory_space<vmem>>, vector<1x64xf32>
    %c6 = arith.constant 6 : index
    %c0_10 = arith.constant 0 : index
    %8 = vector.load %arg4[%c6, %c0_10] : memref<12x64xf32, #tpu.memory_space<vmem>>, vector<1x64xf32>
    %c7 = arith.constant 7 : index
    %c0_11 = arith.constant 0 : index
    %9 = vector.load %arg4[%c7, %c0_11] : memref<12x64xf32, #tpu.memory_space<vmem>>, vector<1x64xf32>
    %c8 = arith.constant 8 : index
    %c0_12 = arith.constant 0 : index
    %10 = vector.load %arg4[%c8, %c0_12] : memref<12x64xf32, #tpu.memory_space<vmem>>, vector<1x64xf32>
    %c9 = arith.constant 9 : index
    %c0_13 = arith.constant 0 : index
    %11 = vector.load %arg4[%c9, %c0_13] : memref<12x64xf32, #tpu.memory_space<vmem>>, vector<1x64xf32>
    %c10 = arith.constant 10 : index
    %c0_14 = arith.constant 0 : index
    %12 = vector.load %arg4[%c10, %c0_14] : memref<12x64xf32, #tpu.memory_space<vmem>>, vector<1x64xf32>
    %c11 = arith.constant 11 : index
    %c0_15 = arith.constant 0 : index
    %13 = vector.load %arg4[%c11, %c0_15] : memref<12x64xf32, #tpu.memory_space<vmem>>, vector<1x64xf32>
    %c0_16 = arith.constant 0 : index
    %c0_17 = arith.constant 0 : index
    %c0_18 = arith.constant 0 : index
    %14 = vector.load %arg1[%c0_16, %c0_17, %c0_18] : memref<8x16x256xbf16, #tpu.memory_space<vmem>>, vector<8x16x256xbf16>
    %15 = arith.extf %14 : vector<8x16x256xbf16> to vector<8x16x256xf32>
    %16 = vector.shape_cast %15 : vector<8x16x256xf32> to vector<128x256xf32>
    %cst = arith.constant dense<0.000000e+00> : vector<128xf32>
    %17 = vector.multi_reduction <add>, %16, %cst [1] : vector<128x256xf32> to vector<128xf32>
    %18 = vector.shape_cast %17 : vector<128xf32> to vector<128x1xf32>
    %cst_19 = arith.constant 2.560000e+02 : f32
    %19 = vector.broadcast %cst_19 : f32 to vector<128x1xf32>
    %20 = arith.divf %18, %19 : vector<128x1xf32>
    %21 = vector.broadcast %20 : vector<128x1xf32> to vector<128x256xf32>
    %22 = arith.subf %16, %21 : vector<128x256xf32>
    %23 = arith.mulf %22, %22 : vector<128x256xf32>
    %cst_20 = arith.constant dense<0.000000e+00> : vector<128xf32>
    %24 = vector.multi_reduction <add>, %23, %cst_20 [1] : vector<128x256xf32> to vector<128xf32>
    %25 = vector.shape_cast %24 : vector<128xf32> to vector<128x1xf32>
    %cst_21 = arith.constant 2.560000e+02 : f32
    %26 = vector.broadcast %cst_21 : f32 to vector<128x1xf32>
    %27 = arith.divf %25, %26 : vector<128x1xf32>
    %28 = vector.broadcast %20 : vector<128x1xf32> to vector<128x256xf32>
    %29 = arith.subf %16, %28 : vector<128x256xf32>
    %cst_22 = arith.constant 9.99999974E-6 : f32
    %30 = vector.broadcast %cst_22 : f32 to vector<128x1xf32>
    %31 = arith.addf %27, %30 : vector<128x1xf32>
    %32 = math.rsqrt %31 : vector<128x1xf32>
    %33 = vector.broadcast %32 : vector<128x1xf32> to vector<128x256xf32>
    %34 = arith.mulf %29, %33 : vector<128x256xf32>
    %35 = vector.broadcast %0 : vector<1x256xf32> to vector<128x256xf32>
    %36 = arith.mulf %34, %35 : vector<128x256xf32>
    %37 = vector.broadcast %1 : vector<1x256xf32> to vector<128x256xf32>
    %38 = arith.addf %36, %37 : vector<128x256xf32>
    %39 = arith.truncf %38 : vector<128x256xf32> to vector<128x256xbf16>
    %c0_23 = arith.constant 0 : index
    %c0_24 = arith.constant 0 : index
    %40 = vector.load %arg3[%c0_23, %c0_24] : memref<256x64xbf16, #tpu.memory_space<vmem>>, vector<256x64xbf16>
    %cst_25 = arith.constant dense<0.000000e+00> : vector<128x64xf32>
    %41 = tpu.matmul %39, %40, %cst_25 {dimension_numbers = #tpu.dot_dimension_numbers<[1], [0], [0], [1], [0, 0, 1, 1], [], []>} : vector<128x256xbf16>, vector<256x64xbf16>, vector<128x64xf32> -> vector<128x64xf32>
    %42 = vector.broadcast %10 : vector<1x64xf32> to vector<128x64xf32>
    %43 = arith.addf %41, %42 : vector<128x64xf32>
    %cst_26 = arith.constant dense<0.000000e+00> : vector<128xf32>
    %44 = vector.multi_reduction <add>, %43, %cst_26 [1] : vector<128x64xf32> to vector<128xf32>
    %45 = vector.shape_cast %44 : vector<128xf32> to vector<128x1xf32>
    %cst_27 = arith.constant 6.400000e+01 : f32
    %46 = vector.broadcast %cst_27 : f32 to vector<128x1xf32>
    %47 = arith.divf %45, %46 : vector<128x1xf32>
    %48 = vector.broadcast %47 : vector<128x1xf32> to vector<128x64xf32>
    %49 = arith.subf %43, %48 : vector<128x64xf32>
    %50 = arith.mulf %49, %49 : vector<128x64xf32>
    %cst_28 = arith.constant dense<0.000000e+00> : vector<128xf32>
    %51 = vector.multi_reduction <add>, %50, %cst_28 [1] : vector<128x64xf32> to vector<128xf32>
    %52 = vector.shape_cast %51 : vector<128xf32> to vector<128x1xf32>
    %cst_29 = arith.constant 6.400000e+01 : f32
    %53 = vector.broadcast %cst_29 : f32 to vector<128x1xf32>
    %54 = arith.divf %52, %53 : vector<128x1xf32>
    %55 = vector.broadcast %47 : vector<128x1xf32> to vector<128x64xf32>
    %56 = arith.subf %43, %55 : vector<128x64xf32>
    %cst_30 = arith.constant 9.99999974E-6 : f32
    %57 = vector.broadcast %cst_30 : f32 to vector<128x1xf32>
    %58 = arith.addf %54, %57 : vector<128x1xf32>
    %59 = math.rsqrt %58 : vector<128x1xf32>
    %60 = vector.broadcast %59 : vector<128x1xf32> to vector<128x64xf32>
    %61 = arith.mulf %56, %60 : vector<128x64xf32>
    %62 = vector.broadcast %2 : vector<1x64xf32> to vector<128x64xf32>
    %63 = arith.mulf %61, %62 : vector<128x64xf32>
    %64 = vector.broadcast %3 : vector<1x64xf32> to vector<128x64xf32>
    %65 = arith.addf %63, %64 : vector<128x64xf32>
    %66 = vector.shape_cast %65 : vector<128x64xf32> to vector<8x16x64xf32>
    %c1_31 = arith.constant 1 : index
    %c0_32 = arith.constant 0 : index
    %67 = vector.load %arg5[%c1_31, %c0_32] : memref<17x64xf32, #tpu.memory_space<vmem>>, vector<16x64xf32>
    %68 = vector.shape_cast %67 : vector<16x64xf32> to vector<1x16x64xf32>
    %69 = vector.broadcast %68 : vector<1x16x64xf32> to vector<8x16x64xf32>
    %70 = arith.addf %66, %69 : vector<8x16x64xf32>
    %cst_33 = arith.constant dense<0.000000e+00> : vector<8x16xf32>
    %71 = vector.multi_reduction <add>, %70, %cst_33 [2] : vector<8x16x64xf32> to vector<8x16xf32>
    %72 = vector.shape_cast %71 : vector<8x16xf32> to vector<8x16x1xf32>
    %cst_34 = arith.constant 6.400000e+01 : f32
    %73 = vector.broadcast %cst_34 : f32 to vector<8x16x1xf32>
    %74 = arith.divf %72, %73 : vector<8x16x1xf32>
    %75 = vector.broadcast %74 : vector<8x16x1xf32> to vector<8x16x64xf32>
    %76 = arith.subf %70, %75 : vector<8x16x64xf32>
    %77 = arith.mulf %76, %76 : vector<8x16x64xf32>
    %cst_35 = arith.constant dense<0.000000e+00> : vector<8x16xf32>
    %78 = vector.multi_reduction <add>, %77, %cst_35 [2] : vector<8x16x64xf32> to vector<8x16xf32>
    %79 = vector.shape_cast %78 : vector<8x16xf32> to vector<8x16x1xf32>
    %cst_36 = arith.constant 6.400000e+01 : f32
    %80 = vector.broadcast %cst_36 : f32 to vector<8x16x1xf32>
    %81 = arith.divf %79, %80 : vector<8x16x1xf32>
    %82 = vector.broadcast %74 : vector<8x16x1xf32> to vector<8x16x64xf32>
    %83 = arith.subf %70, %82 : vector<8x16x64xf32>
    %cst_37 = arith.constant 9.99999974E-6 : f32
    %84 = vector.broadcast %cst_37 : f32 to vector<8x16x1xf32>
    %85 = arith.addf %81, %84 : vector<8x16x1xf32>
    %86 = math.rsqrt %85 : vector<8x16x1xf32>
    %87 = vector.broadcast %86 : vector<8x16x1xf32> to vector<8x16x64xf32>
    %88 = arith.mulf %83, %87 : vector<8x16x64xf32>
    %89 = vector.shape_cast %4 : vector<1x64xf32> to vector<1x1x64xf32>
    %90 = vector.broadcast %89 : vector<1x1x64xf32> to vector<8x16x64xf32>
    %91 = arith.mulf %88, %90 : vector<8x16x64xf32>
    %92 = vector.shape_cast %5 : vector<1x64xf32> to vector<1x1x64xf32>
    %93 = vector.broadcast %92 : vector<1x1x64xf32> to vector<8x16x64xf32>
    %94 = arith.addf %91, %93 : vector<8x16x64xf32>
    %95 = vector.shape_cast %94 : vector<8x16x64xf32> to vector<128x64xf32>
    %96 = arith.truncf %95 : vector<128x64xf32> to vector<128x64xbf16>
    %c1_38 = arith.constant 1 : index
    %c0_39 = arith.constant 0 : index
    %c0_40 = arith.constant 0 : index
    %97 = vector.load %arg6[%c1_38, %c0_39, %c0_40] : memref<3x64x64xbf16, #tpu.memory_space<vmem>>, vector<1x64x64xbf16>
    %98 = vector.shape_cast %97 : vector<1x64x64xbf16> to vector<64x64xbf16>
    %cst_41 = arith.constant dense<0.000000e+00> : vector<128x64xf32>
    %99 = tpu.matmul %96, %98, %cst_41 {dimension_numbers = #tpu.dot_dimension_numbers<[1], [0], [0], [1], [0, 0, 1, 1], [], []>} : vector<128x64xbf16>, vector<64x64xbf16>, vector<128x64xf32> -> vector<128x64xf32>
    %c2_42 = arith.constant 2 : index
    %c0_43 = arith.constant 0 : index
    %c0_44 = arith.constant 0 : index
    %100 = vector.load %arg6[%c2_42, %c0_43, %c0_44] : memref<3x64x64xbf16, #tpu.memory_space<vmem>>, vector<1x64x64xbf16>
    %101 = vector.shape_cast %100 : vector<1x64x64xbf16> to vector<64x64xbf16>
    %cst_45 = arith.constant dense<0.000000e+00> : vector<128x64xf32>
    %102 = tpu.matmul %96, %101, %cst_45 {dimension_numbers = #tpu.dot_dimension_numbers<[1], [0], [0], [1], [0, 0, 1, 1], [], []>} : vector<128x64xbf16>, vector<64x64xbf16>, vector<128x64xf32> -> vector<128x64xf32>
    %c0_46 = arith.constant 0 : index
    %c0_47 = arith.constant 0 : index
    %103 = vector.load %arg5[%c0_46, %c0_47] : memref<17x64xf32, #tpu.memory_space<vmem>>, vector<1x64xf32>
    %104 = arith.addf %13, %103 : vector<1x64xf32>
    %cst_48 = arith.constant dense<0.000000e+00> : vector<1xf32>
    %105 = vector.multi_reduction <add>, %104, %cst_48 [1] : vector<1x64xf32> to vector<1xf32>
    %106 = vector.shape_cast %105 : vector<1xf32> to vector<1x1xf32>
    %cst_49 = arith.constant 6.400000e+01 : f32
    %107 = vector.broadcast %cst_49 : f32 to vector<1x1xf32>
    %108 = arith.divf %106, %107 : vector<1x1xf32>
    %109 = vector.broadcast %108 : vector<1x1xf32> to vector<1x64xf32>
    %110 = arith.subf %104, %109 : vector<1x64xf32>
    %111 = arith.mulf %110, %110 : vector<1x64xf32>
    %cst_50 = arith.constant dense<0.000000e+00> : vector<1xf32>
    %112 = vector.multi_reduction <add>, %111, %cst_50 [1] : vector<1x64xf32> to vector<1xf32>
    %113 = vector.shape_cast %112 : vector<1xf32> to vector<1x1xf32>
    %cst_51 = arith.constant 6.400000e+01 : f32
    %114 = vector.broadcast %cst_51 : f32 to vector<1x1xf32>
    %115 = arith.divf %113, %114 : vector<1x1xf32>
    %116 = vector.broadcast %108 : vector<1x1xf32> to vector<1x64xf32>
    %117 = arith.subf %104, %116 : vector<1x64xf32>
    %cst_52 = arith.constant 9.99999974E-6 : f32
    %118 = vector.broadcast %cst_52 : f32 to vector<1x1xf32>
    %119 = arith.addf %115, %118 : vector<1x1xf32>
    %120 = math.rsqrt %119 : vector<1x1xf32>
    %121 = vector.broadcast %120 : vector<1x1xf32> to vector<1x64xf32>
    %122 = arith.mulf %117, %121 : vector<1x64xf32>
    %123 = arith.mulf %122, %4 : vector<1x64xf32>
    %124 = arith.addf %123, %5 : vector<1x64xf32>
    %125 = arith.truncf %124 : vector<1x64xf32> to vector<1x64xbf16>
    %c0_53 = arith.constant 0 : index
    %c0_54 = arith.constant 0 : index
    %c0_55 = arith.constant 0 : index
    %126 = vector.load %arg6[%c0_53, %c0_54, %c0_55] : memref<3x64x64xbf16, #tpu.memory_space<vmem>>, vector<1x64x64xbf16>
    %127 = vector.shape_cast %126 : vector<1x64x64xbf16> to vector<64x64xbf16>
    %cst_56 = arith.constant dense<0.000000e+00> : vector<1x64xf32>
    %128 = tpu.matmul %125, %127, %cst_56 {dimension_numbers = #tpu.dot_dimension_numbers<[1], [0], [0], [1], [0, 0, 1, 1], [], []>} : vector<1x64xbf16>, vector<64x64xbf16>, vector<1x64xf32> -> vector<1x64xf32>
    %c1_57 = arith.constant 1 : index
    %c0_58 = arith.constant 0 : index
    %c0_59 = arith.constant 0 : index
    %129 = vector.load %arg6[%c1_57, %c0_58, %c0_59] : memref<3x64x64xbf16, #tpu.memory_space<vmem>>, vector<1x64x64xbf16>
    %130 = vector.shape_cast %129 : vector<1x64x64xbf16> to vector<64x64xbf16>
    %cst_60 = arith.constant dense<0.000000e+00> : vector<1x64xf32>
    %131 = tpu.matmul %125, %130, %cst_60 {dimension_numbers = #tpu.dot_dimension_numbers<[1], [0], [0], [1], [0, 0, 1, 1], [], []>} : vector<1x64xbf16>, vector<64x64xbf16>, vector<1x64xf32> -> vector<1x64xf32>
    %c2_61 = arith.constant 2 : index
    %c0_62 = arith.constant 0 : index
    %c0_63 = arith.constant 0 : index
    %132 = vector.load %arg6[%c2_61, %c0_62, %c0_63] : memref<3x64x64xbf16, #tpu.memory_space<vmem>>, vector<1x64x64xbf16>
    %133 = vector.shape_cast %132 : vector<1x64x64xbf16> to vector<64x64xbf16>
    %cst_64 = arith.constant dense<0.000000e+00> : vector<1x64xf32>
    %134 = tpu.matmul %125, %133, %cst_64 {dimension_numbers = #tpu.dot_dimension_numbers<[1], [0], [0], [1], [0, 0, 1, 1], [], []>} : vector<1x64xbf16>, vector<64x64xbf16>, vector<1x64xf32> -> vector<1x64xf32>
    %135 = arith.truncf %128 : vector<1x64xf32> to vector<1x64xbf16>
    %136 = arith.truncf %99 : vector<128x64xf32> to vector<128x64xbf16>
    "tpu.trace_start"() <{level = 10 : i32, message = "qd,kd->qk"}> : () -> ()
    %cst_65 = arith.constant dense<0.000000e+00> : vector<1x128xf32>
    %137 = tpu.matmul %135, %136, %cst_65 {dimension_numbers = #tpu.dot_dimension_numbers<[1], [1], [0], [0], [0, 0, 1, 0], [], []>} : vector<1x64xbf16>, vector<128x64xbf16>, vector<1x128xf32> -> vector<1x128xf32>
    "tpu.trace_stop"() : () -> ()
    %cst_66 = arith.constant 1.250000e-01 : f32
    %138 = vector.broadcast %cst_66 : f32 to vector<1x128xf32>
    %139 = arith.mulf %137, %138 : vector<1x128xf32>
    %140 = arith.mulf %128, %131 : vector<1x64xf32>
    %cst_67 = arith.constant dense<0.000000e+00> : vector<1xf32>
    %141 = vector.multi_reduction <add>, %140, %cst_67 [1] : vector<1x64xf32> to vector<1xf32>
    %142 = vector.shape_cast %141 : vector<1xf32> to vector<1x1xf32>
    %cst_68 = arith.constant 1.250000e-01 : f32
    %143 = vector.broadcast %cst_68 : f32 to vector<1x1xf32>
    %144 = arith.mulf %142, %143 : vector<1x1xf32>
    %145 = tpu.iota {dimensions = array<i32: 0>} : vector<8x128xi32>
    %146 = tpu.iota {dimensions = array<i32: 1>} : vector<8x128xi32>
    %c16_i32 = arith.constant 16 : i32
    %147 = vector.broadcast %c16_i32 : i32 to vector<8x128xi32>
    %148 = arith.muli %145, %147 : vector<8x128xi32>
    %149 = arith.cmpi sge, %146, %148 : vector<8x128xi32>
    %c1_i32 = arith.constant 1 : i32
    %150 = vector.broadcast %c1_i32 : i32 to vector<8x128xi32>
    %151 = arith.addi %145, %150 : vector<8x128xi32>
    %c16_i32_69 = arith.constant 16 : i32
    %152 = vector.broadcast %c16_i32_69 : i32 to vector<8x128xi32>
    %153 = arith.muli %151, %152 : vector<8x128xi32>
    %154 = arith.cmpi slt, %146, %153 : vector<8x128xi32>
    %155 = arith.andi %149, %154 : vector<8x128xi1>
    %cst_70 = arith.constant -1.000000e+30 : f32
    %156 = vector.shape_cast %139 : vector<1x128xf32> to vector<1x128xf32>
    %157 = vector.broadcast %156 : vector<1x128xf32> to vector<8x128xf32>
    %158 = vector.broadcast %cst_70 : f32 to vector<8x128xf32>
    %159 = arith.select %155, %157, %158 : vector<8x128xi1>, vector<8x128xf32>
    %cst_71 = arith.constant dense<0xFF800000> : vector<8xf32>
    %160 = vector.multi_reduction <maximumf>, %159, %cst_71 [1] : vector<8x128xf32> to vector<8xf32>
    %161 = vector.shape_cast %160 : vector<8xf32> to vector<8x1xf32>
    %162 = vector.broadcast %144 : vector<1x1xf32> to vector<8x1xf32>
    %163 = arith.maximumf %161, %162 : vector<8x1xf32>
    %164 = vector.broadcast %163 : vector<8x1xf32> to vector<8x128xf32>
    %165 = arith.subf %159, %164 : vector<8x128xf32>
    %166 = math.exp %165 : vector<8x128xf32>
    %167 = vector.broadcast %144 : vector<1x1xf32> to vector<8x1xf32>
    %168 = arith.subf %167, %163 : vector<8x1xf32>
    %169 = math.exp %168 : vector<8x1xf32>
    %cst_72 = arith.constant dense<0.000000e+00> : vector<8xf32>
    %170 = vector.multi_reduction <add>, %166, %cst_72 [1] : vector<8x128xf32> to vector<8xf32>
    %171 = vector.shape_cast %170 : vector<8xf32> to vector<8x1xf32>
    %172 = arith.addf %171, %169 : vector<8x1xf32>
    %173 = tpu.reciprocal %172 {approx = true} : vector<8x1xf32> -> vector<8x1xf32>
    %174 = vector.broadcast %173 : vector<8x1xf32> to vector<8x128xf32>
    %175 = arith.mulf %166, %174 : vector<8x128xf32>
    %176 = arith.truncf %175 : vector<8x128xf32> to vector<8x128xbf16>
    %177 = arith.truncf %102 : vector<128x64xf32> to vector<128x64xbf16>
    %cst_73 = arith.constant dense<0.000000e+00> : vector<8x64xf32>
    %178 = tpu.matmul %176, %177, %cst_73 {dimension_numbers = #tpu.dot_dimension_numbers<[1], [0], [0], [1], [0, 0, 1, 1], [], []>} : vector<8x128xbf16>, vector<128x64xbf16>, vector<8x64xf32> -> vector<8x64xf32>
    %179 = arith.mulf %169, %173 : vector<8x1xf32>
    %180 = vector.broadcast %179 : vector<8x1xf32> to vector<8x64xf32>
    %181 = vector.broadcast %134 : vector<1x64xf32> to vector<8x64xf32>
    %182 = arith.mulf %180, %181 : vector<8x64xf32>
    %183 = arith.addf %178, %182 : vector<8x64xf32>
    %184 = arith.truncf %183 : vector<8x64xf32> to vector<8x64xbf16>
    %c0_74 = arith.constant 0 : index
    %c0_75 = arith.constant 0 : index
    %185 = vector.load %arg7[%c0_74, %c0_75] : memref<64x64xbf16, #tpu.memory_space<vmem>>, vector<64x64xbf16>
    %cst_76 = arith.constant dense<0.000000e+00> : vector<8x64xf32>
    %186 = tpu.matmul %184, %185, %cst_76 {dimension_numbers = #tpu.dot_dimension_numbers<[1], [0], [0], [1], [0, 0, 1, 1], [], []>} : vector<8x64xbf16>, vector<64x64xbf16>, vector<8x64xf32> -> vector<8x64xf32>
    %187 = vector.broadcast %11 : vector<1x64xf32> to vector<8x64xf32>
    %188 = arith.addf %186, %187 : vector<8x64xf32>
    %189 = vector.broadcast %104 : vector<1x64xf32> to vector<8x64xf32>
    %190 = arith.addf %189, %188 : vector<8x64xf32>
    %cst_77 = arith.constant dense<0.000000e+00> : vector<8xf32>
    %191 = vector.multi_reduction <add>, %190, %cst_77 [1] : vector<8x64xf32> to vector<8xf32>
    %192 = vector.shape_cast %191 : vector<8xf32> to vector<8x1xf32>
    %cst_78 = arith.constant 6.400000e+01 : f32
    %193 = vector.broadcast %cst_78 : f32 to vector<8x1xf32>
    %194 = arith.divf %192, %193 : vector<8x1xf32>
    %195 = vector.broadcast %194 : vector<8x1xf32> to vector<8x64xf32>
    %196 = arith.subf %190, %195 : vector<8x64xf32>
    %197 = arith.mulf %196, %196 : vector<8x64xf32>
    %cst_79 = arith.constant dense<0.000000e+00> : vector<8xf32>
    %198 = vector.multi_reduction <add>, %197, %cst_79 [1] : vector<8x64xf32> to vector<8xf32>
    %199 = vector.shape_cast %198 : vector<8xf32> to vector<8x1xf32>
    %cst_80 = arith.constant 6.400000e+01 : f32
    %200 = vector.broadcast %cst_80 : f32 to vector<8x1xf32>
    %201 = arith.divf %199, %200 : vector<8x1xf32>
    %202 = vector.broadcast %194 : vector<8x1xf32> to vector<8x64xf32>
    %203 = arith.subf %190, %202 : vector<8x64xf32>
    %cst_81 = arith.constant 9.99999974E-6 : f32
    %204 = vector.broadcast %cst_81 : f32 to vector<8x1xf32>
    %205 = arith.addf %201, %204 : vector<8x1xf32>
    %206 = math.rsqrt %205 : vector<8x1xf32>
    %207 = vector.broadcast %206 : vector<8x1xf32> to vector<8x64xf32>
    %208 = arith.mulf %203, %207 : vector<8x64xf32>
    %209 = vector.broadcast %6 : vector<1x64xf32> to vector<8x64xf32>
    %210 = arith.mulf %208, %209 : vector<8x64xf32>
    %211 = vector.broadcast %7 : vector<1x64xf32> to vector<8x64xf32>
    %212 = arith.addf %210, %211 : vector<8x64xf32>
    %213 = arith.truncf %212 : vector<8x64xf32> to vector<8x64xbf16>
    %c0_82 = arith.constant 0 : index
    %c0_83 = arith.constant 0 : index
    %214 = vector.load %arg8[%c0_82, %c0_83] : memref<64x128xbf16, #tpu.memory_space<vmem>>, vector<64x128xbf16>
    %cst_84 = arith.constant dense<0.000000e+00> : vector<8x128xf32>
    %215 = tpu.matmul %213, %214, %cst_84 {dimension_numbers = #tpu.dot_dimension_numbers<[1], [0], [0], [1], [0, 0, 1, 1], [], []>} : vector<8x64xbf16>, vector<64x128xbf16>, vector<8x128xf32> -> vector<8x128xf32>
    %c0_85 = arith.constant 0 : index
    %c0_86 = arith.constant 0 : index
    %216 = vector.load %arg9[%c0_85, %c0_86] : memref<1x128xf32, #tpu.memory_space<vmem>>, vector<1x128xf32>
    %217 = vector.broadcast %216 : vector<1x128xf32> to vector<8x128xf32>
    %218 = arith.addf %215, %217 : vector<8x128xf32>
    %219 = arith.mulf %218, %218 : vector<8x128xf32>
    %220 = arith.mulf %218, %219 : vector<8x128xf32>
    %cst_87 = arith.constant 4.471500e-02 : f32
    %221 = vector.broadcast %cst_87 : f32 to vector<8x128xf32>
    %222 = arith.mulf %221, %220 : vector<8x128xf32>
    %223 = arith.addf %218, %222 : vector<8x128xf32>
    %cst_88 = arith.constant 0.797884583 : f32
    %224 = vector.broadcast %cst_88 : f32 to vector<8x128xf32>
    %225 = arith.mulf %224, %223 : vector<8x128xf32>
    %226 = math.tanh %225 : vector<8x128xf32>
    %cst_89 = arith.constant 1.000000e+00 : f32
    %227 = vector.broadcast %cst_89 : f32 to vector<8x128xf32>
    %228 = arith.addf %227, %226 : vector<8x128xf32>
    %cst_90 = arith.constant 5.000000e-01 : f32
    %229 = vector.broadcast %cst_90 : f32 to vector<8x128xf32>
    %230 = arith.mulf %229, %228 : vector<8x128xf32>
    %231 = arith.mulf %218, %230 : vector<8x128xf32>
    %232 = arith.truncf %231 : vector<8x128xf32> to vector<8x128xbf16>
    %c0_91 = arith.constant 0 : index
    %c0_92 = arith.constant 0 : index
    %233 = vector.load %arg10[%c0_91, %c0_92] : memref<128x64xbf16, #tpu.memory_space<vmem>>, vector<128x64xbf16>
    %cst_93 = arith.constant dense<0.000000e+00> : vector<8x64xf32>
    %234 = tpu.matmul %232, %233, %cst_93 {dimension_numbers = #tpu.dot_dimension_numbers<[1], [0], [0], [1], [0, 0, 1, 1], [], []>} : vector<8x128xbf16>, vector<128x64xbf16>, vector<8x64xf32> -> vector<8x64xf32>
    %235 = vector.broadcast %12 : vector<1x64xf32> to vector<8x64xf32>
    %236 = arith.addf %234, %235 : vector<8x64xf32>
    %237 = arith.addf %190, %236 : vector<8x64xf32>
    %cst_94 = arith.constant dense<0.000000e+00> : vector<8xf32>
    %238 = vector.multi_reduction <add>, %237, %cst_94 [1] : vector<8x64xf32> to vector<8xf32>
    %239 = vector.shape_cast %238 : vector<8xf32> to vector<8x1xf32>
    %cst_95 = arith.constant 6.400000e+01 : f32
    %240 = vector.broadcast %cst_95 : f32 to vector<8x1xf32>
    %241 = arith.divf %239, %240 : vector<8x1xf32>
    %242 = vector.broadcast %241 : vector<8x1xf32> to vector<8x64xf32>
    %243 = arith.subf %237, %242 : vector<8x64xf32>
    %244 = arith.mulf %243, %243 : vector<8x64xf32>
    %cst_96 = arith.constant dense<0.000000e+00> : vector<8xf32>
    %245 = vector.multi_reduction <add>, %244, %cst_96 [1] : vector<8x64xf32> to vector<8xf32>
    %246 = vector.shape_cast %245 : vector<8xf32> to vector<8x1xf32>
    %cst_97 = arith.constant 6.400000e+01 : f32
    %247 = vector.broadcast %cst_97 : f32 to vector<8x1xf32>
    %248 = arith.divf %246, %247 : vector<8x1xf32>
    %249 = vector.broadcast %241 : vector<8x1xf32> to vector<8x64xf32>
    %250 = arith.subf %237, %249 : vector<8x64xf32>
    %cst_98 = arith.constant 9.99999974E-6 : f32
    %251 = vector.broadcast %cst_98 : f32 to vector<8x1xf32>
    %252 = arith.addf %248, %251 : vector<8x1xf32>
    %253 = math.rsqrt %252 : vector<8x1xf32>
    %254 = vector.broadcast %253 : vector<8x1xf32> to vector<8x64xf32>
    %255 = arith.mulf %250, %254 : vector<8x64xf32>
    %256 = vector.broadcast %8 : vector<1x64xf32> to vector<8x64xf32>
    %257 = arith.mulf %255, %256 : vector<8x64xf32>
    %258 = vector.broadcast %9 : vector<1x64xf32> to vector<8x64xf32>
    %259 = arith.addf %257, %258 : vector<8x64xf32>
    %c0_99 = arith.constant 0 : index
    %c0_100 = arith.constant 0 : index
    %260 = vector.load %arg12[%c0_99, %c0_100] : memref<1x128xf32, #tpu.memory_space<vmem>>, vector<1x128xf32>
    %261 = arith.truncf %259 : vector<8x64xf32> to vector<8x64xbf16>
    %262 = vector.extract_strided_slice %261 {offsets = [0, 0], sizes = [1, 64], strides = [1, 1]} : vector<8x64xbf16> to vector<1x64xbf16>
    %c0_101 = arith.constant 0 : index
    %c0_102 = arith.constant 0 : index
    %c0_103 = arith.constant 0 : index
    %263 = vector.load %arg11[%c0_101, %c0_102, %c0_103] : memref<8x64x128xbf16, #tpu.memory_space<vmem>>, vector<1x64x128xbf16>
    %264 = vector.shape_cast %263 : vector<1x64x128xbf16> to vector<64x128xbf16>
    %cst_104 = arith.constant dense<0.000000e+00> : vector<1x128xf32>
    %265 = tpu.matmul %262, %264, %cst_104 {dimension_numbers = #tpu.dot_dimension_numbers<[1], [0], [0], [1], [0, 0, 1, 1], [], []>} : vector<1x64xbf16>, vector<64x128xbf16>, vector<1x128xf32> -> vector<1x128xf32>
    %266 = arith.addf %260, %265 : vector<1x128xf32>
    %267 = vector.extract_strided_slice %261 {offsets = [1, 0], sizes = [1, 64], strides = [1, 1]} : vector<8x64xbf16> to vector<1x64xbf16>
    %c1_105 = arith.constant 1 : index
    %c0_106 = arith.constant 0 : index
    %c0_107 = arith.constant 0 : index
    %268 = vector.load %arg11[%c1_105, %c0_106, %c0_107] : memref<8x64x128xbf16, #tpu.memory_space<vmem>>, vector<1x64x128xbf16>
    %269 = vector.shape_cast %268 : vector<1x64x128xbf16> to vector<64x128xbf16>
    %cst_108 = arith.constant dense<0.000000e+00> : vector<1x128xf32>
    %270 = tpu.matmul %267, %269, %cst_108 {dimension_numbers = #tpu.dot_dimension_numbers<[1], [0], [0], [1], [0, 0, 1, 1], [], []>} : vector<1x64xbf16>, vector<64x128xbf16>, vector<1x128xf32> -> vector<1x128xf32>
    %271 = arith.addf %266, %270 : vector<1x128xf32>
    %272 = vector.extract_strided_slice %261 {offsets = [2, 0], sizes = [1, 64], strides = [1, 1]} : vector<8x64xbf16> to vector<1x64xbf16>
    %c2_109 = arith.constant 2 : index
    %c0_110 = arith.constant 0 : index
    %c0_111 = arith.constant 0 : index
    %273 = vector.load %arg11[%c2_109, %c0_110, %c0_111] : memref<8x64x128xbf16, #tpu.memory_space<vmem>>, vector<1x64x128xbf16>
    %274 = vector.shape_cast %273 : vector<1x64x128xbf16> to vector<64x128xbf16>
    %cst_112 = arith.constant dense<0.000000e+00> : vector<1x128xf32>
    %275 = tpu.matmul %272, %274, %cst_112 {dimension_numbers = #tpu.dot_dimension_numbers<[1], [0], [0], [1], [0, 0, 1, 1], [], []>} : vector<1x64xbf16>, vector<64x128xbf16>, vector<1x128xf32> -> vector<1x128xf32>
    %276 = arith.addf %271, %275 : vector<1x128xf32>
    %277 = vector.extract_strided_slice %261 {offsets = [3, 0], sizes = [1, 64], strides = [1, 1]} : vector<8x64xbf16> to vector<1x64xbf16>
    %c3_113 = arith.constant 3 : index
    %c0_114 = arith.constant 0 : index
    %c0_115 = arith.constant 0 : index
    %278 = vector.load %arg11[%c3_113, %c0_114, %c0_115] : memref<8x64x128xbf16, #tpu.memory_space<vmem>>, vector<1x64x128xbf16>
    %279 = vector.shape_cast %278 : vector<1x64x128xbf16> to vector<64x128xbf16>
    %cst_116 = arith.constant dense<0.000000e+00> : vector<1x128xf32>
    %280 = tpu.matmul %277, %279, %cst_116 {dimension_numbers = #tpu.dot_dimension_numbers<[1], [0], [0], [1], [0, 0, 1, 1], [], []>} : vector<1x64xbf16>, vector<64x128xbf16>, vector<1x128xf32> -> vector<1x128xf32>
    %281 = arith.addf %276, %280 : vector<1x128xf32>
    %282 = vector.extract_strided_slice %261 {offsets = [4, 0], sizes = [1, 64], strides = [1, 1]} : vector<8x64xbf16> to vector<1x64xbf16>
    %c4_117 = arith.constant 4 : index
    %c0_118 = arith.constant 0 : index
    %c0_119 = arith.constant 0 : index
    %283 = vector.load %arg11[%c4_117, %c0_118, %c0_119] : memref<8x64x128xbf16, #tpu.memory_space<vmem>>, vector<1x64x128xbf16>
    %284 = vector.shape_cast %283 : vector<1x64x128xbf16> to vector<64x128xbf16>
    %cst_120 = arith.constant dense<0.000000e+00> : vector<1x128xf32>
    %285 = tpu.matmul %282, %284, %cst_120 {dimension_numbers = #tpu.dot_dimension_numbers<[1], [0], [0], [1], [0, 0, 1, 1], [], []>} : vector<1x64xbf16>, vector<64x128xbf16>, vector<1x128xf32> -> vector<1x128xf32>
    %286 = arith.addf %281, %285 : vector<1x128xf32>
    %287 = vector.extract_strided_slice %261 {offsets = [5, 0], sizes = [1, 64], strides = [1, 1]} : vector<8x64xbf16> to vector<1x64xbf16>
    %c5_121 = arith.constant 5 : index
    %c0_122 = arith.constant 0 : index
    %c0_123 = arith.constant 0 : index
    %288 = vector.load %arg11[%c5_121, %c0_122, %c0_123] : memref<8x64x128xbf16, #tpu.memory_space<vmem>>, vector<1x64x128xbf16>
    %289 = vector.shape_cast %288 : vector<1x64x128xbf16> to vector<64x128xbf16>
    %cst_124 = arith.constant dense<0.000000e+00> : vector<1x128xf32>
    %290 = tpu.matmul %287, %289, %cst_124 {dimension_numbers = #tpu.dot_dimension_numbers<[1], [0], [0], [1], [0, 0, 1, 1], [], []>} : vector<1x64xbf16>, vector<64x128xbf16>, vector<1x128xf32> -> vector<1x128xf32>
    %291 = arith.addf %286, %290 : vector<1x128xf32>
    %292 = vector.extract_strided_slice %261 {offsets = [6, 0], sizes = [1, 64], strides = [1, 1]} : vector<8x64xbf16> to vector<1x64xbf16>
    %c6_125 = arith.constant 6 : index
    %c0_126 = arith.constant 0 : index
    %c0_127 = arith.constant 0 : index
    %293 = vector.load %arg11[%c6_125, %c0_126, %c0_127] : memref<8x64x128xbf16, #tpu.memory_space<vmem>>, vector<1x64x128xbf16>
    %294 = vector.shape_cast %293 : vector<1x64x128xbf16> to vector<64x128xbf16>
    %cst_128 = arith.constant dense<0.000000e+00> : vector<1x128xf32>
    %295 = tpu.matmul %292, %294, %cst_128 {dimension_numbers = #tpu.dot_dimension_numbers<[1], [0], [0], [1], [0, 0, 1, 1], [], []>} : vector<1x64xbf16>, vector<64x128xbf16>, vector<1x128xf32> -> vector<1x128xf32>
    %296 = arith.addf %291, %295 : vector<1x128xf32>
    %297 = vector.extract_strided_slice %261 {offsets = [7, 0], sizes = [1, 64], strides = [1, 1]} : vector<8x64xbf16> to vector<1x64xbf16>
    %c7_129 = arith.constant 7 : index
    %c0_130 = arith.constant 0 : index
    %c0_131 = arith.constant 0 : index
    %298 = vector.load %arg11[%c7_129, %c0_130, %c0_131] : memref<8x64x128xbf16, #tpu.memory_space<vmem>>, vector<1x64x128xbf16>
    %299 = vector.shape_cast %298 : vector<1x64x128xbf16> to vector<64x128xbf16>
    %cst_132 = arith.constant dense<0.000000e+00> : vector<1x128xf32>
    %300 = tpu.matmul %297, %299, %cst_132 {dimension_numbers = #tpu.dot_dimension_numbers<[1], [0], [0], [1], [0, 0, 1, 1], [], []>} : vector<1x64xbf16>, vector<64x128xbf16>, vector<1x128xf32> -> vector<1x128xf32>
    %301 = arith.addf %296, %300 : vector<1x128xf32>
    %c0_133 = arith.constant 0 : index
    %c0_134 = arith.constant 0 : index
    %c0_135 = arith.constant 0 : index
    %302 = vector.load %arg13[%c0_133, %c0_134, %c0_135] : memref<1x1x128xf32, #tpu.memory_space<vmem>>, vector<1x1x128xf32>
    %303 = vector.shape_cast %302 : vector<1x1x128xf32> to vector<1x128xf32>
    %304 = vector.shape_cast %301 : vector<1x128xf32> to vector<1x1x128xf32>
    tpu.vector_store %arg13[%c0_133, %c0_134, %c0_135], %304 {strides = array<i32>} : memref<1x1x128xf32, #tpu.memory_space<vmem>>, vector<1x1x128xf32>,
    return
  }
  func.func @transform_0(%arg0: i32) -> (i32, i32, i32) {
    %c0_i32 = arith.constant 0 : i32
    %c0_i32_0 = arith.constant 0 : i32
    %c0_i32_1 = arith.constant 0 : i32
    return %arg0, %c0_i32, %c0_i32_0 : i32, i32, i32
  }
  func.func @transform_1(%arg0: i32) -> (i32, i32) {
    %c0_i32 = arith.constant 0 : i32
    %c0_i32_0 = arith.constant 0 : i32
    %c0_i32_1 = arith.constant 0 : i32
    return %c0_i32, %c0_i32_0 : i32, i32
  }
  func.func @transform_2(%arg0: i32) -> (i32, i32) {
    %c0_i32 = arith.constant 0 : i32
    %c0_i32_0 = arith.constant 0 : i32
    %c0_i32_1 = arith.constant 0 : i32
    return %c0_i32, %c0_i32_0 : i32, i32
  }
  func.func @transform_3(%arg0: i32) -> (i32, i32) {
    %c0_i32 = arith.constant 0 : i32
    %c0_i32_0 = arith.constant 0 : i32
    %c0_i32_1 = arith.constant 0 : i32
    return %c0_i32, %c0_i32_0 : i32, i32
  }
  func.func @transform_4(%arg0: i32) -> (i32, i32) {
    %c0_i32 = arith.constant 0 : i32
    %c0_i32_0 = arith.constant 0 : i32
    %c0_i32_1 = arith.constant 0 : i32
    return %c0_i32, %c0_i32_0 : i32, i32
  }
  func.func @transform_5(%arg0: i32) -> (i32, i32, i32) {
    %c0_i32 = arith.constant 0 : i32
    %c0_i32_0 = arith.constant 0 : i32
    %c0_i32_1 = arith.constant 0 : i32
    %c0_i32_2 = arith.constant 0 : i32
    return %c0_i32, %c0_i32_0, %c0_i32_1 : i32, i32, i32
  }
  func.func @transform_6(%arg0: i32) -> (i32, i32) {
    %c0_i32 = arith.constant 0 : i32
    %c0_i32_0 = arith.constant 0 : i32
    %c0_i32_1 = arith.constant 0 : i32
    return %c0_i32, %c0_i32_0 : i32, i32
  }
  func.func @transform_7(%arg0: i32) -> (i32, i32) {
    %c0_i32 = arith.constant 0 : i32
    %c0_i32_0 = arith.constant 0 : i32
    %c0_i32_1 = arith.constant 0 : i32
    return %c0_i32, %c0_i32_0 : i32, i32
  }
  func.func @transform_8(%arg0: i32) -> (i32, i32) {
    %c0_i32 = arith.constant 0 : i32
    %c0_i32_0 = arith.constant 0 : i32
    %c0_i32_1 = arith.constant 0 : i32
    return %c0_i32, %c0_i32_0 : i32, i32
  }
  func.func @transform_9(%arg0: i32) -> (i32, i32) {
    %c0_i32 = arith.constant 0 : i32
    %c0_i32_0 = arith.constant 0 : i32
    %c0_i32_1 = arith.constant 0 : i32
    return %c0_i32, %c0_i32_0 : i32, i32
  }
  func.func @transform_10(%arg0: i32) -> (i32, i32, i32) {
    %c0_i32 = arith.constant 0 : i32
    %c0_i32_0 = arith.constant 0 : i32
    %c0_i32_1 = arith.constant 0 : i32
    %c0_i32_2 = arith.constant 0 : i32
    return %c0_i32, %c0_i32_0, %c0_i32_1 : i32, i32, i32
  }
  func.func @transform_11(%arg0: i32) -> (i32, i32) {
    %c0_i32 = arith.constant 0 : i32
    %c0_i32_0 = arith.constant 0 : i32
    %c0_i32_1 = arith.constant 0 : i32
    return %c0_i32, %c0_i32_0 : i32, i32
  }
  func.func @transform_12(%arg0: i32) -> (i32, i32, i32) {
    %c0_i32 = arith.constant 0 : i32
    %c0_i32_0 = arith.constant 0 : i32
    %c0_i32_1 = arith.constant 0 : i32
    return %arg0, %c0_i32, %c0_i32_0 : i32, i32, i32
  }
}

</mosaic_0001>

<llo_original>
// kernel: forward.1
$region0: #{forward.1}
  #allocation0 [shape = 'u32[]', space=smem, size = 0x4, offset = 0x4, fixed_abs, tag = 'smem constant byte address 0x4 - core index']
  #allocation1 [shape = 'u32[144,128]{1,0:T(1,128)}', space=vmem, size = 0x12000, scoped, tag = 'internal scratch']
  %s0 = inlined_call_operand.vmem [shape: bf16[16,16,256], index: 0, kind: input, shape index: {}]
  %s1 = inlined_call_operand.vmem [shape: f32[2,256], index: 1, kind: input, shape index: {}]
  %s2 = inlined_call_operand.vmem [shape: bf16[256,64], index: 2, kind: input, shape index: {}]
  %s3 = inlined_call_operand.vmem [shape: f32[12,64], index: 3, kind: input, shape index: {}]
  %s4 = inlined_call_operand.vmem [shape: f32[17,64], index: 4, kind: input, shape index: {}]
  %s5 = inlined_call_operand.vmem [shape: bf16[3,64,64], index: 5, kind: input, shape index: {}]
  %s6 = inlined_call_operand.vmem [shape: bf16[64,64], index: 6, kind: input, shape index: {}]
  %s7 = inlined_call_operand.vmem [shape: bf16[64,128], index: 7, kind: input, shape index: {}]
  %s8 = inlined_call_operand.vmem [shape: f32[1,128], index: 8, kind: input, shape index: {}]
  %s9 = inlined_call_operand.vmem [shape: bf16[128,64], index: 9, kind: input, shape index: {}]
  %s10 = inlined_call_operand.vmem [shape: bf16[8,64,128], index: 10, kind: input, shape index: {}]
  %s11 = inlined_call_operand.vmem [shape: f32[1,128], index: 11, kind: input, shape index: {}]
  %s12 = inlined_call_operand.hbm [shape: f32[2,1,128], index: 12, kind: output, shape index: {}]
  %s13 = sld [smem:[#allocation0]]
  $region81: #{forward.1} parent=0
    _
  %s15 = ssub.s32 1, %s13
  %s16 = scalar_select 0, %s15, %s13
  $region1: #{forward.1} parent=0
    #allocation2 [shape = 'u8[1024]{0}', space=vmem, size = 0x400, scoped, tag = 'output window, operand 0']
    #allocation3 [shape = 's32[2]{0}', space=sflag, size = 0x8, scoped, tag = 'scoped memory for forward.1']
    %17 = vsyncpa [#allocation3], 0
    %s18 = scalar_lea.sflag [#allocation3], 1
    %19 = vsyncpa %s18, 0
    loop: start=0, step=1, limit=4
    $region2: #{forward.1} parent=1 // loop_pre_header
      _
    $region3: #{forward.1} parent=1 // loop_header
      %s21 = sphi 0, %s25
      %p22 = scmp.ge.s32.totalorder %s21, 4
      %s31 = sphi 0, %s33
      %s34 = sphi 0, %s31
      %s35 = sphi 0, %s34
      %s51 = sphi 0, %s35
      %s55 = sphi 0, %s55
      %s57 = sphi 0, %s55
      %s58 = sphi 0, %s57
      %s72 = sphi 0, %s58
      %s76 = sphi 0, %s76
      %s78 = sphi 0, %s76
      %s79 = sphi 0, %s78
      %s93 = sphi 0, %s79
      %s97 = sphi 0, %s97
      %s99 = sphi 0, %s97
      %s100 = sphi 0, %s99
      %s114 = sphi 0, %s100
      %s118 = sphi 0, %s118
      %s120 = sphi 0, %s118
      %s121 = sphi 0, %s120
      %s135 = sphi 0, %s121
      %s139 = sphi 0, %s139
      %s141 = sphi 0, %s139
      %s142 = sphi 0, %s141
      %s156 = sphi 0, %s142
      %s160 = sphi 0, %s160
      %s162 = sphi 0, %s160
      %s163 = sphi 0, %s162
      %s177 = sphi 0, %s163
      %s181 = sphi 0, %s181
      %s183 = sphi 0, %s181
      %s184 = sphi 0, %s183
      %s198 = sphi 0, %s184
      %s202 = sphi 0, %s202
      %s204 = sphi 0, %s202
      %s205 = sphi 0, %s204
      %s219 = sphi 0, %s205
      %s223 = sphi 0, %s223
      %s225 = sphi 0, %s223
      %s226 = sphi 0, %s225
      %s240 = sphi 0, %s226
      %s244 = sphi 0, %s244
      %s246 = sphi 0, %s244
      %s247 = sphi 0, %s246
      %s261 = sphi 0, %s247
      %s265 = sphi 0, %s265
      %s267 = sphi 0, %s265
      %s268 = sphi 0, %s267
      %s282 = sphi 0, %s268
      %s288 = sphi 0, %s290
      %s291 = sphi 0, %s288
      %s292 = sphi 0, %s291
      %s308 = sphi 0, %s292
    $region4: #{forward.1} parent=1 // loop_header_branch
      %24 = sbr.rel (%p22) target = $region8
    $region5: #{forward.1} parent=1 // loop_body
      %s26 = ssub.s32 %s21, 1
      %s27 = ssub.s32 %s21, 2
      %s28 = sadd.s32 %s21, 1
      %s29 = ssub.s32 %s21, %s28
      %p30 = scmp.eq.s32.totalorder %s29, 0
      %s32 = sadd.s32 %s31, 1
      %s33 = scalar_select %p30, %s31, %s32
      %p36 = pneg %p30
      %p37 = scmp.eq.s32.totalorder %s21, 1
      %p38 = por %p36, %p37
      %p39 = scmp.ne.s32.totalorder %s31, %s34
      %p40 = scmp.eq.s32.totalorder %s21, 0
      %p41 = por %p39, %p40
      %p42 = scmp.ne.s32.totalorder %s31, %s34
      %p43 = scmp.eq.s32.totalorder %s26, 1
      %p44 = por %p42, %p43
      %p45 = scmp.ne.s32.totalorder %s34, %s35
      %p46 = scmp.eq.s32.totalorder %s26, 0
      %p47 = por %p45, %p46
      %p48 = scmp.ne.s32.totalorder %s34, %s35
      %p49 = scmp.eq.s32.totalorder %s27, 1
      %p50 = por %p48, %p49
      %p52 = scmp.ne.s32.totalorder %s35, %s51
      %p53 = scmp.eq.s32.totalorder %s27, 0
      %p54 = por %p52, %p53
      %s56 = sadd.s32 %s55, 1
      %p59 = scmp.eq.s32.totalorder %s21, 1
      %p60 = scmp.ne.s32.totalorder %s55, %s57
      %p61 = scmp.eq.s32.totalorder %s21, 0
      %p62 = por %p60, %p61
      %p63 = scmp.ne.s32.totalorder %s55, %s57
      %p64 = scmp.eq.s32.totalorder %s26, 1
      %p65 = por %p63, %p64
      %p66 = scmp.ne.s32.totalorder %s57, %s58
      %p67 = scmp.eq.s32.totalorder %s26, 0
      %p68 = por %p66, %p67
      %p69 = scmp.ne.s32.totalorder %s57, %s58
      %p70 = scmp.eq.s32.totalorder %s27, 1
      %p71 = por %p69, %p70
      %p73 = scmp.ne.s32.totalorder %s58, %s72
      %p74 = scmp.eq.s32.totalorder %s27, 0
      %p75 = por %p73, %p74
      %s77 = sadd.s32 %s76, 1
      %p80 = scmp.eq.s32.totalorder %s21, 1
      %p81 = scmp.ne.s32.totalorder %s76, %s78
      %p82 = scmp.eq.s32.totalorder %s21, 0
      %p83 = por %p81, %p82
      %p84 = scmp.ne.s32.totalorder %s76, %s78
      %p85 = scmp.eq.s32.totalorder %s26, 1
      %p86 = por %p84, %p85
      %p87 = scmp.ne.s32.totalorder %s78, %s79
      %p88 = scmp.eq.s32.totalorder %s26, 0
      %p89 = por %p87, %p88
      %p90 = scmp.ne.s32.totalorder %s78, %s79
      %p91 = scmp.eq.s32.totalorder %s27, 1
      %p92 = por %p90, %p91
      %p94 = scmp.ne.s32.totalorder %s79, %s93
      %p95 = scmp.eq.s32.totalorder %s27, 0
      %p96 = por %p94, %p95
      %s98 = sadd.s32 %s97, 1
      %p101 = scmp.eq.s32.totalorder %s21, 1
      %p102 = scmp.ne.s32.totalorder %s97, %s99
      %p103 = scmp.eq.s32.totalorder %s21, 0
      %p104 = por %p102, %p103
      %p105 = scmp.ne.s32.totalorder %s97, %s99
      %p106 = scmp.eq.s32.totalorder %s26, 1
      %p107 = por %p105, %p106
      %p108 = scmp.ne.s32.totalorder %s99, %s100
      %p109 = scmp.eq.s32.totalorder %s26, 0
      %p110 = por %p108, %p109
      %p111 = scmp.ne.s32.totalorder %s99, %s100
      %p112 = scmp.eq.s32.totalorder %s27, 1
      %p113 = por %p111, %p112
      %p115 = scmp.ne.s32.totalorder %s100, %s114
      %p116 = scmp.eq.s32.totalorder %s27, 0
      %p117 = por %p115, %p116
      %s119 = sadd.s32 %s118, 1
      %p122 = scmp.eq.s32.totalorder %s21, 1
      %p123 = scmp.ne.s32.totalorder %s118, %s120
      %p124 = scmp.eq.s32.totalorder %s21, 0
      %p125 = por %p123, %p124
      %p126 = scmp.ne.s32.totalorder %s118, %s120
      %p127 = scmp.eq.s32.totalorder %s26, 1
      %p128 = por %p126, %p127
      %p129 = scmp.ne.s32.totalorder %s120, %s121
      %p130 = scmp.eq.s32.totalorder %s26, 0
      %p131 = por %p129, %p130
      %p132 = scmp.ne.s32.totalorder %s120, %s121
      %p133 = scmp.eq.s32.totalorder %s27, 1
      %p134 = por %p132, %p133
      %p136 = scmp.ne.s32.totalorder %s121, %s135
      %p137 = scmp.eq.s32.totalorder %s27, 0
      %p138 = por %p136, %p137
      %s140 = sadd.s32 %s139, 1
      %p143 = scmp.eq.s32.totalorder %s21, 1
      %p144 = scmp.ne.s32.totalorder %s139, %s141
      %p145 = scmp.eq.s32.totalorder %s21, 0
      %p146 = por %p144, %p145
      %p147 = scmp.ne.s32.totalorder %s139, %s141
      %p148 = scmp.eq.s32.totalorder %s26, 1
      %p149 = por %p147, %p148
      %p150 = scmp.ne.s32.totalorder %s141, %s142
      %p151 = scmp.eq.s32.totalorder %s26, 0
      %p152 = por %p150, %p151
      %p153 = scmp.ne.s32.totalorder %s141, %s142
      %p154 = scmp.eq.s32.totalorder %s27, 1
      %p155 = por %p153, %p154
      %p157 = scmp.ne.s32.totalorder %s142, %s156
      %p158 = scmp.eq.s32.totalorder %s27, 0
      %p159 = por %p157, %p158
      %s161 = sadd.s32 %s160, 1
      %p164 = scmp.eq.s32.totalorder %s21, 1
      %p165 = scmp.ne.s32.totalorder %s160, %s162
      %p166 = scmp.eq.s32.totalorder %s21, 0
      %p167 = por %p165, %p166
      %p168 = scmp.ne.s32.totalorder %s160, %s162
      %p169 = scmp.eq.s32.totalorder %s26, 1
      %p170 = por %p168, %p169
      %p171 = scmp.ne.s32.totalorder %s162, %s163
      %p172 = scmp.eq.s32.totalorder %s26, 0
      %p173 = por %p171, %p172
      %p174 = scmp.ne.s32.totalorder %s162, %s163
      %p175 = scmp.eq.s32.totalorder %s27, 1
      %p176 = por %p174, %p175
      %p178 = scmp.ne.s32.totalorder %s163, %s177
      %p179 = scmp.eq.s32.totalorder %s27, 0
      %p180 = por %p178, %p179
      %s182 = sadd.s32 %s181, 1
      %p185 = scmp.eq.s32.totalorder %s21, 1
      %p186 = scmp.ne.s32.totalorder %s181, %s183
      %p187 = scmp.eq.s32.totalorder %s21, 0
      %p188 = por %p186, %p187
      %p189 = scmp.ne.s32.totalorder %s181, %s183
      %p190 = scmp.eq.s32.totalorder %s26, 1
      %p191 = por %p189, %p190
      %p192 = scmp.ne.s32.totalorder %s183, %s184
      %p193 = scmp.eq.s32.totalorder %s26, 0
      %p194 = por %p192, %p193
      %p195 = scmp.ne.s32.totalorder %s183, %s184
      %p196 = scmp.eq.s32.totalorder %s27, 1
      %p197 = por %p195, %p196
      %p199 = scmp.ne.s32.totalorder %s184, %s198
      %p200 = scmp.eq.s32.totalorder %s27, 0
      %p201 = por %p199, %p200
      %s203 = sadd.s32 %s202, 1
      %p206 = scmp.eq.s32.totalorder %s21, 1
      %p207 = scmp.ne.s32.totalorder %s202, %s204
      %p208 = scmp.eq.s32.totalorder %s21, 0
      %p209 = por %p207, %p208
      %p210 = scmp.ne.s32.totalorder %s202, %s204
      %p211 = scmp.eq.s32.totalorder %s26, 1
      %p212 = por %p210, %p211
      %p213 = scmp.ne.s32.totalorder %s204, %s205
      %p214 = scmp.eq.s32.totalorder %s26, 0
      %p215 = por %p213, %p214
      %p216 = scmp.ne.s32.totalorder %s204, %s205
      %p217 = scmp.eq.s32.totalorder %s27, 1
      %p218 = por %p216, %p217
      %p220 = scmp.ne.s32.totalorder %s205, %s219
      %p221 = scmp.eq.s32.totalorder %s27, 0
      %p222 = por %p220, %p221
      %s224 = sadd.s32 %s223, 1
      %p227 = scmp.eq.s32.totalorder %s21, 1
      %p228 = scmp.ne.s32.totalorder %s223, %s225
      %p229 = scmp.eq.s32.totalorder %s21, 0
      %p230 = por %p228, %p229
      %p231 = scmp.ne.s32.totalorder %s223, %s225
      %p232 = scmp.eq.s32.totalorder %s26, 1
      %p233 = por %p231, %p232
      %p234 = scmp.ne.s32.totalorder %s225, %s226
      %p235 = scmp.eq.s32.totalorder %s26, 0
      %p236 = por %p234, %p235
      %p237 = scmp.ne.s32.totalorder %s225, %s226
      %p238 = scmp.eq.s32.totalorder %s27, 1
      %p239 = por %p237, %p238
      %p241 = scmp.ne.s32.totalorder %s226, %s240
      %p242 = scmp.eq.s32.totalorder %s27, 0
      %p243 = por %p241, %p242
      %s245 = sadd.s32 %s244, 1
      %p248 = scmp.eq.s32.totalorder %s21, 1
      %p249 = scmp.ne.s32.totalorder %s244, %s246
      %p250 = scmp.eq.s32.totalorder %s21, 0
      %p251 = por %p249, %p250
      %p252 = scmp.ne.s32.totalorder %s244, %s246
      %p253 = scmp.eq.s32.totalorder %s26, 1
      %p254 = por %p252, %p253
      %p255 = scmp.ne.s32.totalorder %s246, %s247
      %p256 = scmp.eq.s32.totalorder %s26, 0
      %p257 = por %p255, %p256
      %p258 = scmp.ne.s32.totalorder %s246, %s247
      %p259 = scmp.eq.s32.totalorder %s27, 1
      %p260 = por %p258, %p259
      %p262 = scmp.ne.s32.totalorder %s247, %s261
      %p263 = scmp.eq.s32.totalorder %s27, 0
      %p264 = por %p262, %p263
      %s266 = sadd.s32 %s265, 1
      %p269 = scmp.eq.s32.totalorder %s21, 1
      %p270 = scmp.ne.s32.totalorder %s265, %s267
      %p271 = scmp.eq.s32.totalorder %s21, 0
      %p272 = por %p270, %p271
      %p273 = scmp.ne.s32.totalorder %s265, %s267
      %p274 = scmp.eq.s32.totalorder %s26, 1
      %p275 = por %p273, %p274
      %p276 = scmp.ne.s32.totalorder %s267, %s268
      %p277 = scmp.eq.s32.totalorder %s26, 0
      %p278 = por %p276, %p277
      %p279 = scmp.ne.s32.totalorder %s267, %s268
      %p280 = scmp.eq.s32.totalorder %s27, 1
      %p281 = por %p279, %p280
      %p283 = scmp.ne.s32.totalorder %s268, %s282
      %p284 = scmp.eq.s32.totalorder %s27, 0
      %p285 = por %p283, %p284
      %s286 = ssub.s32 %s21, %s28
      %p287 = scmp.eq.s32.totalorder %s286, 0
      %s289 = sadd.s32 %s288, 1
      %s290 = scalar_select %p287, %s288, %s289
      %p293 = pneg %p287
      %p294 = scmp.eq.s32.totalorder %s21, 1
      %p295 = por %p293, %p294
      %p296 = scmp.ne.s32.totalorder %s288, %s291
      %p297 = scmp.eq.s32.totalorder %s21, 0
      %p298 = por %p296, %p297
      %p299 = scmp.ne.s32.totalorder %s288, %s291
      %p300 = scmp.eq.s32.totalorder %s26, 1
      %p301 = por %p299, %p300
      %p302 = scmp.ne.s32.totalorder %s291, %s292
      %p303 = scmp.eq.s32.totalorder %s26, 0
      %p304 = por %p302, %p303
      %p305 = scmp.ne.s32.totalorder %s291, %s292
      %p306 = scmp.eq.s32.totalorder %s27, 1
      %p307 = por %p305, %p306
      %p309 = scmp.ne.s32.totalorder %s292, %s308
      %p310 = scmp.eq.s32.totalorder %s27, 0
      %p311 = por %p309, %p310
      %p312 = scmp.le.s32.totalorder 1, %s21
      %p313 = scmp.lt.s32.totalorder %s21, 3
      %p314 = pnand %p312, %p313
      %p315 = pneg %p314
      // Predicated region
      $region9: #{forward.1} parent=5 // pred_check
        _
      $region10: #{forward.1} parent=5 // pred_check_branch
        %317 = sbr.rel (%p314) target = $region12
      $region11: #{forward.1} parent=5 // pred_region
        %s318 = ssub.s32 %s21, 1
        // Predicated region
        $region13: #{forward.1} parent=11 // pred_check
          %p319 = pneg %p68
        $region14: #{forward.1} parent=11 // pred_check_branch
          %321 = sbr.rel (%p319) target = $region16
        $region15: #{forward.1} parent=11 // pred_region
          _
        $region16: #{forward.1} parent=11 // pred_fallthru
          _
        // Predicated region
        $region17: #{forward.1} parent=11 // pred_check
          %p322 = pneg %p89
        $region18: #{forward.1} parent=11 // pred_check_branch
          %324 = sbr.rel (%p322) target = $region20
        $region19: #{forward.1} parent=11 // pred_region
          _
        $region20: #{forward.1} parent=11 // pred_fallthru
          _
        // Predicated region
        $region21: #{forward.1} parent=11 // pred_check
          %p325 = pneg %p110
        $region22: #{forward.1} parent=11 // pred_check_branch
          %327 = sbr.rel (%p325) target = $region24
        $region23: #{forward.1} parent=11 // pred_region
          _
        $region24: #{forward.1} parent=11 // pred_fallthru
          _
        // Predicated region
        $region25: #{forward.1} parent=11 // pred_check
          %p328 = pneg %p131
        $region26: #{forward.1} parent=11 // pred_check_branch
          %330 = sbr.rel (%p328) target = $region28
        $region27: #{forward.1} parent=11 // pred_region
          _
        $region28: #{forward.1} parent=11 // pred_fallthru
          _
        // Predicated region
        $region29: #{forward.1} parent=11 // pred_check
          %p331 = pneg %p152
        $region30: #{forward.1} parent=11 // pred_check_branch
          %333 = sbr.rel (%p331) target = $region32
        $region31: #{forward.1} parent=11 // pred_region
          _
        $region32: #{forward.1} parent=11 // pred_fallthru
          _
        // Predicated region
        $region33: #{forward.1} parent=11 // pred_check
          %p334 = pneg %p173
        $region34: #{forward.1} parent=11 // pred_check_branch
          %336 = sbr.rel (%p334) target = $region36
        $region35: #{forward.1} parent=11 // pred_region
          _
        $region36: #{forward.1} parent=11 // pred_fallthru
          _
        // Predicated region
        $region37: #{forward.1} parent=11 // pred_check
          %p337 = pneg %p194
        $region38: #{forward.1} parent=11 // pred_check_branch
          %339 = sbr.rel (%p337) target = $region40
        $region39: #{forward.1} parent=11 // pred_region
          _
        $region40: #{forward.1} parent=11 // pred_fallthru
          _
        // Predicated region
        $region41: #{forward.1} parent=11 // pred_check
          %p340 = pneg %p215
        $region42: #{forward.1} parent=11 // pred_check_branch
          %342 = sbr.rel (%p340) target = $region44
        $region43: #{forward.1} parent=11 // pred_region
          _
        $region44: #{forward.1} parent=11 // pred_fallthru
          _
        // Predicated region
        $region45: #{forward.1} parent=11 // pred_check
          %p343 = pneg %p236
        $region46: #{forward.1} parent=11 // pred_check_branch
          %345 = sbr.rel (%p343) target = $region48
        $region47: #{forward.1} parent=11 // pred_region
          _
        $region48: #{forward.1} parent=11 // pred_fallthru
          _
        // Predicated region
        $region49: #{forward.1} parent=11 // pred_check
          %p346 = pneg %p257
        $region50: #{forward.1} parent=11 // pred_check_branch
          %348 = sbr.rel (%p346) target = $region52
        $region51: #{forward.1} parent=11 // pred_region
          _
        $region52: #{forward.1} parent=11 // pred_fallthru
          _
        // Predicated region
        $region53: #{forward.1} parent=11 // pred_check
          %p349 = pneg %p278
        $region54: #{forward.1} parent=11 // pred_check_branch
          %351 = sbr.rel (%p349) target = $region56
        $region55: #{forward.1} parent=11 // pred_region
          _
        $region56: #{forward.1} parent=11 // pred_fallthru
          _
      $region12: #{forward.1} parent=5 // pred_fallthru
        _
      %p352 = scmp.lt.s32.totalorder %s21, 2
      // Predicated region
      $region57: #{forward.1} parent=5 // pred_check
        %p353 = pneg %p352
      $region58: #{forward.1} parent=5 // pred_check_branch
        %355 = sbr.rel (%p353) target = $region60
      $region59: #{forward.1} parent=5 // pred_region
        // Predicated region
        $region61: #{forward.1} parent=59 // pred_check
          %p356 = pneg %p41
        $region62: #{forward.1} parent=59 // pred_check_branch
          %358 = sbr.rel (%p356) target = $region64
        $region63: #{forward.1} parent=59 // pred_region
          %s359 = smul.u32 8, %s21
          %p360 = scmp.lt.s32.totalorder %s359, 15
          %s361 = scalar_select %p360, %s359, 15
          %s362 = smul.addr %s361, 4
          %s363 = smul.addr %s362, 4
          %s364 = scalar_lea.vmem %s0, %s363
          %s365 = smul.u32 8, %s21
        $region64: #{forward.1} parent=59 // pred_fallthru
          _
      $region60: #{forward.1} parent=5 // pred_fallthru
        _
      %p366 = scmp.le.s32.totalorder 1, %s21
      %p367 = scmp.lt.s32.totalorder %s21, 3
      %p368 = pnand %p366, %p367
      %p369 = pneg %p368
      // Predicated region
      $region65: #{forward.1} parent=5 // pred_check
        _
      $region66: #{forward.1} parent=5 // pred_check_branch
        %371 = sbr.rel (%p368) target = $region68
      $region67: #{forward.1} parent=5 // pred_region
        %s372 = ssub.s32 %s21, 1
        %s373 = smul.u32 8, %s26
        %p374 = scmp.lt.s32.totalorder %s373, 15
        %s375 = scalar_select %p374, %s373, 15
        %s376 = smul.addr %s375, 4
        %s377 = smul.addr %s376, 4
        %s378 = scalar_lea.vmem %s0, %s377
        %p379 = pneg %p47
        %p380 = pneg %p44
        %p381 = pneg %p68
        %p382 = pneg %p65
        %p383 = pneg %p89
        %p384 = pneg %p86
        %p385 = pneg %p110
        %p386 = pneg %p107
        %p387 = pneg %p131
        %p388 = pneg %p128
        %p389 = pneg %p152
        %p390 = pneg %p149
        %p391 = pneg %p173
        %p392 = pneg %p170
        %p393 = pneg %p194
        %p394 = pneg %p191
        %p395 = pneg %p215
        %p396 = pneg %p212
        %p397 = pneg %p236
        %p398 = pneg %p233
        %p399 = pneg %p257
        %p400 = pneg %p254
        %p401 = pneg %p278
        %p402 = pneg %p275
        %p403 = pneg %p304
        %p404 = pneg %p301
        %s405 = sand.u32 %s291, 1
        %s406 = scalar_lea.sflag [#allocation3], %s405
        %s407 = sand.u32 %s291, 1
        %s408 = scalar_lea.vmem [#allocation2], %s407
        %s409 = smul.u32 8, %s26
        %p410 = scmp.lt.s32.totalorder %s409, 15
        %s411 = scalar_select %p410, %s409, 15
        %s412 = smul.addr %s411, 4
        %s413 = smul.addr %s412, 4
        %s414 = scalar_lea.vmem %s0, %s413
        %s415 = smul.u32 8, %s26
        %v417 = vld [vmem:[%s1] ss:$2 sm:$0x3]
        %s418 = scalar_lea.vmem %s1, 1
        %v419 = vld [vmem:[%s418] ss:$2 sm:$0x3]
        %v420 = vld [vmem:[%s3] sm:$0x1]
        %v421 = vld [vmem:[%s3 + $0x1] sm:$0x1]
        %v422 = vld [vmem:[%s3 + $0x2] sm:$0x1]
        %v423 = vld [vmem:[%s3 + $0x3] sm:$0x1]
        %v424 = vld [vmem:[%s3 + $0x4] sm:$0x1]
        %v425 = vld [vmem:[%s3 + $0x5] sm:$0x1]
        %v426 = vld [vmem:[%s3 + $0x6] sm:$0x1]
        %v427 = vld [vmem:[%s3 + $0x7] sm:$0x1]
        %v428 = vld [vmem:[%s3 + $0x8] sm:$0x1]
        %v429 = vld [vmem:[%s3 + $0x9] sm:$0x1]
        %v430 = vld [vmem:[%s3 + $0xa] sm:$0x1]
        %v431 = vld [vmem:[%s3 + $0xb] sm:$0x1]
        %v432 = vld [vmem:[%s414] sm:$0xff]
        %v433 = vld [vmem:[%s414 + $0x8] sm:$0xff]
        %v434 = vld [vmem:[%s414 + $0x10] sm:$0xff]
        %v435 = vld [vmem:[%s414 + $0x18] sm:$0xff]
        %v436 = vld [vmem:[%s414 + $0x20] sm:$0xff]
        %v437 = vld [vmem:[%s414 + $0x28] sm:$0xff]
        %v438 = vld [vmem:[%s414 + $0x30] sm:$0xff]
        %v439 = vld [vmem:[%s414 + $0x38] sm:$0xff]
        %v440 = vld [vmem:[%s414 + $0x40] sm:$0xff]
        %v441 = vld [vmem:[%s414 + $0x48] sm:$0xff]
        %v442 = vld [vmem:[%s414 + $0x50] sm:$0xff]
        %v443 = vld [vmem:[%s414 + $0x58] sm:$0xff]
        %v444 = vld [vmem:[%s414 + $0x60] sm:$0xff]
        %v445 = vld [vmem:[%s414 + $0x68] sm:$0xff]
        %v446 = vld [vmem:[%s414 + $0x70] sm:$0xff]
        %v447 = vld [vmem:[%s414 + $0x78] sm:$0xff]
        %v448 = vunpack.c.l.bf16 %v432
        %v449 = vunpack.c.h.bf16 %v432
        %v450 = vunpack.c.l.bf16 %v433
        %v451 = vunpack.c.h.bf16 %v433
        %v452 = vunpack.c.l.bf16 %v434
        %v453 = vunpack.c.h.bf16 %v434
        %v454 = vunpack.c.l.bf16 %v435
        %v455 = vunpack.c.h.bf16 %v435
        %v456 = vunpack.c.l.bf16 %v436
        %v457 = vunpack.c.h.bf16 %v436
        %v458 = vunpack.c.l.bf16 %v437
        %v459 = vunpack.c.h.bf16 %v437
        %v460 = vunpack.c.l.bf16 %v438
        %v461 = vunpack.c.h.bf16 %v438
        %v462 = vunpack.c.l.bf16 %v439
        %v463 = vunpack.c.h.bf16 %v439
        %v464 = vunpack.c.l.bf16 %v440
        %v465 = vunpack.c.h.bf16 %v440
        %v466 = vunpack.c.l.bf16 %v441
        %v467 = vunpack.c.h.bf16 %v441
        %v468 = vunpack.c.l.bf16 %v442
        %v469 = vunpack.c.h.bf16 %v442
        %v470 = vunpack.c.l.bf16 %v443
        %v471 = vunpack.c.h.bf16 %v443
        %v472 = vunpack.c.l.bf16 %v444
        %v473 = vunpack.c.h.bf16 %v444
        %v474 = vunpack.c.l.bf16 %v445
        %v475 = vunpack.c.h.bf16 %v445
        %v476 = vunpack.c.l.bf16 %v446
        %v477 = vunpack.c.h.bf16 %v446
        %v478 = vunpack.c.l.bf16 %v447
        %v479 = vunpack.c.h.bf16 %v447
        %v480 = vadd.f32 %v448, %v449
        %481 = vadd.xlane.f32.xlu0 %v480
        %v482 = vpop.xlane.xlu0 %481
        %v483 = vadd.f32 %v450, %v451
        %484 = vadd.xlane.f32.xlu0 %v483
        %v485 = vpop.xlane.xlu0 %484
        %v486 = vadd.f32 %v452, %v453
        %487 = vadd.xlane.f32.xlu0 %v486
        %v488 = vpop.xlane.xlu0 %487
        %v489 = vadd.f32 %v454, %v455
        %490 = vadd.xlane.f32.xlu0 %v489
        %v491 = vpop.xlane.xlu0 %490
        %v492 = vadd.f32 %v456, %v457
        %493 = vadd.xlane.f32.xlu0 %v492
        %v494 = vpop.xlane.xlu0 %493
        %v495 = vadd.f32 %v458, %v459
        %496 = vadd.xlane.f32.xlu0 %v495
        %v497 = vpop.xlane.xlu0 %496
        %v498 = vadd.f32 %v460, %v461
        %499 = vadd.xlane.f32.xlu0 %v498
        %v500 = vpop.xlane.xlu0 %499
        %v501 = vadd.f32 %v462, %v463
        %502 = vadd.xlane.f32.xlu0 %v501
        %v503 = vpop.xlane.xlu0 %502
        %v504 = vadd.f32 %v464, %v465
        %505 = vadd.xlane.f32.xlu0 %v504
        %v506 = vpop.xlane.xlu0 %505
        %v507 = vadd.f32 %v466, %v467
        %508 = vadd.xlane.f32.xlu0 %v507
        %v509 = vpop.xlane.xlu0 %508
        %v510 = vadd.f32 %v468, %v469
        %511 = vadd.xlane.f32.xlu0 %v510
        %v512 = vpop.xlane.xlu0 %511
        %v513 = vadd.f32 %v470, %v471
        %514 = vadd.xlane.f32.xlu0 %v513
        %v515 = vpop.xlane.xlu0 %514
        %v516 = vadd.f32 %v472, %v473
        %517 = vadd.xlane.f32.xlu0 %v516
        %v518 = vpop.xlane.xlu0 %517
        %v519 = vadd.f32 %v474, %v475
        %520 = vadd.xlane.f32.xlu0 %v519
        %v521 = vpop.xlane.xlu0 %520
        %v522 = vadd.f32 %v476, %v477
        %523 = vadd.xlane.f32.xlu0 %v522
        %v524 = vpop.xlane.xlu0 %523
        %v525 = vadd.f32 %v478, %v479
        %526 = vadd.xlane.f32.xlu0 %v525
        %v527 = vpop.xlane.xlu0 %526
        %v528 = vrcp.pop 256.0
        %v529 = vmul.f32 %v482, %v528
        %v530 = vmul.f32 %v485, %v528
        %v531 = vmul.f32 %v488, %v528
        %v532 = vmul.f32 %v491, %v528
        %v533 = vmul.f32 %v494, %v528
        %v534 = vmul.f32 %v497, %v528
        %v535 = vmul.f32 %v500, %v528
        %v536 = vmul.f32 %v503, %v528
        %v537 = vmul.f32 %v506, %v528
        %v538 = vmul.f32 %v509, %v528
        %v539 = vmul.f32 %v512, %v528
        %v540 = vmul.f32 %v515, %v528
        %v541 = vmul.f32 %v518, %v528
        %v542 = vmul.f32 %v521, %v528
        %v543 = vmul.f32 %v524, %v528
        %v544 = vmul.f32 %v527, %v528
        %v545 = vsub.f32 %v448, %v529
        %v546 = vsub.f32 %v449, %v529
        %v547 = vsub.f32 %v450, %v530
        %v548 = vsub.f32 %v451, %v530
        %v549 = vsub.f32 %v452, %v531
        %v550 = vsub.f32 %v453, %v531
        %v551 = vsub.f32 %v454, %v532
        %v552 = vsub.f32 %v455, %v532
        %v553 = vsub.f32 %v456, %v533
        %v554 = vsub.f32 %v457, %v533
        %v555 = vsub.f32 %v458, %v534
        %v556 = vsub.f32 %v459, %v534
        %v557 = vsub.f32 %v460, %v535
        %v558 = vsub.f32 %v461, %v535
        %v559 = vsub.f32 %v462, %v536
        %v560 = vsub.f32 %v463, %v536
        %v561 = vsub.f32 %v464, %v537
        %v562 = vsub.f32 %v465, %v537
        %v563 = vsub.f32 %v466, %v538
        %v564 = vsub.f32 %v467, %v538
        %v565 = vsub.f32 %v468, %v539
        %v566 = vsub.f32 %v469, %v539
        %v567 = vsub.f32 %v470, %v540
        %v568 = vsub.f32 %v471, %v540
        %v569 = vsub.f32 %v472, %v541
        %v570 = vsub.f32 %v473, %v541
        %v571 = vsub.f32 %v474, %v542
        %v572 = vsub.f32 %v475, %v542
        %v573 = vsub.f32 %v476, %v543
        %v574 = vsub.f32 %v477, %v543
        %v575 = vsub.f32 %v478, %v544
        %v576 = vsub.f32 %v479, %v544
        %v577 = vmul.f32 %v545, %v545
        %v578 = vmul.f32 %v546, %v546
        %v579 = vmul.f32 %v547, %v547
        %v580 = vmul.f32 %v548, %v548
        %v581 = vmul.f32 %v549, %v549
        %v582 = vmul.f32 %v550, %v550
        %v583 = vmul.f32 %v551, %v551
        %v584 = vmul.f32 %v552, %v552
        %v585 = vmul.f32 %v553, %v553
        %v586 = vmul.f32 %v554, %v554
        %v587 = vmul.f32 %v555, %v555
        %v588 = vmul.f32 %v556, %v556
        %v589 = vmul.f32 %v557, %v557
        %v590 = vmul.f32 %v558, %v558
        %v591 = vmul.f32 %v559, %v559
        %v592 = vmul.f32 %v560, %v560
        %v593 = vmul.f32 %v561, %v561
        %v594 = vmul.f32 %v562, %v562
        %v595 = vmul.f32 %v563, %v563
        %v596 = vmul.f32 %v564, %v564
        %v597 = vmul.f32 %v565, %v565
        %v598 = vmul.f32 %v566, %v566
        %v599 = vmul.f32 %v567, %v567
        %v600 = vmul.f32 %v568, %v568
        %v601 = vmul.f32 %v569, %v569
        %v602 = vmul.f32 %v570, %v570
        %v603 = vmul.f32 %v571, %v571
        %v604 = vmul.f32 %v572, %v572
        %v605 = vmul.f32 %v573, %v573
        %v606 = vmul.f32 %v574, %v574
        %v607 = vmul.f32 %v575, %v575
        %v608 = vmul.f32 %v576, %v576
        %v609 = vadd.f32 %v577, %v578
        %610 = vadd.xlane.f32.xlu0 %v609
        %v611 = vpop.xlane.xlu0 %610
        %v612 = vadd.f32 %v579, %v580
        %613 = vadd.xlane.f32.xlu0 %v612
        %v614 = vpop.xlane.xlu0 %613
        %v615 = vadd.f32 %v581, %v582
        %616 = vadd.xlane.f32.xlu0 %v615
        %v617 = vpop.xlane.xlu0 %616
        %v618 = vadd.f32 %v583, %v584
        %619 = vadd.xlane.f32.xlu0 %v618
        %v620 = vpop.xlane.xlu0 %619
        %v621 = vadd.f32 %v585, %v586
        %622 = vadd.xlane.f32.xlu0 %v621
        %v623 = vpop.xlane.xlu0 %622
        %v624 = vadd.f32 %v587, %v588
        %625 = vadd.xlane.f32.xlu0 %v624
        %v626 = vpop.xlane.xlu0 %625
        %v627 = vadd.f32 %v589, %v590
        %628 = vadd.xlane.f32.xlu0 %v627
        %v629 = vpop.xlane.xlu0 %628
        %v630 = vadd.f32 %v591, %v592
        %631 = vadd.xlane.f32.xlu0 %v630
        %v632 = vpop.xlane.xlu0 %631
        %v633 = vadd.f32 %v593, %v594
        %634 = vadd.xlane.f32.xlu0 %v633
        %v635 = vpop.xlane.xlu0 %634
        %v636 = vadd.f32 %v595, %v596
        %637 = vadd.xlane.f32.xlu0 %v636
        %v638 = vpop.xlane.xlu0 %637
        %v639 = vadd.f32 %v597, %v598
        %640 = vadd.xlane.f32.xlu0 %v639
        %v641 = vpop.xlane.xlu0 %640
        %v642 = vadd.f32 %v599, %v600
        %643 = vadd.xlane.f32.xlu0 %v642
        %v644 = vpop.xlane.xlu0 %643
        %v645 = vadd.f32 %v601, %v602
        %646 = vadd.xlane.f32.xlu0 %v645
        %v647 = vpop.xlane.xlu0 %646
        %v648 = vadd.f32 %v603, %v604
        %649 = vadd.xlane.f32.xlu0 %v648
        %v650 = vpop.xlane.xlu0 %649
        %v651 = vadd.f32 %v605, %v606
        %652 = vadd.xlane.f32.xlu0 %v651
        %v653 = vpop.xlane.xlu0 %652
        %v654 = vadd.f32 %v607, %v608
        %655 = vadd.xlane.f32.xlu0 %v654
        %v656 = vpop.xlane.xlu0 %655
        %v657 = vmul.f32 %v611, %v528
        %v658 = vmul.f32 %v614, %v528
        %v659 = vmul.f32 %v617, %v528
        %v660 = vmul.f32 %v620, %v528
        %v661 = vmul.f32 %v623, %v528
        %v662 = vmul.f32 %v626, %v528
        %v663 = vmul.f32 %v629, %v528
        %v664 = vmul.f32 %v632, %v528
        %v665 = vmul.f32 %v635, %v528
        %v666 = vmul.f32 %v638, %v528
        %v667 = vmul.f32 %v641, %v528
        %v668 = vmul.f32 %v644, %v528
        %v669 = vmul.f32 %v647, %v528
        %v670 = vmul.f32 %v650, %v528
        %v671 = vmul.f32 %v653, %v528
        %v672 = vmul.f32 %v656, %v528
        %v673 = vadd.f32 %v657, 1e-05
        %v674 = vadd.f32 %v658, 1e-05
        %v675 = vadd.f32 %v659, 1e-05
        %v676 = vadd.f32 %v660, 1e-05
        %v677 = vadd.f32 %v661, 1e-05
        %v678 = vadd.f32 %v662, 1e-05
        %v679 = vadd.f32 %v663, 1e-05
        %v680 = vadd.f32 %v664, 1e-05
        %v681 = vadd.f32 %v665, 1e-05
        %v682 = vadd.f32 %v666, 1e-05
        %v683 = vadd.f32 %v667, 1e-05
        %v684 = vadd.f32 %v668, 1e-05
        %v685 = vadd.f32 %v669, 1e-05
        %v686 = vadd.f32 %v670, 1e-05
        %v687 = vadd.f32 %v671, 1e-05
        %v688 = vadd.f32 %v672, 1e-05
        %v689 = vrsqrt.pop %v673
        %v690 = vrsqrt.pop %v674
        %v691 = vrsqrt.pop %v675
        %v692 = vrsqrt.pop %v676
        %v693 = vrsqrt.pop %v677
        %v694 = vrsqrt.pop %v678
        %v695 = vrsqrt.pop %v679
        %v696 = vrsqrt.pop %v680
        %v697 = vrsqrt.pop %v681
        %v698 = vrsqrt.pop %v682
        %v699 = vrsqrt.pop %v683
        %v700 = vrsqrt.pop %v684
        %v701 = vrsqrt.pop %v685
        %v702 = vrsqrt.pop %v686
        %v703 = vrsqrt.pop %v687
        %v704 = vrsqrt.pop %v688
        %v705 = vmul.f32 %v545, %v689
        %v706 = vmul.f32 %v546, %v689
        %v707 = vmul.f32 %v547, %v690
        %v708 = vmul.f32 %v548, %v690
        %v709 = vmul.f32 %v549, %v691
        %v710 = vmul.f32 %v550, %v691
        %v711 = vmul.f32 %v551, %v692
        %v712 = vmul.f32 %v552, %v692
        %v713 = vmul.f32 %v553, %v693
        %v714 = vmul.f32 %v554, %v693
        %v715 = vmul.f32 %v555, %v694
        %v716 = vmul.f32 %v556, %v694
        %v717 = vmul.f32 %v557, %v695
        %v718 = vmul.f32 %v558, %v695
        %v719 = vmul.f32 %v559, %v696
        %v720 = vmul.f32 %v560, %v696
        %v721 = vmul.f32 %v561, %v697
        %v722 = vmul.f32 %v562, %v697
        %v723 = vmul.f32 %v563, %v698
        %v724 = vmul.f32 %v564, %v698
        %v725 = vmul.f32 %v565, %v699
        %v726 = vmul.f32 %v566, %v699
        %v727 = vmul.f32 %v567, %v700
        %v728 = vmul.f32 %v568, %v700
        %v729 = vmul.f32 %v569, %v701
        %v730 = vmul.f32 %v570, %v701
        %v731 = vmul.f32 %v571, %v702
        %v732 = vmul.f32 %v572, %v702
        %v733 = vmul.f32 %v573, %v703
        %v734 = vmul.f32 %v574, %v703
        %v735 = vmul.f32 %v575, %v704
        %v736 = vmul.f32 %v576, %v704
        %v738 = vlaneseq
        %v739 = vshrl.u32 %v738, 7
        %v740 = vsub.s32 0, %v739
        %v741 = vrot.slane %v417, %v740
        %v742 = vlaneseq
        %v743 = vshrl.u32 %v742, 7
        %v744 = vsub.s32 1, %v743
        %v745 = vrot.slane %v417, %v744
        %v748 = vmul.f32 %v705, %v741
        %v749 = vmul.f32 %v706, %v745
        %v750 = vmul.f32 %v707, %v741
        %v751 = vmul.f32 %v708, %v745
        %v752 = vmul.f32 %v709, %v741
        %v753 = vmul.f32 %v710, %v745
        %v754 = vmul.f32 %v711, %v741
        %v755 = vmul.f32 %v712, %v745
        %v756 = vmul.f32 %v713, %v741
        %v757 = vmul.f32 %v714, %v745
        %v758 = vmul.f32 %v715, %v741
        %v759 = vmul.f32 %v716, %v745
        %v760 = vmul.f32 %v717, %v741
        %v761 = vmul.f32 %v718, %v745
        %v762 = vmul.f32 %v719, %v741
        %v763 = vmul.f32 %v720, %v745
        %v764 = vmul.f32 %v721, %v741
        %v765 = vmul.f32 %v722, %v745
        %v766 = vmul.f32 %v723, %v741
        %v767 = vmul.f32 %v724, %v745
        %v768 = vmul.f32 %v725, %v741
        %v769 = vmul.f32 %v726, %v745
        %v770 = vmul.f32 %v727, %v741
        %v771 = vmul.f32 %v728, %v745
        %v772 = vmul.f32 %v729, %v741
        %v773 = vmul.f32 %v730, %v745
        %v774 = vmul.f32 %v731, %v741
        %v775 = vmul.f32 %v732, %v745
        %v776 = vmul.f32 %v733, %v741
        %v777 = vmul.f32 %v734, %v745
        %v778 = vmul.f32 %v735, %v741
        %v779 = vmul.f32 %v736, %v745
        %v781 = vlaneseq
        %v782 = vshrl.u32 %v781, 7
        %v783 = vsub.s32 0, %v782
        %v784 = vrot.slane %v419, %v783
        %v785 = vlaneseq
        %v786 = vshrl.u32 %v785, 7
        %v787 = vsub.s32 1, %v786
        %v788 = vrot.slane %v419, %v787
        %v791 = vadd.f32 %v748, %v784
        %v792 = vadd.f32 %v749, %v788
        %v793 = vadd.f32 %v750, %v784
        %v794 = vadd.f32 %v751, %v788
        %v795 = vadd.f32 %v752, %v784
        %v796 = vadd.f32 %v753, %v788
        %v797 = vadd.f32 %v754, %v784
        %v798 = vadd.f32 %v755, %v788
        %v799 = vadd.f32 %v756, %v784
        %v800 = vadd.f32 %v757, %v788
        %v801 = vadd.f32 %v758, %v784
        %v802 = vadd.f32 %v759, %v788
        %v803 = vadd.f32 %v760, %v784
        %v804 = vadd.f32 %v761, %v788
        %v805 = vadd.f32 %v762, %v784
        %v806 = vadd.f32 %v763, %v788
        %v807 = vadd.f32 %v764, %v784
        %v808 = vadd.f32 %v765, %v788
        %v809 = vadd.f32 %v766, %v784
        %v810 = vadd.f32 %v767, %v788
        %v811 = vadd.f32 %v768, %v784
        %v812 = vadd.f32 %v769, %v788
        %v813 = vadd.f32 %v770, %v784
        %v814 = vadd.f32 %v771, %v788
        %v815 = vadd.f32 %v772, %v784
        %v816 = vadd.f32 %v773, %v788
        %v817 = vadd.f32 %v774, %v784
        %v818 = vadd.f32 %v775, %v788
        %v819 = vadd.f32 %v776, %v784
        %v820 = vadd.f32 %v777, %v788
        %v821 = vadd.f32 %v778, %v784
        %v822 = vadd.f32 %v779, %v788
        %v823 = vpack.c.bf16 %v793, %v791
        %v824 = vpack.c.bf16 %v794, %v792
        %v825 = vpack.c.bf16 %v797, %v795
        %v826 = vpack.c.bf16 %v798, %v796
        %v827 = vpack.c.bf16 %v801, %v799
        %v828 = vpack.c.bf16 %v802, %v800
        %v829 = vpack.c.bf16 %v805, %v803
        %v830 = vpack.c.bf16 %v806, %v804
        %v831 = vpack.c.bf16 %v809, %v807
        %v832 = vpack.c.bf16 %v810, %v808
        %v833 = vpack.c.bf16 %v813, %v811
        %v834 = vpack.c.bf16 %v814, %v812
        %v835 = vpack.c.bf16 %v817, %v815
        %v836 = vpack.c.bf16 %v818, %v816
        %v837 = vpack.c.bf16 %v821, %v819
        %v838 = vpack.c.bf16 %v822, %v820
        %v839 = vld [vmem:[%s2] sm:$0xf]
        %v840 = vld [vmem:[%s2 + $0x4] sm:$0xf]
        %v841 = vld [vmem:[%s2 + $0x8] sm:$0xf]
        %v842 = vld [vmem:[%s2 + $0xc] sm:$0xf]
        %v843 = vld [vmem:[%s2 + $0x10] sm:$0xf]
        %v844 = vld [vmem:[%s2 + $0x14] sm:$0xf]
        %v845 = vld [vmem:[%s2 + $0x18] sm:$0xf]
        %v846 = vld [vmem:[%s2 + $0x1c] sm:$0xf]
        %v847 = vld [vmem:[%s2 + $0x20] sm:$0xf]
        %v848 = vld [vmem:[%s2 + $0x24] sm:$0xf]
        %v849 = vld [vmem:[%s2 + $0x28] sm:$0xf]
        %v850 = vld [vmem:[%s2 + $0x2c] sm:$0xf]
        %v851 = vld [vmem:[%s2 + $0x30] sm:$0xf]
        %v852 = vld [vmem:[%s2 + $0x34] sm:$0xf]
        %v853 = vld [vmem:[%s2 + $0x38] sm:$0xf]
        %v854 = vld [vmem:[%s2 + $0x3c] sm:$0xf]
        %v855 = vld [vmem:[%s2 + $0x40] sm:$0xf]
        %v856 = vld [vmem:[%s2 + $0x44] sm:$0xf]
        %v857 = vld [vmem:[%s2 + $0x48] sm:$0xf]
        %v858 = vld [vmem:[%s2 + $0x4c] sm:$0xf]
        %v859 = vld [vmem:[%s2 + $0x50] sm:$0xf]
        %v860 = vld [vmem:[%s2 + $0x54] sm:$0xf]
        %v861 = vld [vmem:[%s2 + $0x58] sm:$0xf]
        %v862 = vld [vmem:[%s2 + $0x5c] sm:$0xf]
        %v863 = vld [vmem:[%s2 + $0x60] sm:$0xf]
        %v864 = vld [vmem:[%s2 + $0x64] sm:$0xf]
        %v865 = vld [vmem:[%s2 + $0x68] sm:$0xf]
        %v866 = vld [vmem:[%s2 + $0x6c] sm:$0xf]
        %v867 = vld [vmem:[%s2 + $0x70] sm:$0xf]
        %v868 = vld [vmem:[%s2 + $0x74] sm:$0xf]
        %v869 = vld [vmem:[%s2 + $0x78] sm:$0xf]
        %v870 = vld [vmem:[%s2 + $0x7c] sm:$0xf]
        %v871 = vlaneseq
        %v872 = vshrl.u32 %v871, 7
        %v873 = vsub.s32 0, %v872
        %v874 = vrot.slane %v428, %v873
        %v907 = vunpack.c.l.b16 %v839
        %v908 = vunpack.c.l.b16 %v840
        %v909 = vunpack.c.l.b16 %v841
        %v910 = vunpack.c.l.b16 %v842
        %v911 = vunpack.c.l.b16 %v843
        %v912 = vunpack.c.l.b16 %v844
        %v913 = vunpack.c.l.b16 %v845
        %v914 = vunpack.c.l.b16 %v846
        %v915 = vunpack.c.l.b16 %v847
        %v916 = vunpack.c.l.b16 %v848
        %v917 = vunpack.c.l.b16 %v849
        %v918 = vunpack.c.l.b16 %v850
        %v919 = vunpack.c.l.b16 %v851
        %v920 = vunpack.c.l.b16 %v852
        %v921 = vunpack.c.l.b16 %v853
        %v922 = vunpack.c.l.b16 %v854
        %v923 = vunpack.c.l.b16 %v855
        %v924 = vunpack.c.l.b16 %v856
        %v925 = vunpack.c.l.b16 %v857
        %v926 = vunpack.c.l.b16 %v858
        %v927 = vunpack.c.l.b16 %v859
        %v928 = vunpack.c.l.b16 %v860
        %v929 = vunpack.c.l.b16 %v861
        %v930 = vunpack.c.l.b16 %v862
        %v931 = vunpack.c.l.b16 %v863
        %v932 = vunpack.c.l.b16 %v864
        %v933 = vunpack.c.l.b16 %v865
        %v934 = vunpack.c.l.b16 %v866
        %v935 = vunpack.c.l.b16 %v867
        %v936 = vunpack.c.l.b16 %v868
        %v937 = vunpack.c.l.b16 %v869
        %v938 = vunpack.c.l.b16 %v870
        %v939 = vpack.c.b16 %v908, %v907
        %v940 = vpack.c.b16 %v910, %v909
        %v941 = vpack.c.b16 %v912, %v911
        %v942 = vpack.c.b16 %v914, %v913
        %v943 = vpack.c.b16 %v916, %v915
        %v944 = vpack.c.b16 %v918, %v917
        %v945 = vpack.c.b16 %v920, %v919
        %v946 = vpack.c.b16 %v922, %v921
        %v947 = vpack.c.b16 %v924, %v923
        %v948 = vpack.c.b16 %v926, %v925
        %v949 = vpack.c.b16 %v928, %v927
        %v950 = vpack.c.b16 %v930, %v929
        %v951 = vpack.c.b16 %v932, %v931
        %v952 = vpack.c.b16 %v934, %v933
        %v953 = vpack.c.b16 %v936, %v935
        %v954 = vpack.c.b16 %v938, %v937
        %971 = vmatprep.subr.bf16.mxu0 0
        %972 = vmatpush1.bf16.msra.mxu0 %v939
        %973 = vmatprep.subr.bf16.mxu0 0
        %974 = vmatpush1.bf16.msra.mxu0 %v940
        %975 = vmatprep.subr.bf16.mxu0 0
        %976 = vmatpush1.bf16.msra.mxu0 %v941
        %977 = vmatprep.subr.bf16.mxu0 0
        %978 = vmatpush1.bf16.msra.mxu0 %v942
        %979 = vmatprep.subr.bf16.mxu0 0
        %980 = vmatpush1.bf16.msra.mxu0 %v943
        %981 = vmatprep.subr.bf16.mxu0 0
        %982 = vmatpush1.bf16.msra.mxu0 %v944
        %983 = vmatprep.subr.bf16.mxu0 0
        %984 = vmatpush1.bf16.msra.mxu0 %v945
        %985 = vmatprep.subr.bf16.mxu0 0
        %986 = vmatpush1.bf16.msra.mxu0 %v946
        %987 = vmatprep.subr.bf16.mxu0 0
        %988 = vmatpush1.bf16.msra.mxu0 %v947
        %989 = vmatprep.subr.bf16.mxu0 0
        %990 = vmatpush1.bf16.msra.mxu0 %v948
        %991 = vmatprep.subr.bf16.mxu0 0
        %992 = vmatpush1.bf16.msra.mxu0 %v949
        %993 = vmatprep.subr.bf16.mxu0 0
        %994 = vmatpush1.bf16.msra.mxu0 %v950
        %995 = vmatprep.subr.bf16.mxu0 0
        %996 = vmatpush1.bf16.msra.mxu0 %v951
        %997 = vmatprep.subr.bf16.mxu0 0
        %998 = vmatpush1.bf16.msra.mxu0 %v952
        %999 = vmatprep.subr.bf16.mxu0 0
        %1000 = vmatpush1.bf16.msra.mxu0 %v953
        %1001 = vmatprep.subr.bf16.mxu0 0
        %1002 = vmatpush1.bf16.msra.mxu0 %v954
        %1003 = vmatprep.mubr.bf16.mxu0 %v824
        %1004 = vmatmul.mubr.bf16.gmra.mrb[0].mxu0 %v823
        %v1005 = vpop.f32.mrb[0].mxu0
        %v1006 = vadd.f32 %v874, %v1005
        %v1007 = vpop.f32.mrb[0].mxu0
        %v1008 = vpop.f32.mrb[0].mxu0
        %v1009 = vadd.f32 %v874, %v1008
        %v1010 = vpop.f32.mrb[0].mxu0
        %1011 = vmatprep.mubr.bf16.mxu0 %v826
        %1012 = vmatmul.mubr.bf16.gmra.mrb[0].mxu0 %v825
        %v1013 = vpop.f32.mrb[0].mxu0
        %v1014 = vadd.f32 %v874, %v1013
        %v1015 = vpop.f32.mrb[0].mxu0
        %v1016 = vpop.f32.mrb[0].mxu0
        %v1017 = vadd.f32 %v874, %v1016
        %v1018 = vpop.f32.mrb[0].mxu0
        %1019 = vmatprep.mubr.bf16.mxu0 %v828
        %1020 = vmatmul.mubr.bf16.gmra.mrb[0].mxu0 %v827
        %v1021 = vpop.f32.mrb[0].mxu0
        %v1022 = vadd.f32 %v874, %v1021
        %v1023 = vpop.f32.mrb[0].mxu0
        %v1024 = vpop.f32.mrb[0].mxu0
        %v1025 = vadd.f32 %v874, %v1024
        %v1026 = vpop.f32.mrb[0].mxu0
        %1027 = vmatprep.mubr.bf16.mxu0 %v830
        %1028 = vmatmul.mubr.bf16.gmra.mrb[0].mxu0 %v829
        %v1029 = vpop.f32.mrb[0].mxu0
        %v1030 = vadd.f32 %v874, %v1029
        %v1031 = vpop.f32.mrb[0].mxu0
        %v1032 = vpop.f32.mrb[0].mxu0
        %v1033 = vadd.f32 %v874, %v1032
        %v1034 = vpop.f32.mrb[0].mxu0
        %1035 = vmatprep.mubr.bf16.mxu0 %v832
        %1036 = vmatmul.mubr.bf16.gmra.mrb[0].mxu0 %v831
        %v1037 = vpop.f32.mrb[0].mxu0
        %v1038 = vadd.f32 %v874, %v1037
        %v1039 = vpop.f32.mrb[0].mxu0
        %v1040 = vpop.f32.mrb[0].mxu0
        %v1041 = vadd.f32 %v874, %v1040
        %v1042 = vpop.f32.mrb[0].mxu0
        %1043 = vmatprep.mubr.bf16.mxu0 %v834
        %1044 = vmatmul.mubr.bf16.gmra.mrb[0].mxu0 %v833
        %v1045 = vpop.f32.mrb[0].mxu0
        %v1046 = vadd.f32 %v874, %v1045
        %v1047 = vpop.f32.mrb[0].mxu0
        %v1048 = vpop.f32.mrb[0].mxu0
        %v1049 = vadd.f32 %v874, %v1048
        %v1050 = vpop.f32.mrb[0].mxu0
        %1051 = vmatprep.mubr.bf16.mxu0 %v836
        %1052 = vmatmul.mubr.bf16.gmra.mrb[0].mxu0 %v835
        %v1053 = vpop.f32.mrb[0].mxu0
        %v1054 = vadd.f32 %v874, %v1053
        %v1055 = vpop.f32.mrb[0].mxu0
        %v1056 = vpop.f32.mrb[0].mxu0
        %v1057 = vadd.f32 %v874, %v1056
        %v1058 = vpop.f32.mrb[0].mxu0
        %1059 = vmatprep.mubr.bf16.mxu0 %v838
        %1060 = vmatmul.mubr.bf16.gmra.mrb[0].mxu0 %v837
        %v1061 = vpop.f32.mrb[0].mxu0
        %v1062 = vadd.f32 %v874, %v1061
        %v1063 = vpop.f32.mrb[0].mxu0
        %v1064 = vpop.f32.mrb[0].mxu0
        %v1065 = vadd.f32 %v874, %v1064
        %v1066 = vpop.f32.mrb[0].mxu0
        %1067 = vdwg.mxu0
        %vm1068 = vcmask 523264
        %v1069 = vsel %vm1068, %v1006, 0.0
        %1070 = vadd.xlane.f32.xlu0 %v1069
        %v1071 = vpop.xlane.xlu0 %1070
        %v1072 = vsel %vm1068, %v1009, 0.0
        %1073 = vadd.xlane.f32.xlu0 %v1072
        %v1074 = vpop.xlane.xlu0 %1073
        %v1075 = vsel %vm1068, %v1014, 0.0
        %1076 = vadd.xlane.f32.xlu0 %v1075
        %v1077 = vpop.xlane.xlu0 %1076
        %v1078 = vsel %vm1068, %v1017, 0.0
        %1079 = vadd.xlane.f32.xlu0 %v1078
        %v1080 = vpop.xlane.xlu0 %1079
        %v1081 = vsel %vm1068, %v1022, 0.0
        %1082 = vadd.xlane.f32.xlu0 %v1081
        %v1083 = vpop.xlane.xlu0 %1082
        %v1084 = vsel %vm1068, %v1025, 0.0
        %1085 = vadd.xlane.f32.xlu0 %v1084
        %v1086 = vpop.xlane.xlu0 %1085
        %v1087 = vsel %vm1068, %v1030, 0.0
        %1088 = vadd.xlane.f32.xlu0 %v1087
        %v1089 = vpop.xlane.xlu0 %1088
        %v1090 = vsel %vm1068, %v1033, 0.0
        %1091 = vadd.xlane.f32.xlu0 %v1090
        %v1092 = vpop.xlane.xlu0 %1091
        %v1093 = vsel %vm1068, %v1038, 0.0
        %1094 = vadd.xlane.f32.xlu0 %v1093
        %v1095 = vpop.xlane.xlu0 %1094
        %v1096 = vsel %vm1068, %v1041, 0.0
        %1097 = vadd.xlane.f32.xlu0 %v1096
        %v1098 = vpop.xlane.xlu0 %1097
        %v1099 = vsel %vm1068, %v1046, 0.0
        %1100 = vadd.xlane.f32.xlu0 %v1099
        %v1101 = vpop.xlane.xlu0 %1100
        %v1102 = vsel %vm1068, %v1049, 0.0
        %1103 = vadd.xlane.f32.xlu0 %v1102
        %v1104 = vpop.xlane.xlu0 %1103
        %v1105 = vsel %vm1068, %v1054, 0.0
        %1106 = vadd.xlane.f32.xlu0 %v1105
        %v1107 = vpop.xlane.xlu0 %1106
        %v1108 = vsel %vm1068, %v1057, 0.0
        %1109 = vadd.xlane.f32.xlu0 %v1108
        %v1110 = vpop.xlane.xlu0 %1109
        %v1111 = vsel %vm1068, %v1062, 0.0
        %1112 = vadd.xlane.f32.xlu0 %v1111
        %v1113 = vpop.xlane.xlu0 %1112
        %v1114 = vsel %vm1068, %v1065, 0.0
        %1115 = vadd.xlane.f32.xlu0 %v1114
        %v1116 = vpop.xlane.xlu0 %1115
        %v1117 = vrcp.pop 64.0
        %v1118 = vmul.f32 %v1071, %v1117
        %v1119 = vmul.f32 %v1074, %v1117
        %v1120 = vmul.f32 %v1077, %v1117
        %v1121 = vmul.f32 %v1080, %v1117
        %v1122 = vmul.f32 %v1083, %v1117
        %v1123 = vmul.f32 %v1086, %v1117
        %v1124 = vmul.f32 %v1089, %v1117
        %v1125 = vmul.f32 %v1092, %v1117
        %v1126 = vmul.f32 %v1095, %v1117
        %v1127 = vmul.f32 %v1098, %v1117
        %v1128 = vmul.f32 %v1101, %v1117
        %v1129 = vmul.f32 %v1104, %v1117
        %v1130 = vmul.f32 %v1107, %v1117
        %v1131 = vmul.f32 %v1110, %v1117
        %v1132 = vmul.f32 %v1113, %v1117
        %v1133 = vmul.f32 %v1116, %v1117
        %v1134 = vsub.f32 %v1006, %v1118
        %v1135 = vsub.f32 %v1009, %v1119
        %v1136 = vsub.f32 %v1014, %v1120
        %v1137 = vsub.f32 %v1017, %v1121
        %v1138 = vsub.f32 %v1022, %v1122
        %v1139 = vsub.f32 %v1025, %v1123
        %v1140 = vsub.f32 %v1030, %v1124
        %v1141 = vsub.f32 %v1033, %v1125
        %v1142 = vsub.f32 %v1038, %v1126
        %v1143 = vsub.f32 %v1041, %v1127
        %v1144 = vsub.f32 %v1046, %v1128
        %v1145 = vsub.f32 %v1049, %v1129
        %v1146 = vsub.f32 %v1054, %v1130
        %v1147 = vsub.f32 %v1057, %v1131
        %v1148 = vsub.f32 %v1062, %v1132
        %v1149 = vsub.f32 %v1065, %v1133
        %v1150 = vmul.f32 %v1134, %v1134
        %v1151 = vmul.f32 %v1135, %v1135
        %v1152 = vmul.f32 %v1136, %v1136
        %v1153 = vmul.f32 %v1137, %v1137
        %v1154 = vmul.f32 %v1138, %v1138
        %v1155 = vmul.f32 %v1139, %v1139
        %v1156 = vmul.f32 %v1140, %v1140
        %v1157 = vmul.f32 %v1141, %v1141
        %v1158 = vmul.f32 %v1142, %v1142
        %v1159 = vmul.f32 %v1143, %v1143
        %v1160 = vmul.f32 %v1144, %v1144
        %v1161 = vmul.f32 %v1145, %v1145
        %v1162 = vmul.f32 %v1146, %v1146
        %v1163 = vmul.f32 %v1147, %v1147
        %v1164 = vmul.f32 %v1148, %v1148
        %v1165 = vmul.f32 %v1149, %v1149
        %v1166 = vsel %vm1068, %v1150, 0.0
        %1167 = vadd.xlane.f32.xlu0 %v1166
        %v1168 = vpop.xlane.xlu0 %1167
        %v1169 = vsel %vm1068, %v1151, 0.0
        %1170 = vadd.xlane.f32.xlu0 %v1169
        %v1171 = vpop.xlane.xlu0 %1170
        %v1172 = vsel %vm1068, %v1152, 0.0
        %1173 = vadd.xlane.f32.xlu0 %v1172
        %v1174 = vpop.xlane.xlu0 %1173
        %v1175 = vsel %vm1068, %v1153, 0.0
        %1176 = vadd.xlane.f32.xlu0 %v1175
        %v1177 = vpop.xlane.xlu0 %1176
        %v1178 = vsel %vm1068, %v1154, 0.0
        %1179 = vadd.xlane.f32.xlu0 %v1178
        %v1180 = vpop.xlane.xlu0 %1179
        %v1181 = vsel %vm1068, %v1155, 0.0
        %1182 = vadd.xlane.f32.xlu0 %v1181
        %v1183 = vpop.xlane.xlu0 %1182
        %v1184 = vsel %vm1068, %v1156, 0.0
        %1185 = vadd.xlane.f32.xlu0 %v1184
        %v1186 = vpop.xlane.xlu0 %1185
        %v1187 = vsel %vm1068, %v1157, 0.0
        %1188 = vadd.xlane.f32.xlu0 %v1187
        %v1189 = vpop.xlane.xlu0 %1188
        %v1190 = vsel %vm1068, %v1158, 0.0
        %1191 = vadd.xlane.f32.xlu0 %v1190
        %v1192 = vpop.xlane.xlu0 %1191
        %v1193 = vsel %vm1068, %v1159, 0.0
        %1194 = vadd.xlane.f32.xlu0 %v1193
        %v1195 = vpop.xlane.xlu0 %1194
        %v1196 = vsel %vm1068, %v1160, 0.0
        %1197 = vadd.xlane.f32.xlu0 %v1196
        %v1198 = vpop.xlane.xlu0 %1197
        %v1199 = vsel %vm1068, %v1161, 0.0
        %1200 = vadd.xlane.f32.xlu0 %v1199
        %v1201 = vpop.xlane.xlu0 %1200
        %v1202 = vsel %vm1068, %v1162, 0.0
        %1203 = vadd.xlane.f32.xlu0 %v1202
        %v1204 = vpop.xlane.xlu0 %1203
        %v1205 = vsel %vm1068, %v1163, 0.0
        %1206 = vadd.xlane.f32.xlu0 %v1205
        %v1207 = vpop.xlane.xlu0 %1206
        %v1208 = vsel %vm1068, %v1164, 0.0
        %1209 = vadd.xlane.f32.xlu0 %v1208
        %v1210 = vpop.xlane.xlu0 %1209
        %v1211 = vsel %vm1068, %v1165, 0.0
        %1212 = vadd.xlane.f32.xlu0 %v1211
        %v1213 = vpop.xlane.xlu0 %1212
        %v1214 = vmul.f32 %v1168, %v1117
        %v1215 = vmul.f32 %v1171, %v1117
        %v1216 = vmul.f32 %v1174, %v1117
        %v1217 = vmul.f32 %v1177, %v1117
        %v1218 = vmul.f32 %v1180, %v1117
        %v1219 = vmul.f32 %v1183, %v1117
        %v1220 = vmul.f32 %v1186, %v1117
        %v1221 = vmul.f32 %v1189, %v1117
        %v1222 = vmul.f32 %v1192, %v1117
        %v1223 = vmul.f32 %v1195, %v1117
        %v1224 = vmul.f32 %v1198, %v1117
        %v1225 = vmul.f32 %v1201, %v1117
        %v1226 = vmul.f32 %v1204, %v1117
        %v1227 = vmul.f32 %v1207, %v1117
        %v1228 = vmul.f32 %v1210, %v1117
        %v1229 = vmul.f32 %v1213, %v1117
        %v1230 = vadd.f32 %v1214, 1e-05
        %v1231 = vadd.f32 %v1215, 1e-05
        %v1232 = vadd.f32 %v1216, 1e-05
        %v1233 = vadd.f32 %v1217, 1e-05
        %v1234 = vadd.f32 %v1218, 1e-05
        %v1235 = vadd.f32 %v1219, 1e-05
        %v1236 = vadd.f32 %v1220, 1e-05
        %v1237 = vadd.f32 %v1221, 1e-05
        %v1238 = vadd.f32 %v1222, 1e-05
        %v1239 = vadd.f32 %v1223, 1e-05
        %v1240 = vadd.f32 %v1224, 1e-05
        %v1241 = vadd.f32 %v1225, 1e-05
        %v1242 = vadd.f32 %v1226, 1e-05
        %v1243 = vadd.f32 %v1227, 1e-05
        %v1244 = vadd.f32 %v1228, 1e-05
        %v1245 = vadd.f32 %v1229, 1e-05
        %v1246 = vrsqrt.pop %v1230
        %v1247 = vrsqrt.pop %v1231
        %v1248 = vrsqrt.pop %v1232
        %v1249 = vrsqrt.pop %v1233
        %v1250 = vrsqrt.pop %v1234
        %v1251 = vrsqrt.pop %v1235
        %v1252 = vrsqrt.pop %v1236
        %v1253 = vrsqrt.pop %v1237
        %v1254 = vrsqrt.pop %v1238
        %v1255 = vrsqrt.pop %v1239
        %v1256 = vrsqrt.pop %v1240
        %v1257 = vrsqrt.pop %v1241
        %v1258 = vrsqrt.pop %v1242
        %v1259 = vrsqrt.pop %v1243
        %v1260 = vrsqrt.pop %v1244
        %v1261 = vrsqrt.pop %v1245
        %v1262 = vmul.f32 %v1134, %v1246
        %v1263 = vmul.f32 %v1135, %v1247
        %v1264 = vmul.f32 %v1136, %v1248
        %v1265 = vmul.f32 %v1137, %v1249
        %v1266 = vmul.f32 %v1138, %v1250
        %v1267 = vmul.f32 %v1139, %v1251
        %v1268 = vmul.f32 %v1140, %v1252
        %v1269 = vmul.f32 %v1141, %v1253
        %v1270 = vmul.f32 %v1142, %v1254
        %v1271 = vmul.f32 %v1143, %v1255
        %v1272 = vmul.f32 %v1144, %v1256
        %v1273 = vmul.f32 %v1145, %v1257
        %v1274 = vmul.f32 %v1146, %v1258
        %v1275 = vmul.f32 %v1147, %v1259
        %v1276 = vmul.f32 %v1148, %v1260
        %v1277 = vmul.f32 %v1149, %v1261
        %v1278 = vlaneseq
        %v1279 = vshrl.u32 %v1278, 7
        %v1280 = vsub.s32 0, %v1279
        %v1281 = vrot.slane %v420, %v1280
        %v1282 = vmul.f32 %v1262, %v1281
        %v1283 = vmul.f32 %v1263, %v1281
        %v1284 = vmul.f32 %v1264, %v1281
        %v1285 = vmul.f32 %v1265, %v1281
        %v1286 = vmul.f32 %v1266, %v1281
        %v1287 = vmul.f32 %v1267, %v1281
        %v1288 = vmul.f32 %v1268, %v1281
        %v1289 = vmul.f32 %v1269, %v1281
        %v1290 = vmul.f32 %v1270, %v1281
        %v1291 = vmul.f32 %v1271, %v1281
        %v1292 = vmul.f32 %v1272, %v1281
        %v1293 = vmul.f32 %v1273, %v1281
        %v1294 = vmul.f32 %v1274, %v1281
        %v1295 = vmul.f32 %v1275, %v1281
        %v1296 = vmul.f32 %v1276, %v1281
        %v1297 = vmul.f32 %v1277, %v1281
        %v1298 = vlaneseq
        %v1299 = vshrl.u32 %v1298, 7
        %v1300 = vsub.s32 0, %v1299
        %v1301 = vrot.slane %v421, %v1300
        %v1302 = vadd.f32 %v1282, %v1301
        %v1303 = vadd.f32 %v1283, %v1301
        %v1304 = vadd.f32 %v1284, %v1301
        %v1305 = vadd.f32 %v1285, %v1301
        %v1306 = vadd.f32 %v1286, %v1301
        %v1307 = vadd.f32 %v1287, %v1301
        %v1308 = vadd.f32 %v1288, %v1301
        %v1309 = vadd.f32 %v1289, %v1301
        %v1310 = vadd.f32 %v1290, %v1301
        %v1311 = vadd.f32 %v1291, %v1301
        %v1312 = vadd.f32 %v1292, %v1301
        %v1313 = vadd.f32 %v1293, %v1301
        %v1314 = vadd.f32 %v1294, %v1301
        %v1315 = vadd.f32 %v1295, %v1301
        %v1316 = vadd.f32 %v1296, %v1301
        %v1317 = vadd.f32 %v1297, %v1301
        %v1318 = vld [vmem:[%s4 + $0x1] sm:$0xff]
        %v1319 = vld [vmem:[%s4 + $0x9] sm:$0xff]
        %v1320 = vadd.f32 %v1302, %v1318
        %v1321 = vadd.f32 %v1303, %v1319
        %v1322 = vadd.f32 %v1304, %v1318
        %v1323 = vadd.f32 %v1305, %v1319
        %v1324 = vadd.f32 %v1306, %v1318
        %v1325 = vadd.f32 %v1307, %v1319
        %v1326 = vadd.f32 %v1308, %v1318
        %v1327 = vadd.f32 %v1309, %v1319
        %v1328 = vadd.f32 %v1310, %v1318
        %v1329 = vadd.f32 %v1311, %v1319
        %v1330 = vadd.f32 %v1312, %v1318
        %v1331 = vadd.f32 %v1313, %v1319
        %v1332 = vadd.f32 %v1314, %v1318
        %v1333 = vadd.f32 %v1315, %v1319
        %v1334 = vadd.f32 %v1316, %v1318
        %v1335 = vadd.f32 %v1317, %v1319
        %v1336 = vsel %vm1068, %v1320, 0.0
        %1337 = vadd.xlane.f32.xlu0 %v1336
        %v1338 = vpop.xlane.xlu0 %1337
        %v1339 = vsel %vm1068, %v1321, 0.0
        %1340 = vadd.xlane.f32.xlu0 %v1339
        %v1341 = vpop.xlane.xlu0 %1340
        %v1342 = vsel %vm1068, %v1322, 0.0
        %1343 = vadd.xlane.f32.xlu0 %v1342
        %v1344 = vpop.xlane.xlu0 %1343
        %v1345 = vsel %vm1068, %v1323, 0.0
        %1346 = vadd.xlane.f32.xlu0 %v1345
        %v1347 = vpop.xlane.xlu0 %1346
        %v1348 = vsel %vm1068, %v1324, 0.0
        %1349 = vadd.xlane.f32.xlu0 %v1348
        %v1350 = vpop.xlane.xlu0 %1349
        %v1351 = vsel %vm1068, %v1325, 0.0
        %1352 = vadd.xlane.f32.xlu0 %v1351
        %v1353 = vpop.xlane.xlu0 %1352
        %v1354 = vsel %vm1068, %v1326, 0.0
        %1355 = vadd.xlane.f32.xlu0 %v1354
        %v1356 = vpop.xlane.xlu0 %1355
        %v1357 = vsel %vm1068, %v1327, 0.0
        %1358 = vadd.xlane.f32.xlu0 %v1357
        %v1359 = vpop.xlane.xlu0 %1358
        %v1360 = vsel %vm1068, %v1328, 0.0
        %1361 = vadd.xlane.f32.xlu0 %v1360
        %v1362 = vpop.xlane.xlu0 %1361
        %v1363 = vsel %vm1068, %v1329, 0.0
        %1364 = vadd.xlane.f32.xlu0 %v1363
        %v1365 = vpop.xlane.xlu0 %1364
        %v1366 = vsel %vm1068, %v1330, 0.0
        %1367 = vadd.xlane.f32.xlu0 %v1366
        %v1368 = vpop.xlane.xlu0 %1367
        %v1369 = vsel %vm1068, %v1331, 0.0
        %1370 = vadd.xlane.f32.xlu0 %v1369
        %v1371 = vpop.xlane.xlu0 %1370
        %v1372 = vsel %vm1068, %v1332, 0.0
        %1373 = vadd.xlane.f32.xlu0 %v1372
        %v1374 = vpop.xlane.xlu0 %1373
        %v1375 = vsel %vm1068, %v1333, 0.0
        %1376 = vadd.xlane.f32.xlu0 %v1375
        %v1377 = vpop.xlane.xlu0 %1376
        %v1378 = vsel %vm1068, %v1334, 0.0
        %1379 = vadd.xlane.f32.xlu0 %v1378
        %v1380 = vpop.xlane.xlu0 %1379
        %v1381 = vsel %vm1068, %v1335, 0.0
        %1382 = vadd.xlane.f32.xlu0 %v1381
        %v1383 = vpop.xlane.xlu0 %1382
        %v1384 = vmul.f32 %v1338, %v1117
        %v1385 = vmul.f32 %v1341, %v1117
        %v1386 = vmul.f32 %v1344, %v1117
        %v1387 = vmul.f32 %v1347, %v1117
        %v1388 = vmul.f32 %v1350, %v1117
        %v1389 = vmul.f32 %v1353, %v1117
        %v1390 = vmul.f32 %v1356, %v1117
        %v1391 = vmul.f32 %v1359, %v1117
        %v1392 = vmul.f32 %v1362, %v1117
        %v1393 = vmul.f32 %v1365, %v1117
        %v1394 = vmul.f32 %v1368, %v1117
        %v1395 = vmul.f32 %v1371, %v1117
        %v1396 = vmul.f32 %v1374, %v1117
        %v1397 = vmul.f32 %v1377, %v1117
        %v1398 = vmul.f32 %v1380, %v1117
        %v1399 = vmul.f32 %v1383, %v1117
        %v1400 = vsub.f32 %v1320, %v1384
        %v1401 = vsub.f32 %v1321, %v1385
        %v1402 = vsub.f32 %v1322, %v1386
        %v1403 = vsub.f32 %v1323, %v1387
        %v1404 = vsub.f32 %v1324, %v1388
        %v1405 = vsub.f32 %v1325, %v1389
        %v1406 = vsub.f32 %v1326, %v1390
        %v1407 = vsub.f32 %v1327, %v1391
        %v1408 = vsub.f32 %v1328, %v1392
        %v1409 = vsub.f32 %v1329, %v1393
        %v1410 = vsub.f32 %v1330, %v1394
        %v1411 = vsub.f32 %v1331, %v1395
        %v1412 = vsub.f32 %v1332, %v1396
        %v1413 = vsub.f32 %v1333, %v1397
        %v1414 = vsub.f32 %v1334, %v1398
        %v1415 = vsub.f32 %v1335, %v1399
        %v1416 = vmul.f32 %v1400, %v1400
        %v1417 = vmul.f32 %v1401, %v1401
        %v1418 = vmul.f32 %v1402, %v1402
        %v1419 = vmul.f32 %v1403, %v1403
        %v1420 = vmul.f32 %v1404, %v1404
        %v1421 = vmul.f32 %v1405, %v1405
        %v1422 = vmul.f32 %v1406, %v1406
        %v1423 = vmul.f32 %v1407, %v1407
        %v1424 = vmul.f32 %v1408, %v1408
        %v1425 = vmul.f32 %v1409, %v1409
        %v1426 = vmul.f32 %v1410, %v1410
        %v1427 = vmul.f32 %v1411, %v1411
        %v1428 = vmul.f32 %v1412, %v1412
        %v1429 = vmul.f32 %v1413, %v1413
        %v1430 = vmul.f32 %v1414, %v1414
        %v1431 = vmul.f32 %v1415, %v1415
        %v1432 = vsel %vm1068, %v1416, 0.0
        %1433 = vadd.xlane.f32.xlu0 %v1432
        %v1434 = vpop.xlane.xlu0 %1433
        %v1435 = vsel %vm1068, %v1417, 0.0
        %1436 = vadd.xlane.f32.xlu0 %v1435
        %v1437 = vpop.xlane.xlu0 %1436
        %v1438 = vsel %vm1068, %v1418, 0.0
        %1439 = vadd.xlane.f32.xlu0 %v1438
        %v1440 = vpop.xlane.xlu0 %1439
        %v1441 = vsel %vm1068, %v1419, 0.0
        %1442 = vadd.xlane.f32.xlu0 %v1441
        %v1443 = vpop.xlane.xlu0 %1442
        %v1444 = vsel %vm1068, %v1420, 0.0
        %1445 = vadd.xlane.f32.xlu0 %v1444
        %v1446 = vpop.xlane.xlu0 %1445
        %v1447 = vsel %vm1068, %v1421, 0.0
        %1448 = vadd.xlane.f32.xlu0 %v1447
        %v1449 = vpop.xlane.xlu0 %1448
        %v1450 = vsel %vm1068, %v1422, 0.0
        %1451 = vadd.xlane.f32.xlu0 %v1450
        %v1452 = vpop.xlane.xlu0 %1451
        %v1453 = vsel %vm1068, %v1423, 0.0
        %1454 = vadd.xlane.f32.xlu0 %v1453
        %v1455 = vpop.xlane.xlu0 %1454
        %v1456 = vsel %vm1068, %v1424, 0.0
        %1457 = vadd.xlane.f32.xlu0 %v1456
        %v1458 = vpop.xlane.xlu0 %1457
        %v1459 = vsel %vm1068, %v1425, 0.0
        %1460 = vadd.xlane.f32.xlu0 %v1459
        %v1461 = vpop.xlane.xlu0 %1460
        %v1462 = vsel %vm1068, %v1426, 0.0
        %1463 = vadd.xlane.f32.xlu0 %v1462
        %v1464 = vpop.xlane.xlu0 %1463
        %v1465 = vsel %vm1068, %v1427, 0.0
        %1466 = vadd.xlane.f32.xlu0 %v1465
        %v1467 = vpop.xlane.xlu0 %1466
        %v1468 = vsel %vm1068, %v1428, 0.0
        %1469 = vadd.xlane.f32.xlu0 %v1468
        %v1470 = vpop.xlane.xlu0 %1469
        %v1471 = vsel %vm1068, %v1429, 0.0
        %1472 = vadd.xlane.f32.xlu0 %v1471
        %v1473 = vpop.xlane.xlu0 %1472
        %v1474 = vsel %vm1068, %v1430, 0.0
        %1475 = vadd.xlane.f32.xlu0 %v1474
        %v1476 = vpop.xlane.xlu0 %1475
        %v1477 = vsel %vm1068, %v1431, 0.0
        %1478 = vadd.xlane.f32.xlu0 %v1477
        %v1479 = vpop.xlane.xlu0 %1478
        %v1480 = vmul.f32 %v1434, %v1117
        %v1481 = vmul.f32 %v1437, %v1117
        %v1482 = vmul.f32 %v1440, %v1117
        %v1483 = vmul.f32 %v1443, %v1117
        %v1484 = vmul.f32 %v1446, %v1117
        %v1485 = vmul.f32 %v1449, %v1117
        %v1486 = vmul.f32 %v1452, %v1117
        %v1487 = vmul.f32 %v1455, %v1117
        %v1488 = vmul.f32 %v1458, %v1117
        %v1489 = vmul.f32 %v1461, %v1117
        %v1490 = vmul.f32 %v1464, %v1117
        %v1491 = vmul.f32 %v1467, %v1117
        %v1492 = vmul.f32 %v1470, %v1117
        %v1493 = vmul.f32 %v1473, %v1117
        %v1494 = vmul.f32 %v1476, %v1117
        %v1495 = vmul.f32 %v1479, %v1117
        %v1496 = vadd.f32 %v1480, 1e-05
        %v1497 = vadd.f32 %v1481, 1e-05
        %v1498 = vadd.f32 %v1482, 1e-05
        %v1499 = vadd.f32 %v1483, 1e-05
        %v1500 = vadd.f32 %v1484, 1e-05
        %v1501 = vadd.f32 %v1485, 1e-05
        %v1502 = vadd.f32 %v1486, 1e-05
        %v1503 = vadd.f32 %v1487, 1e-05
        %v1504 = vadd.f32 %v1488, 1e-05
        %v1505 = vadd.f32 %v1489, 1e-05
        %v1506 = vadd.f32 %v1490, 1e-05
        %v1507 = vadd.f32 %v1491, 1e-05
        %v1508 = vadd.f32 %v1492, 1e-05
        %v1509 = vadd.f32 %v1493, 1e-05
        %v1510 = vadd.f32 %v1494, 1e-05
        %v1511 = vadd.f32 %v1495, 1e-05
        %v1512 = vrsqrt.pop %v1496
        %v1513 = vrsqrt.pop %v1497
        %v1514 = vrsqrt.pop %v1498
        %v1515 = vrsqrt.pop %v1499
        %v1516 = vrsqrt.pop %v1500
        %v1517 = vrsqrt.pop %v1501
        %v1518 = vrsqrt.pop %v1502
        %v1519 = vrsqrt.pop %v1503
        %v1520 = vrsqrt.pop %v1504
        %v1521 = vrsqrt.pop %v1505
        %v1522 = vrsqrt.pop %v1506
        %v1523 = vrsqrt.pop %v1507
        %v1524 = vrsqrt.pop %v1508
        %v1525 = vrsqrt.pop %v1509
        %v1526 = vrsqrt.pop %v1510
        %v1527 = vrsqrt.pop %v1511
        %v1528 = vmul.f32 %v1400, %v1512
        %v1529 = vmul.f32 %v1401, %v1513
        %v1530 = vmul.f32 %v1402, %v1514
        %v1531 = vmul.f32 %v1403, %v1515
        %v1532 = vmul.f32 %v1404, %v1516
        %v1533 = vmul.f32 %v1405, %v1517
        %v1534 = vmul.f32 %v1406, %v1518
        %v1535 = vmul.f32 %v1407, %v1519
        %v1536 = vmul.f32 %v1408, %v1520
        %v1537 = vmul.f32 %v1409, %v1521
        %v1538 = vmul.f32 %v1410, %v1522
        %v1539 = vmul.f32 %v1411, %v1523
        %v1540 = vmul.f32 %v1412, %v1524
        %v1541 = vmul.f32 %v1413, %v1525
        %v1542 = vmul.f32 %v1414, %v1526
        %v1543 = vmul.f32 %v1415, %v1527
        %v1544 = vlaneseq
        %v1545 = vshrl.u32 %v1544, 7
        %v1546 = vsub.s32 0, %v1545
        %v1547 = vrot.slane %v422, %v1546
        %v1548 = vmul.f32 %v1528, %v1547
        %v1549 = vmul.f32 %v1529, %v1547
        %v1550 = vmul.f32 %v1530, %v1547
        %v1551 = vmul.f32 %v1531, %v1547
        %v1552 = vmul.f32 %v1532, %v1547
        %v1553 = vmul.f32 %v1533, %v1547
        %v1554 = vmul.f32 %v1534, %v1547
        %v1555 = vmul.f32 %v1535, %v1547
        %v1556 = vmul.f32 %v1536, %v1547
        %v1557 = vmul.f32 %v1537, %v1547
        %v1558 = vmul.f32 %v1538, %v1547
        %v1559 = vmul.f32 %v1539, %v1547
        %v1560 = vmul.f32 %v1540, %v1547
        %v1561 = vmul.f32 %v1541, %v1547
        %v1562 = vmul.f32 %v1542, %v1547
        %v1563 = vmul.f32 %v1543, %v1547
        %v1564 = vlaneseq
        %v1565 = vshrl.u32 %v1564, 7
        %v1566 = vsub.s32 0, %v1565
        %v1567 = vrot.slane %v423, %v1566
        %v1568 = vadd.f32 %v1548, %v1567
        %v1569 = vadd.f32 %v1549, %v1567
        %v1570 = vadd.f32 %v1550, %v1567
        %v1571 = vadd.f32 %v1551, %v1567
        %v1572 = vadd.f32 %v1552, %v1567
        %v1573 = vadd.f32 %v1553, %v1567
        %v1574 = vadd.f32 %v1554, %v1567
        %v1575 = vadd.f32 %v1555, %v1567
        %v1576 = vadd.f32 %v1556, %v1567
        %v1577 = vadd.f32 %v1557, %v1567
        %v1578 = vadd.f32 %v1558, %v1567
        %v1579 = vadd.f32 %v1559, %v1567
        %v1580 = vadd.f32 %v1560, %v1567
        %v1581 = vadd.f32 %v1561, %v1567
        %v1582 = vadd.f32 %v1562, %v1567
        %v1583 = vadd.f32 %v1563, %v1567
        %v1584 = vpack.c.bf16 %v1569, %v1568
        %v1585 = vpack.c.bf16 %v1571, %v1570
        %v1586 = vpack.c.bf16 %v1573, %v1572
        %v1587 = vpack.c.bf16 %v1575, %v1574
        %v1588 = vpack.c.bf16 %v1577, %v1576
        %v1589 = vpack.c.bf16 %v1579, %v1578
        %v1590 = vpack.c.bf16 %v1581, %v1580
        %v1591 = vpack.c.bf16 %v1583, %v1582
        %s1592 = scalar_lea.vmem %s5, 32
        %v1593 = vld [vmem:[%s1592] sm:$0xf]
        %v1594 = vld [vmem:[%s1592 + $0x4] sm:$0xf]
        %v1595 = vld [vmem:[%s1592 + $0x8] sm:$0xf]
        %v1596 = vld [vmem:[%s1592 + $0xc] sm:$0xf]
        %v1597 = vld [vmem:[%s1592 + $0x10] sm:$0xf]
        %v1598 = vld [vmem:[%s1592 + $0x14] sm:$0xf]
        %v1599 = vld [vmem:[%s1592 + $0x18] sm:$0xf]
        %v1600 = vld [vmem:[%s1592 + $0x1c] sm:$0xf]
        %v1609 = vunpack.c.l.b16 %v1593
        %v1610 = vunpack.c.l.b16 %v1594
        %v1611 = vunpack.c.l.b16 %v1595
        %v1612 = vunpack.c.l.b16 %v1596
        %v1613 = vunpack.c.l.b16 %v1597
        %v1614 = vunpack.c.l.b16 %v1598
        %v1615 = vunpack.c.l.b16 %v1599
        %v1616 = vunpack.c.l.b16 %v1600
        %v1617 = vpack.c.b16 %v1610, %v1609
        %v1618 = vpack.c.b16 %v1612, %v1611
        %v1619 = vpack.c.b16 %v1614, %v1613
        %v1620 = vpack.c.b16 %v1616, %v1615
        %v1626 = vsel %vm1068, %v1584, 0
        %v1629 = vsel %vm1068, %v1585, 0
        %v1632 = vsel %vm1068, %v1586, 0
        %v1635 = vsel %vm1068, %v1587, 0
        %v1638 = vsel %vm1068, %v1588, 0
        %v1641 = vsel %vm1068, %v1589, 0
        %v1644 = vsel %vm1068, %v1590, 0
        %v1647 = vsel %vm1068, %v1591, 0
        %1649 = vmatprep.subr.bf16.mxu0 0
        %1650 = vmatpush1.bf16.msra.mxu0 %v1617
        %1651 = vmatprep.subr.bf16.mxu0 0
        %1652 = vmatpush1.bf16.msra.mxu0 %v1618
        %1653 = vmatprep.subr.bf16.mxu0 0
        %1654 = vmatpush1.bf16.msra.mxu0 %v1619
        %1655 = vmatprep.subr.bf16.mxu0 0
        %1656 = vmatpush1.bf16.msra.mxu0 %v1620
        %1657 = vmatprep.subr.bf16.mxu0 0
        %1658 = vmatpush1.bf16.msra.mxu0 0
        %1659 = vmatprep.subr.bf16.mxu0 0
        %1660 = vmatpush1.bf16.msra.mxu0 0
        %1661 = vmatprep.subr.bf16.mxu0 0
        %1662 = vmatpush1.bf16.msra.mxu0 0
        %1663 = vmatprep.subr.bf16.mxu0 0
        %1664 = vmatpush1.bf16.msra.mxu0 0
        %1665 = vmatprep.subr.bf16.mxu0 0
        %1666 = vmatpush1.bf16.msra.mxu0 0
        %1667 = vmatprep.subr.bf16.mxu0 0
        %1668 = vmatpush1.bf16.msra.mxu0 0
        %1669 = vmatprep.subr.bf16.mxu0 0
        %1670 = vmatpush1.bf16.msra.mxu0 0
        %1671 = vmatprep.subr.bf16.mxu0 0
        %1672 = vmatpush1.bf16.msra.mxu0 0
        %1673 = vmatprep.subr.bf16.mxu0 0
        %1674 = vmatpush1.bf16.msra.mxu0 0
        %1675 = vmatprep.subr.bf16.mxu0 0
        %1676 = vmatpush1.bf16.msra.mxu0 0
        %1677 = vmatprep.subr.bf16.mxu0 0
        %1678 = vmatpush1.bf16.msra.mxu0 0
        %1679 = vmatprep.subr.bf16.mxu0 0
        %1680 = vmatpush1.bf16.msra.mxu0 0
        %1681 = vmatprep.mubr.bf16.mxu0 0
        %1682 = vmatmul.mubr.bf16.gmra.mrb[0].mxu0 %v1626
        %v1683 = vpop.f32.mrb[0].mxu0
        %v1684 = vadd.f32 0.0, %v1683
        %v1685 = vpop.f32.mrb[0].mxu0
        %v1686 = vpop.f32.mrb[0].mxu0
        %v1687 = vadd.f32 0.0, %v1686
        %v1688 = vpop.f32.mrb[0].mxu0
        %1689 = vmatprep.mubr.bf16.mxu0 0
        %1690 = vmatmul.mubr.bf16.gmra.mrb[0].mxu0 %v1629
        %v1691 = vpop.f32.mrb[0].mxu0
        %v1692 = vadd.f32 0.0, %v1691
        %v1693 = vpop.f32.mrb[0].mxu0
        %v1694 = vpop.f32.mrb[0].mxu0
        %v1695 = vadd.f32 0.0, %v1694
        %v1696 = vpop.f32.mrb[0].mxu0
        %1697 = vmatprep.mubr.bf16.mxu0 0
        %1698 = vmatmul.mubr.bf16.gmra.mrb[0].mxu0 %v1632
        %v1699 = vpop.f32.mrb[0].mxu0
        %v1700 = vadd.f32 0.0, %v1699
        %v1701 = vpop.f32.mrb[0].mxu0
        %v1702 = vpop.f32.mrb[0].mxu0
        %v1703 = vadd.f32 0.0, %v1702
        %v1704 = vpop.f32.mrb[0].mxu0
        %1705 = vmatprep.mubr.bf16.mxu0 0
        %1706 = vmatmul.mubr.bf16.gmra.mrb[0].mxu0 %v1635
        %v1707 = vpop.f32.mrb[0].mxu0
        %v1708 = vadd.f32 0.0, %v1707
        %v1709 = vpop.f32.mrb[0].mxu0
        %v1710 = vpop.f32.mrb[0].mxu0
        %v1711 = vadd.f32 0.0, %v1710
        %v1712 = vpop.f32.mrb[0].mxu0
        %1713 = vmatprep.mubr.bf16.mxu0 0
        %1714 = vmatmul.mubr.bf16.gmra.mrb[0].mxu0 %v1638
        %v1715 = vpop.f32.mrb[0].mxu0
        %v1716 = vadd.f32 0.0, %v1715
        %v1717 = vpop.f32.mrb[0].mxu0
        %v1718 = vpop.f32.mrb[0].mxu0
        %v1719 = vadd.f32 0.0, %v1718
        %v1720 = vpop.f32.mrb[0].mxu0
        %1721 = vmatprep.mubr.bf16.mxu0 0
        %1722 = vmatmul.mubr.bf16.gmra.mrb[0].mxu0 %v1641
        %v1723 = vpop.f32.mrb[0].mxu0
        %v1724 = vadd.f32 0.0, %v1723
        %v1725 = vpop.f32.mrb[0].mxu0
        %v1726 = vpop.f32.mrb[0].mxu0
        %v1727 = vadd.f32 0.0, %v1726
        %v1728 = vpop.f32.mrb[0].mxu0
        %1729 = vmatprep.mubr.bf16.mxu0 0
        %1730 = vmatmul.mubr.bf16.gmra.mrb[0].mxu0 %v1644
        %v1731 = vpop.f32.mrb[0].mxu0
        %v1732 = vadd.f32 0.0, %v1731
        %v1733 = vpop.f32.mrb[0].mxu0
        %v1734 = vpop.f32.mrb[0].mxu0
        %v1735 = vadd.f32 0.0, %v1734
        %v1736 = vpop.f32.mrb[0].mxu0
        %1737 = vmatprep.mubr.bf16.mxu0 0
        %1738 = vmatmul.mubr.bf16.gmra.mrb[0].mxu0 %v1647
        %v1739 = vpop.f32.mrb[0].mxu0
        %v1740 = vadd.f32 0.0, %v1739
        %v1741 = vpop.f32.mrb[0].mxu0
        %v1742 = vpop.f32.mrb[0].mxu0
        %v1743 = vadd.f32 0.0, %v1742
        %v1744 = vpop.f32.mrb[0].mxu0
        %1745 = vdwg.mxu0
        %s1746 = scalar_lea.vmem %s5, 64
        %v1747 = vld [vmem:[%s1746] sm:$0xf]
        %v1748 = vld [vmem:[%s1746 + $0x4] sm:$0xf]
        %v1749 = vld [vmem:[%s1746 + $0x8] sm:$0xf]
        %v1750 = vld [vmem:[%s1746 + $0xc] sm:$0xf]
        %v1751 = vld [vmem:[%s1746 + $0x10] sm:$0xf]
        %v1752 = vld [vmem:[%s1746 + $0x14] sm:$0xf]
        %v1753 = vld [vmem:[%s1746 + $0x18] sm:$0xf]
        %v1754 = vld [vmem:[%s1746 + $0x1c] sm:$0xf]
        %v1763 = vunpack.c.l.b16 %v1747
        %v1764 = vunpack.c.l.b16 %v1748
        %v1765 = vunpack.c.l.b16 %v1749
        %v1766 = vunpack.c.l.b16 %v1750
        %v1767 = vunpack.c.l.b16 %v1751
        %v1768 = vunpack.c.l.b16 %v1752
        %v1769 = vunpack.c.l.b16 %v1753
        %v1770 = vunpack.c.l.b16 %v1754
        %v1771 = vpack.c.b16 %v1764, %v1763
        %v1772 = vpack.c.b16 %v1766, %v1765
        %v1773 = vpack.c.b16 %v1768, %v1767
        %v1774 = vpack.c.b16 %v1770, %v1769
        %1779 = vmatprep.subr.bf16.mxu0 0
        %1780 = vmatpush1.bf16.msra.mxu0 %v1771
        %1781 = vmatprep.subr.bf16.mxu0 0
        %1782 = vmatpush1.bf16.msra.mxu0 %v1772
        %1783 = vmatprep.subr.bf16.mxu0 0
        %1784 = vmatpush1.bf16.msra.mxu0 %v1773
        %1785 = vmatprep.subr.bf16.mxu0 0
        %1786 = vmatpush1.bf16.msra.mxu0 %v1774
        %1787 = vmatprep.subr.bf16.mxu0 0
        %1788 = vmatpush1.bf16.msra.mxu0 0
        %1789 = vmatprep.subr.bf16.mxu0 0
        %1790 = vmatpush1.bf16.msra.mxu0 0
        %1791 = vmatprep.subr.bf16.mxu0 0
        %1792 = vmatpush1.bf16.msra.mxu0 0
        %1793 = vmatprep.subr.bf16.mxu0 0
        %1794 = vmatpush1.bf16.msra.mxu0 0
        %1795 = vmatprep.subr.bf16.mxu0 0
        %1796 = vmatpush1.bf16.msra.mxu0 0
        %1797 = vmatprep.subr.bf16.mxu0 0
        %1798 = vmatpush1.bf16.msra.mxu0 0
        %1799 = vmatprep.subr.bf16.mxu0 0
        %1800 = vmatpush1.bf16.msra.mxu0 0
        %1801 = vmatprep.subr.bf16.mxu0 0
        %1802 = vmatpush1.bf16.msra.mxu0 0
        %1803 = vmatprep.subr.bf16.mxu0 0
        %1804 = vmatpush1.bf16.msra.mxu0 0
        %1805 = vmatprep.subr.bf16.mxu0 0
        %1806 = vmatpush1.bf16.msra.mxu0 0
        %1807 = vmatprep.subr.bf16.mxu0 0
        %1808 = vmatpush1.bf16.msra.mxu0 0
        %1809 = vmatprep.subr.bf16.mxu0 0
        %1810 = vmatpush1.bf16.msra.mxu0 0
        %1811 = vmatprep.mubr.bf16.mxu0 0
        %1812 = vmatmul.mubr.bf16.gmra.mrb[0].mxu0 %v1626
        %v1813 = vpop.f32.mrb[0].mxu0
        %v1814 = vadd.f32 0.0, %v1813
        %v1815 = vpop.f32.mrb[0].mxu0
        %v1816 = vpop.f32.mrb[0].mxu0
        %v1817 = vadd.f32 0.0, %v1816
        %v1818 = vpop.f32.mrb[0].mxu0
        %1819 = vmatprep.mubr.bf16.mxu0 0
        %1820 = vmatmul.mubr.bf16.gmra.mrb[0].mxu0 %v1629
        %v1821 = vpop.f32.mrb[0].mxu0
        %v1822 = vadd.f32 0.0, %v1821
        %v1823 = vpop.f32.mrb[0].mxu0
        %v1824 = vpop.f32.mrb[0].mxu0
        %v1825 = vadd.f32 0.0, %v1824
        %v1826 = vpop.f32.mrb[0].mxu0
        %1827 = vmatprep.mubr.bf16.mxu0 0
        %1828 = vmatmul.mubr.bf16.gmra.mrb[0].mxu0 %v1632
        %v1829 = vpop.f32.mrb[0].mxu0
        %v1830 = vadd.f32 0.0, %v1829
        %v1831 = vpop.f32.mrb[0].mxu0
        %v1832 = vpop.f32.mrb[0].mxu0
        %v1833 = vadd.f32 0.0, %v1832
        %v1834 = vpop.f32.mrb[0].mxu0
        %1835 = vmatprep.mubr.bf16.mxu0 0
        %1836 = vmatmul.mubr.bf16.gmra.mrb[0].mxu0 %v1635
        %v1837 = vpop.f32.mrb[0].mxu0
        %v1838 = vadd.f32 0.0, %v1837
        %v1839 = vpop.f32.mrb[0].mxu0
        %v1840 = vpop.f32.mrb[0].mxu0
        %v1841 = vadd.f32 0.0, %v1840
        %v1842 = vpop.f32.mrb[0].mxu0
        %1843 = vmatprep.mubr.bf16.mxu0 0
        %1844 = vmatmul.mubr.bf16.gmra.mrb[0].mxu0 %v1638
        %v1845 = vpop.f32.mrb[0].mxu0
        %v1846 = vadd.f32 0.0, %v1845
        %v1847 = vpop.f32.mrb[0].mxu0
        %v1848 = vpop.f32.mrb[0].mxu0
        %v1849 = vadd.f32 0.0, %v1848
        %v1850 = vpop.f32.mrb[0].mxu0
        %1851 = vmatprep.mubr.bf16.mxu0 0
        %1852 = vmatmul.mubr.bf16.gmra.mrb[0].mxu0 %v1641
        %v1853 = vpop.f32.mrb[0].mxu0
        %v1854 = vadd.f32 0.0, %v1853
        %v1855 = vpop.f32.mrb[0].mxu0
        %v1856 = vpop.f32.mrb[0].mxu0
        %v1857 = vadd.f32 0.0, %v1856
        %v1858 = vpop.f32.mrb[0].mxu0
        %1859 = vmatprep.mubr.bf16.mxu0 0
        %1860 = vmatmul.mubr.bf16.gmra.mrb[0].mxu0 %v1644
        %v1861 = vpop.f32.mrb[0].mxu0
        %v1862 = vadd.f32 0.0, %v1861
        %v1863 = vpop.f32.mrb[0].mxu0
        %v1864 = vpop.f32.mrb[0].mxu0
        %v1865 = vadd.f32 0.0, %v1864
        %v1866 = vpop.f32.mrb[0].mxu0
        %1867 = vmatprep.mubr.bf16.mxu0 0
        %1868 = vmatmul.mubr.bf16.gmra.mrb[0].mxu0 %v1647
        %v1869 = vpop.f32.mrb[0].mxu0
        %v1870 = vadd.f32 0.0, %v1869
        %v1871 = vpop.f32.mrb[0].mxu0
        %v1872 = vpop.f32.mrb[0].mxu0
        %v1873 = vadd.f32 0.0, %v1872
        %v1874 = vpop.f32.mrb[0].mxu0
        %1875 = vdwg.mxu0
        %v1876 = vld [vmem:[%s4] sm:$0x1]
        %v1877 = vadd.f32 %v431, %v1876
        %vm1878 = vcmask 516096
        %v1879 = vsel %vm1878, %v1877, 0.0
        %1880 = vadd.xlane.f32.xlu0 %v1879
        %v1881 = vpop.xlane.xlu0 %1880
        %v1882 = vmul.f32 %v1881, %v1117
        %v1883 = vsub.f32 %v1877, %v1882
        %v1884 = vmul.f32 %v1883, %v1883
        %v1885 = vsel %vm1878, %v1884, 0.0
        %1886 = vadd.xlane.f32.xlu0 %v1885
        %v1887 = vpop.xlane.xlu0 %1886
        %v1888 = vmul.f32 %v1887, %v1117
        %v1889 = vadd.f32 %v1888, 1e-05
        %v1890 = vrsqrt.pop %v1889
        %v1891 = vmul.f32 %v1883, %v1890
        %v1892 = vmul.f32 %v1891, %v422
        %v1893 = vadd.f32 %v1892, %v423
        %v1894 = vpack.c.bf16 %v1893, %v1893
        %v1895 = vld [vmem:[%s5] sm:$0xf]
        %v1896 = vld [vmem:[%s5 + $0x4] sm:$0xf]
        %v1897 = vld [vmem:[%s5 + $0x8] sm:$0xf]
        %v1898 = vld [vmem:[%s5 + $0xc] sm:$0xf]
        %v1899 = vld [vmem:[%s5 + $0x10] sm:$0xf]
        %v1900 = vld [vmem:[%s5 + $0x14] sm:$0xf]
        %v1901 = vld [vmem:[%s5 + $0x18] sm:$0xf]
        %v1902 = vld [vmem:[%s5 + $0x1c] sm:$0xf]
        %v1911 = vunpack.c.l.b16 %v1895
        %v1912 = vunpack.c.l.b16 %v1896
        %v1913 = vunpack.c.l.b16 %v1897
        %v1914 = vunpack.c.l.b16 %v1898
        %v1915 = vunpack.c.l.b16 %v1899
        %v1916 = vunpack.c.l.b16 %v1900
        %v1917 = vunpack.c.l.b16 %v1901
        %v1918 = vunpack.c.l.b16 %v1902
        %v1919 = vpack.c.b16 %v1912, %v1911
        %v1920 = vpack.c.b16 %v1914, %v1913
        %v1921 = vpack.c.b16 %v1916, %v1915
        %v1922 = vpack.c.b16 %v1918, %v1917
        %v1928 = vsel %vm1068, %v1894, 0
        %1930 = vmatprep.subr.bf16.mxu0 0
        %1931 = vmatpush1.bf16.msra.mxu0 %v1919
        %1932 = vmatprep.subr.bf16.mxu0 0
        %1933 = vmatpush1.bf16.msra.mxu0 %v1920
        %1934 = vmatprep.subr.bf16.mxu0 0
        %1935 = vmatpush1.bf16.msra.mxu0 %v1921
        %1936 = vmatprep.subr.bf16.mxu0 0
        %1937 = vmatpush1.bf16.msra.mxu0 %v1922
        %1938 = vmatprep.subr.bf16.mxu0 0
        %1939 = vmatpush1.bf16.msra.mxu0 0
        %1940 = vmatprep.subr.bf16.mxu0 0
        %1941 = vmatpush1.bf16.msra.mxu0 0
        %1942 = vmatprep.subr.bf16.mxu0 0
        %1943 = vmatpush1.bf16.msra.mxu0 0
        %1944 = vmatprep.subr.bf16.mxu0 0
        %1945 = vmatpush1.bf16.msra.mxu0 0
        %1946 = vmatprep.subr.bf16.mxu0 0
        %1947 = vmatpush1.bf16.msra.mxu0 0
        %1948 = vmatprep.subr.bf16.mxu0 0
        %1949 = vmatpush1.bf16.msra.mxu0 0
        %1950 = vmatprep.subr.bf16.mxu0 0
        %1951 = vmatpush1.bf16.msra.mxu0 0
        %1952 = vmatprep.subr.bf16.mxu0 0
        %1953 = vmatpush1.bf16.msra.mxu0 0
        %1954 = vmatprep.subr.bf16.mxu0 0
        %1955 = vmatpush1.bf16.msra.mxu0 0
        %1956 = vmatprep.subr.bf16.mxu0 0
        %1957 = vmatpush1.bf16.msra.mxu0 0
        %1958 = vmatprep.subr.bf16.mxu0 0
        %1959 = vmatpush1.bf16.msra.mxu0 0
        %1960 = vmatprep.subr.bf16.mxu0 0
        %1961 = vmatpush1.bf16.msra.mxu0 0
        %1962 = vmatprep.mubr.bf16.mxu0 0
        %1963 = vmatmul.mubr.bf16.gmra.mrb[0].mxu0 %v1928
        %v1964 = vpop.f32.mrb[0].mxu0
        %v1965 = vadd.f32 0.0, %v1964
        %v1966 = vpop.f32.mrb[0].mxu0
        %v1967 = vpop.f32.mrb[0].mxu0
        %v1968 = vpop.f32.mrb[0].mxu0
        %1969 = vdwg.mxu0
        %1970 = vmatprep.subr.bf16.mxu0 0
        %1971 = vmatpush1.bf16.msra.mxu0 %v1617
        %1972 = vmatprep.subr.bf16.mxu0 0
        %1973 = vmatpush1.bf16.msra.mxu0 %v1618
        %1974 = vmatprep.subr.bf16.mxu0 0
        %1975 = vmatpush1.bf16.msra.mxu0 %v1619
        %1976 = vmatprep.subr.bf16.mxu0 0
        %1977 = vmatpush1.bf16.msra.mxu0 %v1620
        %1978 = vmatprep.subr.bf16.mxu0 0
        %1979 = vmatpush1.bf16.msra.mxu0 0
        %1980 = vmatprep.subr.bf16.mxu0 0
        %1981 = vmatpush1.bf16.msra.mxu0 0
        %1982 = vmatprep.subr.bf16.mxu0 0
        %1983 = vmatpush1.bf16.msra.mxu0 0
        %1984 = vmatprep.subr.bf16.mxu0 0
        %1985 = vmatpush1.bf16.msra.mxu0 0
        %1986 = vmatprep.subr.bf16.mxu0 0
        %1987 = vmatpush1.bf16.msra.mxu0 0
        %1988 = vmatprep.subr.bf16.mxu0 0
        %1989 = vmatpush1.bf16.msra.mxu0 0
        %1990 = vmatprep.subr.bf16.mxu0 0
        %1991 = vmatpush1.bf16.msra.mxu0 0
        %1992 = vmatprep.subr.bf16.mxu0 0
        %1993 = vmatpush1.bf16.msra.mxu0 0
        %1994 = vmatprep.subr.bf16.mxu0 0
        %1995 = vmatpush1.bf16.msra.mxu0 0
        %1996 = vmatprep.subr.bf16.mxu0 0
        %1997 = vmatpush1.bf16.msra.mxu0 0
        %1998 = vmatprep.subr.bf16.mxu0 0
        %1999 = vmatpush1.bf16.msra.mxu0 0
        %2000 = vmatprep.subr.bf16.mxu0 0
        %2001 = vmatpush1.bf16.msra.mxu0 0
        %2002 = vmatprep.mubr.bf16.mxu0 0
        %2003 = vmatmul.mubr.bf16.gmra.mrb[0].mxu0 %v1928
        %v2004 = vpop.f32.mrb[0].mxu0
        %v2005 = vadd.f32 0.0, %v2004
        %v2006 = vpop.f32.mrb[0].mxu0
        %v2007 = vpop.f32.mrb[0].mxu0
        %v2008 = vpop.f32.mrb[0].mxu0
        %2009 = vdwg.mxu0
        %2010 = vmatprep.subr.bf16.mxu0 0
        %2011 = vmatpush1.bf16.msra.mxu0 %v1771
        %2012 = vmatprep.subr.bf16.mxu0 0
        %2013 = vmatpush1.bf16.msra.mxu0 %v1772
        %2014 = vmatprep.subr.bf16.mxu0 0
        %2015 = vmatpush1.bf16.msra.mxu0 %v1773
        %2016 = vmatprep.subr.bf16.mxu0 0
        %2017 = vmatpush1.bf16.msra.mxu0 %v1774
        %2018 = vmatprep.subr.bf16.mxu0 0
        %2019 = vmatpush1.bf16.msra.mxu0 0
        %2020 = vmatprep.subr.bf16.mxu0 0
        %2021 = vmatpush1.bf16.msra.mxu0 0
        %2022 = vmatprep.subr.bf16.mxu0 0
        %2023 = vmatpush1.bf16.msra.mxu0 0
        %2024 = vmatprep.subr.bf16.mxu0 0
        %2025 = vmatpush1.bf16.msra.mxu0 0
        %2026 = vmatprep.subr.bf16.mxu0 0
        %2027 = vmatpush1.bf16.msra.mxu0 0
        %2028 = vmatprep.subr.bf16.mxu0 0
        %2029 = vmatpush1.bf16.msra.mxu0 0
        %2030 = vmatprep.subr.bf16.mxu0 0
        %2031 = vmatpush1.bf16.msra.mxu0 0
        %2032 = vmatprep.subr.bf16.mxu0 0
        %2033 = vmatpush1.bf16.msra.mxu0 0
        %2034 = vmatprep.subr.bf16.mxu0 0
        %2035 = vmatpush1.bf16.msra.mxu0 0
        %2036 = vmatprep.subr.bf16.mxu0 0
        %2037 = vmatpush1.bf16.msra.mxu0 0
        %2038 = vmatprep.subr.bf16.mxu0 0
        %2039 = vmatpush1.bf16.msra.mxu0 0
        %2040 = vmatprep.subr.bf16.mxu0 0
        %2041 = vmatpush1.bf16.msra.mxu0 0
        %2042 = vmatprep.mubr.bf16.mxu0 0
        %2043 = vmatmul.mubr.bf16.gmra.mrb[0].mxu0 %v1928
        %v2044 = vpop.f32.mrb[0].mxu0
        %v2045 = vadd.f32 0.0, %v2044
        %v2046 = vpop.f32.mrb[0].mxu0
        %v2047 = vpop.f32.mrb[0].mxu0
        %v2048 = vpop.f32.mrb[0].mxu0
        %2049 = vdwg.mxu0
        %v2050 = vpack.c.bf16 %v1965, %v1965
        %v2051 = vpack.c.bf16 %v1687, %v1684
        %v2052 = vpack.c.bf16 %v1695, %v1692
        %v2053 = vpack.c.bf16 %v1703, %v1700
        %v2054 = vpack.c.bf16 %v1711, %v1708
        %v2055 = vpack.c.bf16 %v1719, %v1716
        %v2056 = vpack.c.bf16 %v1727, %v1724
        %v2057 = vpack.c.bf16 %v1735, %v1732
        %v2058 = vpack.c.bf16 %v1743, %v1740
        %v2060 = vsel %vm1068, %v2050, 0
        %v2063 = vsel %vm1068, %v2051, 0
        %v2066 = vsel %vm1068, %v2052, 0
        %v2069 = vsel %vm1068, %v2053, 0
        %v2072 = vsel %vm1068, %v2054, 0
        %v2075 = vsel %vm1068, %v2055, 0
        %v2078 = vsel %vm1068, %v2056, 0
        %v2081 = vsel %vm1068, %v2057, 0
        %v2084 = vsel %vm1068, %v2058, 0
        %2086 = vmatprep.subr.bf16.mxu0 0
        %2087 = vmatpush1.bf16.xpose.msra.mxu0 %v2063
        %2088 = vmatprep.subr.bf16.mxu0 0
        %2089 = vmatpush1.bf16.xpose.msra.mxu0 %v2066
        %2090 = vmatprep.subr.bf16.mxu0 0
        %2091 = vmatpush1.bf16.xpose.msra.mxu0 %v2069
        %2092 = vmatprep.subr.bf16.mxu0 0
        %2093 = vmatpush1.bf16.xpose.msra.mxu0 %v2072
        %2094 = vmatprep.subr.bf16.mxu0 0
        %2095 = vmatpush1.bf16.xpose.msra.mxu0 %v2075
        %2096 = vmatprep.subr.bf16.mxu0 0
        %2097 = vmatpush1.bf16.xpose.msra.mxu0 %v2078
        %2098 = vmatprep.subr.bf16.mxu0 0
        %2099 = vmatpush1.bf16.xpose.msra.mxu0 %v2081
        %2100 = vmatprep.subr.bf16.mxu0 0
        %2101 = vmatpush1.bf16.xpose.msra.mxu0 %v2084
        %2102 = vmatprep.subr.bf16.mxu0 0
        %2103 = vmatpush1.bf16.xpose.msra.mxu0 0
        %2104 = vmatprep.subr.bf16.mxu0 0
        %2105 = vmatpush1.bf16.xpose.msra.mxu0 0
        %2106 = vmatprep.subr.bf16.mxu0 0
        %2107 = vmatpush1.bf16.xpose.msra.mxu0 0
        %2108 = vmatprep.subr.bf16.mxu0 0
        %2109 = vmatpush1.bf16.xpose.msra.mxu0 0
        %2110 = vmatprep.subr.bf16.mxu0 0
        %2111 = vmatpush1.bf16.xpose.msra.mxu0 0
        %2112 = vmatprep.subr.bf16.mxu0 0
        %2113 = vmatpush1.bf16.xpose.msra.mxu0 0
        %2114 = vmatprep.subr.bf16.mxu0 0
        %2115 = vmatpush1.bf16.xpose.msra.mxu0 0
        %2116 = vmatprep.subr.bf16.mxu0 0
        %2117 = vmatpush1.bf16.xpose.msra.mxu0 0
        %2118 = vmatprep.mubr.bf16.mxu0 0
        %2119 = vmatmul.mubr.bf16.gmra.mrb[0].mxu0 %v2060
        %v2120 = vpop.f32.mrb[0].mxu0
        %v2121 = vadd.f32 0.0, %v2120
        %v2122 = vpop.f32.mrb[0].mxu0
        %v2123 = vpop.f32.mrb[0].mxu0
        %v2124 = vpop.f32.mrb[0].mxu0
        %2125 = vdwg.mxu0
        %v2126 = vmul.f32 %v2121, 0.125
        %v2127 = vmul.f32 %v1965, %v2005
        %v2128 = vsel %vm1878, %v2127, 0.0
        %2129 = vadd.xlane.f32.xlu0 %v2128
        %v2130 = vpop.xlane.xlu0 %2129
        %v2131 = vmul.f32 %v2130, 0.125
        %v2132 = vlaneseq
        %v2133 = vshrl.u32 %v2132, 7
        %v2134 = vlaneseq
        %v2135 = vand.u32 %v2134, 127
        %v2136 = vmul.u32 %v2133, 16
        %vm2137 = vcmp.ge.s32.totalorder %v2135, %v2136
        %v2138 = vadd.s32 %v2133, 1
        %v2139 = vmul.u32 %v2138, 16
        %vm2140 = vcmp.lt.s32.totalorder %v2135, %v2139
        %vm2141 = vmand %vm2137, %vm2140
        %v2142 = vlaneseq
        %v2143 = vshrl.u32 %v2142, 7
        %v2144 = vsub.s32 0, %v2143
        %v2145 = vrot.slane %v2126, %v2144
        %v2146 = vsel %vm2141, %v2145, -1e+30
        %2147 = vmax.xlane.f32.xlu0 %v2146
        %v2148 = vpop.xlane.xlu0 %2147
        %v2149 = vlaneseq
        %v2150 = vshrl.u32 %v2149, 7
        %v2151 = vsub.s32 0, %v2150
        %v2152 = vrot.slane %v2131, %v2151
        %v2153 = vmax.f32 %v2148, %v2152
        %v2154 = vsub.f32 %v2146, %v2153
        %v2155 = vmul.f32 %v2154, 1.442695
        %v2156 = vpow.pop %v2155
        %v2157 = vsub.f32 %v2152, %v2153
        %v2158 = vmul.f32 %v2157, 1.442695
        %v2159 = vpow.pop %v2158
        %2160 = vadd.xlane.f32.xlu0 %v2156
        %v2161 = vpop.xlane.xlu0 %2160
        %v2162 = vadd.f32 %v2161, %v2159
        %v2163 = vrcp.pop %v2162
        %v2164 = vmul.f32 %v2156, %v2163
        %v2165 = vpack.c.bf16 %v2164, %v2164
        %v2166 = vpack.c.bf16 %v1817, %v1814
        %v2167 = vpack.c.bf16 %v1825, %v1822
        %v2168 = vpack.c.bf16 %v1833, %v1830
        %v2169 = vpack.c.bf16 %v1841, %v1838
        %v2170 = vpack.c.bf16 %v1849, %v1846
        %v2171 = vpack.c.bf16 %v1857, %v1854
        %v2172 = vpack.c.bf16 %v1865, %v1862
        %v2173 = vpack.c.bf16 %v1873, %v1870
        %v2174 = vmul.f32 %v2159, %v2163
        %v2175 = vlaneseq
        %v2176 = vshrl.u32 %v2175, 7
        %v2177 = vsub.s32 0, %v2176
        %v2178 = vrot.slane %v2045, %v2177
        %v2179 = vmul.f32 %v2174, %v2178
        %2180 = vmatprep.subr.bf16.mxu0 0
        %2181 = vmatpush1.bf16.msra.mxu0 %v2166
        %2182 = vmatprep.subr.bf16.mxu0 0
        %2183 = vmatpush1.bf16.msra.mxu0 %v2167
        %2184 = vmatprep.subr.bf16.mxu0 0
        %2185 = vmatpush1.bf16.msra.mxu0 %v2168
        %2186 = vmatprep.subr.bf16.mxu0 0
        %2187 = vmatpush1.bf16.msra.mxu0 %v2169
        %2188 = vmatprep.subr.bf16.mxu0 0
        %2189 = vmatpush1.bf16.msra.mxu0 %v2170
        %2190 = vmatprep.subr.bf16.mxu0 0
        %2191 = vmatpush1.bf16.msra.mxu0 %v2171
        %2192 = vmatprep.subr.bf16.mxu0 0
        %2193 = vmatpush1.bf16.msra.mxu0 %v2172
        %2194 = vmatprep.subr.bf16.mxu0 0
        %2195 = vmatpush1.bf16.msra.mxu0 %v2173
        %2196 = vmatprep.subr.bf16.mxu0 0
        %2197 = vmatpush1.bf16.msra.mxu0 0
        %2198 = vmatprep.subr.bf16.mxu0 0
        %2199 = vmatpush1.bf16.msra.mxu0 0
        %2200 = vmatprep.subr.bf16.mxu0 0
        %2201 = vmatpush1.bf16.msra.mxu0 0
        %2202 = vmatprep.subr.bf16.mxu0 0
        %2203 = vmatpush1.bf16.msra.mxu0 0
        %2204 = vmatprep.subr.bf16.mxu0 0
        %2205 = vmatpush1.bf16.msra.mxu0 0
        %2206 = vmatprep.subr.bf16.mxu0 0
        %2207 = vmatpush1.bf16.msra.mxu0 0
        %2208 = vmatprep.subr.bf16.mxu0 0
        %2209 = vmatpush1.bf16.msra.mxu0 0
        %2210 = vmatprep.subr.bf16.mxu0 0
        %2211 = vmatpush1.bf16.msra.mxu0 0
        %2212 = vmatprep.mubr.bf16.mxu0 0
        %2213 = vmatmul.mubr.bf16.gmra.mrb[0].mxu0 %v2165
        %v2214 = vpop.f32.mrb[0].mxu0
        %v2215 = vadd.f32 %v2179, %v2214
        %v2216 = vpop.f32.mrb[0].mxu0
        %v2217 = vpop.f32.mrb[0].mxu0
        %v2218 = vpop.f32.mrb[0].mxu0
        %2219 = vdwg.mxu0
        %v2220 = vpack.c.bf16 %v2215, %v2215
        %v2221 = vld [vmem:[%s6] sm:$0xf]
        %v2222 = vld [vmem:[%s6 + $0x4] sm:$0xf]
        %v2223 = vld [vmem:[%s6 + $0x8] sm:$0xf]
        %v2224 = vld [vmem:[%s6 + $0xc] sm:$0xf]
        %v2225 = vld [vmem:[%s6 + $0x10] sm:$0xf]
        %v2226 = vld [vmem:[%s6 + $0x14] sm:$0xf]
        %v2227 = vld [vmem:[%s6 + $0x18] sm:$0xf]
        %v2228 = vld [vmem:[%s6 + $0x1c] sm:$0xf]
        %v2229 = vlaneseq
        %v2230 = vshrl.u32 %v2229, 7
        %v2231 = vsub.s32 0, %v2230
        %v2232 = vrot.slane %v429, %v2231
        %v2241 = vunpack.c.l.b16 %v2221
        %v2242 = vunpack.c.l.b16 %v2222
        %v2243 = vunpack.c.l.b16 %v2223
        %v2244 = vunpack.c.l.b16 %v2224
        %v2245 = vunpack.c.l.b16 %v2225
        %v2246 = vunpack.c.l.b16 %v2226
        %v2247 = vunpack.c.l.b16 %v2227
        %v2248 = vunpack.c.l.b16 %v2228
        %v2249 = vpack.c.b16 %v2242, %v2241
        %v2250 = vpack.c.b16 %v2244, %v2243
        %v2251 = vpack.c.b16 %v2246, %v2245
        %v2252 = vpack.c.b16 %v2248, %v2247
        %v2258 = vsel %vm1068, %v2220, 0
        %2260 = vmatprep.subr.bf16.mxu0 0
        %2261 = vmatpush1.bf16.msra.mxu0 %v2249
        %2262 = vmatprep.subr.bf16.mxu0 0
        %2263 = vmatpush1.bf16.msra.mxu0 %v2250
        %2264 = vmatprep.subr.bf16.mxu0 0
        %2265 = vmatpush1.bf16.msra.mxu0 %v2251
        %2266 = vmatprep.subr.bf16.mxu0 0
        %2267 = vmatpush1.bf16.msra.mxu0 %v2252
        %2268 = vmatprep.subr.bf16.mxu0 0
        %2269 = vmatpush1.bf16.msra.mxu0 0
        %2270 = vmatprep.subr.bf16.mxu0 0
        %2271 = vmatpush1.bf16.msra.mxu0 0
        %2272 = vmatprep.subr.bf16.mxu0 0
        %2273 = vmatpush1.bf16.msra.mxu0 0
        %2274 = vmatprep.subr.bf16.mxu0 0
        %2275 = vmatpush1.bf16.msra.mxu0 0
        %2276 = vmatprep.subr.bf16.mxu0 0
        %2277 = vmatpush1.bf16.msra.mxu0 0
        %2278 = vmatprep.subr.bf16.mxu0 0
        %2279 = vmatpush1.bf16.msra.mxu0 0
        %2280 = vmatprep.subr.bf16.mxu0 0
        %2281 = vmatpush1.bf16.msra.mxu0 0
        %2282 = vmatprep.subr.bf16.mxu0 0
        %2283 = vmatpush1.bf16.msra.mxu0 0
        %2284 = vmatprep.subr.bf16.mxu0 0
        %2285 = vmatpush1.bf16.msra.mxu0 0
        %2286 = vmatprep.subr.bf16.mxu0 0
        %2287 = vmatpush1.bf16.msra.mxu0 0
        %2288 = vmatprep.subr.bf16.mxu0 0
        %2289 = vmatpush1.bf16.msra.mxu0 0
        %2290 = vmatprep.subr.bf16.mxu0 0
        %2291 = vmatpush1.bf16.msra.mxu0 0
        %2292 = vmatprep.mubr.bf16.mxu0 0
        %2293 = vmatmul.mubr.bf16.gmra.mrb[0].mxu0 %v2258
        %v2294 = vpop.f32.mrb[0].mxu0
        %v2295 = vadd.f32 %v2232, %v2294
        %v2296 = vpop.f32.mrb[0].mxu0
        %v2297 = vpop.f32.mrb[0].mxu0
        %v2298 = vpop.f32.mrb[0].mxu0
        %2299 = vdwg.mxu0
        %v2300 = vlaneseq
        %v2301 = vshrl.u32 %v2300, 7
        %v2302 = vsub.s32 0, %v2301
        %v2303 = vrot.slane %v1877, %v2302
        %v2304 = vadd.f32 %v2303, %v2295
        %v2305 = vsel %vm1068, %v2304, 0.0
        %2306 = vadd.xlane.f32.xlu0 %v2305
        %v2307 = vpop.xlane.xlu0 %2306
        %v2308 = vmul.f32 %v2307, %v1117
        %v2309 = vsub.f32 %v2304, %v2308
        %v2310 = vmul.f32 %v2309, %v2309
        %v2311 = vsel %vm1068, %v2310, 0.0
        %2312 = vadd.xlane.f32.xlu0 %v2311
        %v2313 = vpop.xlane.xlu0 %2312
        %v2314 = vmul.f32 %v2313, %v1117
        %v2315 = vadd.f32 %v2314, 1e-05
        %v2316 = vrsqrt.pop %v2315
        %v2317 = vmul.f32 %v2309, %v2316
        %v2318 = vlaneseq
        %v2319 = vshrl.u32 %v2318, 7
        %v2320 = vsub.s32 0, %v2319
        %v2321 = vrot.slane %v424, %v2320
        %v2322 = vmul.f32 %v2317, %v2321
        %v2323 = vlaneseq
        %v2324 = vshrl.u32 %v2323, 7
        %v2325 = vsub.s32 0, %v2324
        %v2326 = vrot.slane %v425, %v2325
        %v2327 = vadd.f32 %v2322, %v2326
        %v2328 = vpack.c.bf16 %v2327, %v2327
        %v2329 = vld [vmem:[%s7] sm:$0xf]
        %v2330 = vld [vmem:[%s7 + $0x4] sm:$0xf]
        %v2331 = vld [vmem:[%s7 + $0x8] sm:$0xf]
        %v2332 = vld [vmem:[%s7 + $0xc] sm:$0xf]
        %v2333 = vld [vmem:[%s7 + $0x10] sm:$0xf]
        %v2334 = vld [vmem:[%s7 + $0x14] sm:$0xf]
        %v2335 = vld [vmem:[%s7 + $0x18] sm:$0xf]
        %v2336 = vld [vmem:[%s7 + $0x1c] sm:$0xf]
        %v2337 = vld [vmem:[%s8] sm:$0x1]
        %v2339 = vlaneseq
        %v2340 = vshrl.u32 %v2339, 7
        %v2341 = vsub.s32 0, %v2340
        %v2342 = vrot.slane %v2337, %v2341
        %v2352 = vunpack.c.l.b16 %v2329
        %v2353 = vunpack.c.l.b16 %v2330
        %v2354 = vunpack.c.l.b16 %v2331
        %v2355 = vunpack.c.l.b16 %v2332
        %v2356 = vunpack.c.l.b16 %v2333
        %v2357 = vunpack.c.l.b16 %v2334
        %v2358 = vunpack.c.l.b16 %v2335
        %v2359 = vunpack.c.l.b16 %v2336
        %v2360 = vpack.c.b16 %v2353, %v2352
        %v2361 = vpack.c.b16 %v2355, %v2354
        %v2362 = vpack.c.b16 %v2357, %v2356
        %v2363 = vpack.c.b16 %v2359, %v2358
        %v2369 = vsel %vm1068, %v2328, 0
        %2371 = vmatprep.subr.bf16.mxu0 0
        %2372 = vmatpush1.bf16.msra.mxu0 %v2360
        %2373 = vmatprep.subr.bf16.mxu0 0
        %2374 = vmatpush1.bf16.msra.mxu0 %v2361
        %2375 = vmatprep.subr.bf16.mxu0 0
        %2376 = vmatpush1.bf16.msra.mxu0 %v2362
        %2377 = vmatprep.subr.bf16.mxu0 0
        %2378 = vmatpush1.bf16.msra.mxu0 %v2363
        %2379 = vmatprep.subr.bf16.mxu0 0
        %2380 = vmatpush1.bf16.msra.mxu0 0
        %2381 = vmatprep.subr.bf16.mxu0 0
        %2382 = vmatpush1.bf16.msra.mxu0 0
        %2383 = vmatprep.subr.bf16.mxu0 0
        %2384 = vmatpush1.bf16.msra.mxu0 0
        %2385 = vmatprep.subr.bf16.mxu0 0
        %2386 = vmatpush1.bf16.msra.mxu0 0
        %2387 = vmatprep.subr.bf16.mxu0 0
        %2388 = vmatpush1.bf16.msra.mxu0 0
        %2389 = vmatprep.subr.bf16.mxu0 0
        %2390 = vmatpush1.bf16.msra.mxu0 0
        %2391 = vmatprep.subr.bf16.mxu0 0
        %2392 = vmatpush1.bf16.msra.mxu0 0
        %2393 = vmatprep.subr.bf16.mxu0 0
        %2394 = vmatpush1.bf16.msra.mxu0 0
        %2395 = vmatprep.subr.bf16.mxu0 0
        %2396 = vmatpush1.bf16.msra.mxu0 0
        %2397 = vmatprep.subr.bf16.mxu0 0
        %2398 = vmatpush1.bf16.msra.mxu0 0
        %2399 = vmatprep.subr.bf16.mxu0 0
        %2400 = vmatpush1.bf16.msra.mxu0 0
        %2401 = vmatprep.subr.bf16.mxu0 0
        %2402 = vmatpush1.bf16.msra.mxu0 0
        %2403 = vmatprep.mubr.bf16.mxu0 0
        %2404 = vmatmul.mubr.bf16.gmra.mrb[0].mxu0 %v2369
        %v2405 = vpop.f32.mrb[0].mxu0
        %v2406 = vadd.f32 %v2342, %v2405
        %v2407 = vpop.f32.mrb[0].mxu0
        %v2408 = vpop.f32.mrb[0].mxu0
        %v2409 = vpop.f32.mrb[0].mxu0
        %2410 = vdwg.mxu0
        %v2411 = vmul.f32 %v2406, %v2406
        %v2412 = vmul.f32 %v2406, %v2411
        %v2413 = vmul.f32 %v2412, 0.044715
        %v2414 = vadd.f32 %v2406, %v2413
        %v2415 = vmul.f32 %v2414, 0.7978846
        %v2416 = vtanh.pop %v2415
        %v2417 = vadd.f32 %v2416, 1.0
        %v2418 = vmul.f32 %v2417, 0.5
        %v2419 = vmul.f32 %v2406, %v2418
        %v2420 = vpack.c.bf16 %v2419, %v2419
        %v2421 = vld [vmem:[%s9] sm:$0xf]
        %v2422 = vld [vmem:[%s9 + $0x4] sm:$0xf]
        %v2423 = vld [vmem:[%s9 + $0x8] sm:$0xf]
        %v2424 = vld [vmem:[%s9 + $0xc] sm:$0xf]
        %v2425 = vld [vmem:[%s9 + $0x10] sm:$0xf]
        %v2426 = vld [vmem:[%s9 + $0x14] sm:$0xf]
        %v2427 = vld [vmem:[%s9 + $0x18] sm:$0xf]
        %v2428 = vld [vmem:[%s9 + $0x1c] sm:$0xf]
        %v2429 = vld [vmem:[%s9 + $0x20] sm:$0xf]
        %v2430 = vld [vmem:[%s9 + $0x24] sm:$0xf]
        %v2431 = vld [vmem:[%s9 + $0x28] sm:$0xf]
        %v2432 = vld [vmem:[%s9 + $0x2c] sm:$0xf]
        %v2433 = vld [vmem:[%s9 + $0x30] sm:$0xf]
        %v2434 = vld [vmem:[%s9 + $0x34] sm:$0xf]
        %v2435 = vld [vmem:[%s9 + $0x38] sm:$0xf]
        %v2436 = vld [vmem:[%s9 + $0x3c] sm:$0xf]
        %v2437 = vlaneseq
        %v2438 = vshrl.u32 %v2437, 7
        %v2439 = vsub.s32 0, %v2438
        %v2440 = vrot.slane %v430, %v2439
        %v2457 = vunpack.c.l.b16 %v2421
        %v2458 = vunpack.c.l.b16 %v2422
        %v2459 = vunpack.c.l.b16 %v2423
        %v2460 = vunpack.c.l.b16 %v2424
        %v2461 = vunpack.c.l.b16 %v2425
        %v2462 = vunpack.c.l.b16 %v2426
        %v2463 = vunpack.c.l.b16 %v2427
        %v2464 = vunpack.c.l.b16 %v2428
        %v2465 = vunpack.c.l.b16 %v2429
        %v2466 = vunpack.c.l.b16 %v2430
        %v2467 = vunpack.c.l.b16 %v2431
        %v2468 = vunpack.c.l.b16 %v2432
        %v2469 = vunpack.c.l.b16 %v2433
        %v2470 = vunpack.c.l.b16 %v2434
        %v2471 = vunpack.c.l.b16 %v2435
        %v2472 = vunpack.c.l.b16 %v2436
        %v2473 = vpack.c.b16 %v2458, %v2457
        %v2474 = vpack.c.b16 %v2460, %v2459
        %v2475 = vpack.c.b16 %v2462, %v2461
        %v2476 = vpack.c.b16 %v2464, %v2463
        %v2477 = vpack.c.b16 %v2466, %v2465
        %v2478 = vpack.c.b16 %v2468, %v2467
        %v2479 = vpack.c.b16 %v2470, %v2469
        %v2480 = vpack.c.b16 %v2472, %v2471
        %2489 = vmatprep.subr.bf16.mxu0 0
        %2490 = vmatpush1.bf16.msra.mxu0 %v2473
        %2491 = vmatprep.subr.bf16.mxu0 0
        %2492 = vmatpush1.bf16.msra.mxu0 %v2474
        %2493 = vmatprep.subr.bf16.mxu0 0
        %2494 = vmatpush1.bf16.msra.mxu0 %v2475
        %2495 = vmatprep.subr.bf16.mxu0 0
        %2496 = vmatpush1.bf16.msra.mxu0 %v2476
        %2497 = vmatprep.subr.bf16.mxu0 0
        %2498 = vmatpush1.bf16.msra.mxu0 %v2477
        %2499 = vmatprep.subr.bf16.mxu0 0
        %2500 = vmatpush1.bf16.msra.mxu0 %v2478
        %2501 = vmatprep.subr.bf16.mxu0 0
        %2502 = vmatpush1.bf16.msra.mxu0 %v2479
        %2503 = vmatprep.subr.bf16.mxu0 0
        %2504 = vmatpush1.bf16.msra.mxu0 %v2480
        %2505 = vmatprep.subr.bf16.mxu0 0
        %2506 = vmatpush1.bf16.msra.mxu0 0
        %2507 = vmatprep.subr.bf16.mxu0 0
        %2508 = vmatpush1.bf16.msra.mxu0 0
        %2509 = vmatprep.subr.bf16.mxu0 0
        %2510 = vmatpush1.bf16.msra.mxu0 0
        %2511 = vmatprep.subr.bf16.mxu0 0
        %2512 = vmatpush1.bf16.msra.mxu0 0
        %2513 = vmatprep.subr.bf16.mxu0 0
        %2514 = vmatpush1.bf16.msra.mxu0 0
        %2515 = vmatprep.subr.bf16.mxu0 0
        %2516 = vmatpush1.bf16.msra.mxu0 0
        %2517 = vmatprep.subr.bf16.mxu0 0
        %2518 = vmatpush1.bf16.msra.mxu0 0
        %2519 = vmatprep.subr.bf16.mxu0 0
        %2520 = vmatpush1.bf16.msra.mxu0 0
        %2521 = vmatprep.mubr.bf16.mxu0 0
        %2522 = vmatmul.mubr.bf16.gmra.mrb[0].mxu0 %v2420
        %v2523 = vpop.f32.mrb[0].mxu0
        %v2524 = vadd.f32 %v2440, %v2523
        %v2525 = vpop.f32.mrb[0].mxu0
        %v2526 = vpop.f32.mrb[0].mxu0
        %v2527 = vpop.f32.mrb[0].mxu0
        %2528 = vdwg.mxu0
        %v2529 = vadd.f32 %v2304, %v2524
        %v2530 = vsel %vm1068, %v2529, 0.0
        %2531 = vadd.xlane.f32.xlu0 %v2530
        %v2532 = vpop.xlane.xlu0 %2531
        %v2533 = vmul.f32 %v2532, %v1117
        %v2534 = vsub.f32 %v2529, %v2533
        %v2535 = vmul.f32 %v2534, %v2534
        %v2536 = vsel %vm1068, %v2535, 0.0
        %2537 = vadd.xlane.f32.xlu0 %v2536
        %v2538 = vpop.xlane.xlu0 %2537
        %v2539 = vmul.f32 %v2538, %v1117
        %v2540 = vadd.f32 %v2539, 1e-05
        %v2541 = vrsqrt.pop %v2540
        %v2542 = vmul.f32 %v2534, %v2541
        %v2543 = vlaneseq
        %v2544 = vshrl.u32 %v2543, 7
        %v2545 = vsub.s32 0, %v2544
        %v2546 = vrot.slane %v426, %v2545
        %v2547 = vmul.f32 %v2542, %v2546
        %v2548 = vlaneseq
        %v2549 = vshrl.u32 %v2548, 7
        %v2550 = vsub.s32 0, %v2549
        %v2551 = vrot.slane %v427, %v2550
        %v2552 = vadd.f32 %v2547, %v2551
        %v2553 = vld [vmem:[%s11] sm:$0x1]
        %v2554 = vpack.c.bf16 %v2552, %v2552
        %v2555 = vld [vmem:[%s10] sm:$0xf]
        %v2556 = vld [vmem:[%s10 + $0x4] sm:$0xf]
        %v2557 = vld [vmem:[%s10 + $0x8] sm:$0xf]
        %v2558 = vld [vmem:[%s10 + $0xc] sm:$0xf]
        %v2559 = vld [vmem:[%s10 + $0x10] sm:$0xf]
        %v2560 = vld [vmem:[%s10 + $0x14] sm:$0xf]
        %v2561 = vld [vmem:[%s10 + $0x18] sm:$0xf]
        %v2562 = vld [vmem:[%s10 + $0x1c] sm:$0xf]
        %v2571 = vunpack.c.l.b16 %v2555
        %v2572 = vunpack.c.l.b16 %v2556
        %v2573 = vunpack.c.l.b16 %v2557
        %v2574 = vunpack.c.l.b16 %v2558
        %v2575 = vunpack.c.l.b16 %v2559
        %v2576 = vunpack.c.l.b16 %v2560
        %v2577 = vunpack.c.l.b16 %v2561
        %v2578 = vunpack.c.l.b16 %v2562
        %v2579 = vpack.c.b16 %v2572, %v2571
        %v2580 = vpack.c.b16 %v2574, %v2573
        %v2581 = vpack.c.b16 %v2576, %v2575
        %v2582 = vpack.c.b16 %v2578, %v2577
        %v2588 = vsel %vm1068, %v2554, 0
        %2590 = vmatprep.subr.bf16.mxu0 0
        %2591 = vmatpush1.bf16.msra.mxu0 %v2579
        %2592 = vmatprep.subr.bf16.mxu0 0
        %2593 = vmatpush1.bf16.msra.mxu0 %v2580
        %2594 = vmatprep.subr.bf16.mxu0 0
        %2595 = vmatpush1.bf16.msra.mxu0 %v2581
        %2596 = vmatprep.subr.bf16.mxu0 0
        %2597 = vmatpush1.bf16.msra.mxu0 %v2582
        %2598 = vmatprep.subr.bf16.mxu0 0
        %2599 = vmatpush1.bf16.msra.mxu0 0
        %2600 = vmatprep.subr.bf16.mxu0 0
        %2601 = vmatpush1.bf16.msra.mxu0 0
        %2602 = vmatprep.subr.bf16.mxu0 0
        %2603 = vmatpush1.bf16.msra.mxu0 0
        %2604 = vmatprep.subr.bf16.mxu0 0
        %2605 = vmatpush1.bf16.msra.mxu0 0
        %2606 = vmatprep.subr.bf16.mxu0 0
        %2607 = vmatpush1.bf16.msra.mxu0 0
        %2608 = vmatprep.subr.bf16.mxu0 0
        %2609 = vmatpush1.bf16.msra.mxu0 0
        %2610 = vmatprep.subr.bf16.mxu0 0
        %2611 = vmatpush1.bf16.msra.mxu0 0
        %2612 = vmatprep.subr.bf16.mxu0 0
        %2613 = vmatpush1.bf16.msra.mxu0 0
        %2614 = vmatprep.subr.bf16.mxu0 0
        %2615 = vmatpush1.bf16.msra.mxu0 0
        %2616 = vmatprep.subr.bf16.mxu0 0
        %2617 = vmatpush1.bf16.msra.mxu0 0
        %2618 = vmatprep.subr.bf16.mxu0 0
        %2619 = vmatpush1.bf16.msra.mxu0 0
        %2620 = vmatprep.subr.bf16.mxu0 0
        %2621 = vmatpush1.bf16.msra.mxu0 0
        %2622 = vmatprep.mubr.bf16.mxu0 0
        %2623 = vmatmul.mubr.bf16.gmra.mrb[0].mxu0 %v2588
        %v2624 = vpop.f32.mrb[0].mxu0
        %v2625 = vadd.f32 0.0, %v2624
        %v2626 = vpop.f32.mrb[0].mxu0
        %v2627 = vpop.f32.mrb[0].mxu0
        %v2628 = vpop.f32.mrb[0].mxu0
        %2629 = vdwg.mxu0
        %v2630 = vadd.f32 %v2553, %v2625
        %s2631 = scalar_lea.vmem %s10, 32
        %v2632 = vld [vmem:[%s2631] sm:$0xf]
        %v2633 = vld [vmem:[%s2631 + $0x4] sm:$0xf]
        %v2634 = vld [vmem:[%s2631 + $0x8] sm:$0xf]
        %v2635 = vld [vmem:[%s2631 + $0xc] sm:$0xf]
        %v2636 = vld [vmem:[%s2631 + $0x10] sm:$0xf]
        %v2637 = vld [vmem:[%s2631 + $0x14] sm:$0xf]
        %v2638 = vld [vmem:[%s2631 + $0x18] sm:$0xf]
        %v2639 = vld [vmem:[%s2631 + $0x1c] sm:$0xf]
        %v2640 = vshrl.u32 %v2554, 16
        %v2650 = vunpack.c.l.b16 %v2632
        %v2651 = vunpack.c.l.b16 %v2633
        %v2652 = vunpack.c.l.b16 %v2634
        %v2653 = vunpack.c.l.b16 %v2635
        %v2654 = vunpack.c.l.b16 %v2636
        %v2655 = vunpack.c.l.b16 %v2637
        %v2656 = vunpack.c.l.b16 %v2638
        %v2657 = vunpack.c.l.b16 %v2639
        %v2658 = vpack.c.b16 %v2651, %v2650
        %v2659 = vpack.c.b16 %v2653, %v2652
        %v2660 = vpack.c.b16 %v2655, %v2654
        %v2661 = vpack.c.b16 %v2657, %v2656
        %v2667 = vsel %vm1068, %v2640, 0
        %2669 = vmatprep.subr.bf16.mxu0 0
        %2670 = vmatpush1.bf16.msra.mxu0 %v2658
        %2671 = vmatprep.subr.bf16.mxu0 0
        %2672 = vmatpush1.bf16.msra.mxu0 %v2659
        %2673 = vmatprep.subr.bf16.mxu0 0
        %2674 = vmatpush1.bf16.msra.mxu0 %v2660
        %2675 = vmatprep.subr.bf16.mxu0 0
        %2676 = vmatpush1.bf16.msra.mxu0 %v2661
        %2677 = vmatprep.subr.bf16.mxu0 0
        %2678 = vmatpush1.bf16.msra.mxu0 0
        %2679 = vmatprep.subr.bf16.mxu0 0
        %2680 = vmatpush1.bf16.msra.mxu0 0
        %2681 = vmatprep.subr.bf16.mxu0 0
        %2682 = vmatpush1.bf16.msra.mxu0 0
        %2683 = vmatprep.subr.bf16.mxu0 0
        %2684 = vmatpush1.bf16.msra.mxu0 0
        %2685 = vmatprep.subr.bf16.mxu0 0
        %2686 = vmatpush1.bf16.msra.mxu0 0
        %2687 = vmatprep.subr.bf16.mxu0 0
        %2688 = vmatpush1.bf16.msra.mxu0 0
        %2689 = vmatprep.subr.bf16.mxu0 0
        %2690 = vmatpush1.bf16.msra.mxu0 0
        %2691 = vmatprep.subr.bf16.mxu0 0
        %2692 = vmatpush1.bf16.msra.mxu0 0
        %2693 = vmatprep.subr.bf16.mxu0 0
        %2694 = vmatpush1.bf16.msra.mxu0 0
        %2695 = vmatprep.subr.bf16.mxu0 0
        %2696 = vmatpush1.bf16.msra.mxu0 0
        %2697 = vmatprep.subr.bf16.mxu0 0
        %2698 = vmatpush1.bf16.msra.mxu0 0
        %2699 = vmatprep.subr.bf16.mxu0 0
        %2700 = vmatpush1.bf16.msra.mxu0 0
        %2701 = vmatprep.mubr.bf16.mxu0 0
        %2702 = vmatmul.mubr.bf16.gmra.mrb[0].mxu0 %v2667
        %v2703 = vpop.f32.mrb[0].mxu0
        %v2704 = vadd.f32 0.0, %v2703
        %v2705 = vpop.f32.mrb[0].mxu0
        %v2706 = vpop.f32.mrb[0].mxu0
        %v2707 = vpop.f32.mrb[0].mxu0
        %2708 = vdwg.mxu0
        %v2709 = vadd.f32 %v2630, %v2704
        %s2710 = scalar_lea.vmem %s10, 64
        %v2711 = vld [vmem:[%s2710] sm:$0xf]
        %v2712 = vld [vmem:[%s2710 + $0x4] sm:$0xf]
        %v2713 = vld [vmem:[%s2710 + $0x8] sm:$0xf]
        %v2714 = vld [vmem:[%s2710 + $0xc] sm:$0xf]
        %v2715 = vld [vmem:[%s2710 + $0x10] sm:$0xf]
        %v2716 = vld [vmem:[%s2710 + $0x14] sm:$0xf]
        %v2717 = vld [vmem:[%s2710 + $0x18] sm:$0xf]
        %v2718 = vld [vmem:[%s2710 + $0x1c] sm:$0xf]
        %v2720 = vrot.slane %v2554, 1
        %v2729 = vunpack.c.l.b16 %v2711
        %v2730 = vunpack.c.l.b16 %v2712
        %v2731 = vunpack.c.l.b16 %v2713
        %v2732 = vunpack.c.l.b16 %v2714
        %v2733 = vunpack.c.l.b16 %v2715
        %v2734 = vunpack.c.l.b16 %v2716
        %v2735 = vunpack.c.l.b16 %v2717
        %v2736 = vunpack.c.l.b16 %v2718
        %v2737 = vpack.c.b16 %v2730, %v2729
        %v2738 = vpack.c.b16 %v2732, %v2731
        %v2739 = vpack.c.b16 %v2734, %v2733
        %v2740 = vpack.c.b16 %v2736, %v2735
        %v2746 = vsel %vm1068, %v2720, 0
        %2748 = vmatprep.subr.bf16.mxu0 0
        %2749 = vmatpush1.bf16.msra.mxu0 %v2737
        %2750 = vmatprep.subr.bf16.mxu0 0
        %2751 = vmatpush1.bf16.msra.mxu0 %v2738
        %2752 = vmatprep.subr.bf16.mxu0 0
        %2753 = vmatpush1.bf16.msra.mxu0 %v2739
        %2754 = vmatprep.subr.bf16.mxu0 0
        %2755 = vmatpush1.bf16.msra.mxu0 %v2740
        %2756 = vmatprep.subr.bf16.mxu0 0
        %2757 = vmatpush1.bf16.msra.mxu0 0
        %2758 = vmatprep.subr.bf16.mxu0 0
        %2759 = vmatpush1.bf16.msra.mxu0 0
        %2760 = vmatprep.subr.bf16.mxu0 0
        %2761 = vmatpush1.bf16.msra.mxu0 0
        %2762 = vmatprep.subr.bf16.mxu0 0
        %2763 = vmatpush1.bf16.msra.mxu0 0
        %2764 = vmatprep.subr.bf16.mxu0 0
        %2765 = vmatpush1.bf16.msra.mxu0 0
        %2766 = vmatprep.subr.bf16.mxu0 0
        %2767 = vmatpush1.bf16.msra.mxu0 0
        %2768 = vmatprep.subr.bf16.mxu0 0
        %2769 = vmatpush1.bf16.msra.mxu0 0
        %2770 = vmatprep.subr.bf16.mxu0 0
        %2771 = vmatpush1.bf16.msra.mxu0 0
        %2772 = vmatprep.subr.bf16.mxu0 0
        %2773 = vmatpush1.bf16.msra.mxu0 0
        %2774 = vmatprep.subr.bf16.mxu0 0
        %2775 = vmatpush1.bf16.msra.mxu0 0
        %2776 = vmatprep.subr.bf16.mxu0 0
        %2777 = vmatpush1.bf16.msra.mxu0 0
        %2778 = vmatprep.subr.bf16.mxu0 0
        %2779 = vmatpush1.bf16.msra.mxu0 0
        %2780 = vmatprep.mubr.bf16.mxu0 0
        %2781 = vmatmul.mubr.bf16.gmra.mrb[0].mxu0 %v2746
        %v2782 = vpop.f32.mrb[0].mxu0
        %v2783 = vadd.f32 0.0, %v2782
        %v2784 = vpop.f32.mrb[0].mxu0
        %v2785 = vpop.f32.mrb[0].mxu0
        %v2786 = vpop.f32.mrb[0].mxu0
        %2787 = vdwg.mxu0
        %v2788 = vadd.f32 %v2709, %v2783
        %s2789 = scalar_lea.vmem %s10, 96
        %v2790 = vld [vmem:[%s2789] sm:$0xf]
        %v2791 = vld [vmem:[%s2789 + $0x4] sm:$0xf]
        %v2792 = vld [vmem:[%s2789 + $0x8] sm:$0xf]
        %v2793 = vld [vmem:[%s2789 + $0xc] sm:$0xf]
        %v2794 = vld [vmem:[%s2789 + $0x10] sm:$0xf]
        %v2795 = vld [vmem:[%s2789 + $0x14] sm:$0xf]
        %v2796 = vld [vmem:[%s2789 + $0x18] sm:$0xf]
        %v2797 = vld [vmem:[%s2789 + $0x1c] sm:$0xf]
        %v2798 = vrot.slane %v2640, 1
        %v2807 = vunpack.c.l.b16 %v2790
        %v2808 = vunpack.c.l.b16 %v2791
        %v2809 = vunpack.c.l.b16 %v2792
        %v2810 = vunpack.c.l.b16 %v2793
        %v2811 = vunpack.c.l.b16 %v2794
        %v2812 = vunpack.c.l.b16 %v2795
        %v2813 = vunpack.c.l.b16 %v2796
        %v2814 = vunpack.c.l.b16 %v2797
        %v2815 = vpack.c.b16 %v2808, %v2807
        %v2816 = vpack.c.b16 %v2810, %v2809
        %v2817 = vpack.c.b16 %v2812, %v2811
        %v2818 = vpack.c.b16 %v2814, %v2813
        %v2824 = vsel %vm1068, %v2798, 0
        %2826 = vmatprep.subr.bf16.mxu0 0
        %2827 = vmatpush1.bf16.msra.mxu0 %v2815
        %2828 = vmatprep.subr.bf16.mxu0 0
        %2829 = vmatpush1.bf16.msra.mxu0 %v2816
        %2830 = vmatprep.subr.bf16.mxu0 0
        %2831 = vmatpush1.bf16.msra.mxu0 %v2817
        %2832 = vmatprep.subr.bf16.mxu0 0
        %2833 = vmatpush1.bf16.msra.mxu0 %v2818
        %2834 = vmatprep.subr.bf16.mxu0 0
        %2835 = vmatpush1.bf16.msra.mxu0 0
        %2836 = vmatprep.subr.bf16.mxu0 0
        %2837 = vmatpush1.bf16.msra.mxu0 0
        %2838 = vmatprep.subr.bf16.mxu0 0
        %2839 = vmatpush1.bf16.msra.mxu0 0
        %2840 = vmatprep.subr.bf16.mxu0 0
        %2841 = vmatpush1.bf16.msra.mxu0 0
        %2842 = vmatprep.subr.bf16.mxu0 0
        %2843 = vmatpush1.bf16.msra.mxu0 0
        %2844 = vmatprep.subr.bf16.mxu0 0
        %2845 = vmatpush1.bf16.msra.mxu0 0
        %2846 = vmatprep.subr.bf16.mxu0 0
        %2847 = vmatpush1.bf16.msra.mxu0 0
        %2848 = vmatprep.subr.bf16.mxu0 0
        %2849 = vmatpush1.bf16.msra.mxu0 0
        %2850 = vmatprep.subr.bf16.mxu0 0
        %2851 = vmatpush1.bf16.msra.mxu0 0
        %2852 = vmatprep.subr.bf16.mxu0 0
        %2853 = vmatpush1.bf16.msra.mxu0 0
        %2854 = vmatprep.subr.bf16.mxu0 0
        %2855 = vmatpush1.bf16.msra.mxu0 0
        %2856 = vmatprep.subr.bf16.mxu0 0
        %2857 = vmatpush1.bf16.msra.mxu0 0
        %2858 = vmatprep.mubr.bf16.mxu0 0
        %2859 = vmatmul.mubr.bf16.gmra.mrb[0].mxu0 %v2824
        %v2860 = vpop.f32.mrb[0].mxu0
        %v2861 = vadd.f32 0.0, %v2860
        %v2862 = vpop.f32.mrb[0].mxu0
        %v2863 = vpop.f32.mrb[0].mxu0
        %v2864 = vpop.f32.mrb[0].mxu0
        %2865 = vdwg.mxu0
        %v2866 = vadd.f32 %v2788, %v2861
        %s2867 = scalar_lea.vmem %s10, 128
        %v2868 = vld [vmem:[%s2867] sm:$0xf]
        %v2869 = vld [vmem:[%s2867 + $0x4] sm:$0xf]
        %v2870 = vld [vmem:[%s2867 + $0x8] sm:$0xf]
        %v2871 = vld [vmem:[%s2867 + $0xc] sm:$0xf]
        %v2872 = vld [vmem:[%s2867 + $0x10] sm:$0xf]
        %v2873 = vld [vmem:[%s2867 + $0x14] sm:$0xf]
        %v2874 = vld [vmem:[%s2867 + $0x18] sm:$0xf]
        %v2875 = vld [vmem:[%s2867 + $0x1c] sm:$0xf]
        %v2876 = vrot.slane %v2554, 2
        %v2885 = vunpack.c.l.b16 %v2868
        %v2886 = vunpack.c.l.b16 %v2869
        %v2887 = vunpack.c.l.b16 %v2870
        %v2888 = vunpack.c.l.b16 %v2871
        %v2889 = vunpack.c.l.b16 %v2872
        %v2890 = vunpack.c.l.b16 %v2873
        %v2891 = vunpack.c.l.b16 %v2874
        %v2892 = vunpack.c.l.b16 %v2875
        %v2893 = vpack.c.b16 %v2886, %v2885
        %v2894 = vpack.c.b16 %v2888, %v2887
        %v2895 = vpack.c.b16 %v2890, %v2889
        %v2896 = vpack.c.b16 %v2892, %v2891
        %v2902 = vsel %vm1068, %v2876, 0
        %2904 = vmatprep.subr.bf16.mxu0 0
        %2905 = vmatpush1.bf16.msra.mxu0 %v2893
        %2906 = vmatprep.subr.bf16.mxu0 0
        %2907 = vmatpush1.bf16.msra.mxu0 %v2894
        %2908 = vmatprep.subr.bf16.mxu0 0
        %2909 = vmatpush1.bf16.msra.mxu0 %v2895
        %2910 = vmatprep.subr.bf16.mxu0 0
        %2911 = vmatpush1.bf16.msra.mxu0 %v2896
        %2912 = vmatprep.subr.bf16.mxu0 0
        %2913 = vmatpush1.bf16.msra.mxu0 0
        %2914 = vmatprep.subr.bf16.mxu0 0
        %2915 = vmatpush1.bf16.msra.mxu0 0
        %2916 = vmatprep.subr.bf16.mxu0 0
        %2917 = vmatpush1.bf16.msra.mxu0 0
        %2918 = vmatprep.subr.bf16.mxu0 0
        %2919 = vmatpush1.bf16.msra.mxu0 0
        %2920 = vmatprep.subr.bf16.mxu0 0
        %2921 = vmatpush1.bf16.msra.mxu0 0
        %2922 = vmatprep.subr.bf16.mxu0 0
        %2923 = vmatpush1.bf16.msra.mxu0 0
        %2924 = vmatprep.subr.bf16.mxu0 0
        %2925 = vmatpush1.bf16.msra.mxu0 0
        %2926 = vmatprep.subr.bf16.mxu0 0
        %2927 = vmatpush1.bf16.msra.mxu0 0
        %2928 = vmatprep.subr.bf16.mxu0 0
        %2929 = vmatpush1.bf16.msra.mxu0 0
        %2930 = vmatprep.subr.bf16.mxu0 0
        %2931 = vmatpush1.bf16.msra.mxu0 0
        %2932 = vmatprep.subr.bf16.mxu0 0
        %2933 = vmatpush1.bf16.msra.mxu0 0
        %2934 = vmatprep.subr.bf16.mxu0 0
        %2935 = vmatpush1.bf16.msra.mxu0 0
        %2936 = vmatprep.mubr.bf16.mxu0 0
        %2937 = vmatmul.mubr.bf16.gmra.mrb[0].mxu0 %v2902
        %v2938 = vpop.f32.mrb[0].mxu0
        %v2939 = vadd.f32 0.0, %v2938
        %v2940 = vpop.f32.mrb[0].mxu0
        %v2941 = vpop.f32.mrb[0].mxu0
        %v2942 = vpop.f32.mrb[0].mxu0
        %2943 = vdwg.mxu0
        %v2944 = vadd.f32 %v2866, %v2939
        %s2945 = scalar_lea.vmem %s10, 160
        %v2946 = vld [vmem:[%s2945] sm:$0xf]
        %v2947 = vld [vmem:[%s2945 + $0x4] sm:$0xf]
        %v2948 = vld [vmem:[%s2945 + $0x8] sm:$0xf]
        %v2949 = vld [vmem:[%s2945 + $0xc] sm:$0xf]
        %v2950 = vld [vmem:[%s2945 + $0x10] sm:$0xf]
        %v2951 = vld [vmem:[%s2945 + $0x14] sm:$0xf]
        %v2952 = vld [vmem:[%s2945 + $0x18] sm:$0xf]
        %v2953 = vld [vmem:[%s2945 + $0x1c] sm:$0xf]
        %v2954 = vrot.slane %v2640, 2
        %v2963 = vunpack.c.l.b16 %v2946
        %v2964 = vunpack.c.l.b16 %v2947
        %v2965 = vunpack.c.l.b16 %v2948
        %v2966 = vunpack.c.l.b16 %v2949
        %v2967 = vunpack.c.l.b16 %v2950
        %v2968 = vunpack.c.l.b16 %v2951
        %v2969 = vunpack.c.l.b16 %v2952
        %v2970 = vunpack.c.l.b16 %v2953
        %v2971 = vpack.c.b16 %v2964, %v2963
        %v2972 = vpack.c.b16 %v2966, %v2965
        %v2973 = vpack.c.b16 %v2968, %v2967
        %v2974 = vpack.c.b16 %v2970, %v2969
        %v2980 = vsel %vm1068, %v2954, 0
        %2982 = vmatprep.subr.bf16.mxu0 0
        %2983 = vmatpush1.bf16.msra.mxu0 %v2971
        %2984 = vmatprep.subr.bf16.mxu0 0
        %2985 = vmatpush1.bf16.msra.mxu0 %v2972
        %2986 = vmatprep.subr.bf16.mxu0 0
        %2987 = vmatpush1.bf16.msra.mxu0 %v2973
        %2988 = vmatprep.subr.bf16.mxu0 0
        %2989 = vmatpush1.bf16.msra.mxu0 %v2974
        %2990 = vmatprep.subr.bf16.mxu0 0
        %2991 = vmatpush1.bf16.msra.mxu0 0
        %2992 = vmatprep.subr.bf16.mxu0 0
        %2993 = vmatpush1.bf16.msra.mxu0 0
        %2994 = vmatprep.subr.bf16.mxu0 0
        %2995 = vmatpush1.bf16.msra.mxu0 0
        %2996 = vmatprep.subr.bf16.mxu0 0
        %2997 = vmatpush1.bf16.msra.mxu0 0
        %2998 = vmatprep.subr.bf16.mxu0 0
        %2999 = vmatpush1.bf16.msra.mxu0 0
        %3000 = vmatprep.subr.bf16.mxu0 0
        %3001 = vmatpush1.bf16.msra.mxu0 0
        %3002 = vmatprep.subr.bf16.mxu0 0
        %3003 = vmatpush1.bf16.msra.mxu0 0
        %3004 = vmatprep.subr.bf16.mxu0 0
        %3005 = vmatpush1.bf16.msra.mxu0 0
        %3006 = vmatprep.subr.bf16.mxu0 0
        %3007 = vmatpush1.bf16.msra.mxu0 0
        %3008 = vmatprep.subr.bf16.mxu0 0
        %3009 = vmatpush1.bf16.msra.mxu0 0
        %3010 = vmatprep.subr.bf16.mxu0 0
        %3011 = vmatpush1.bf16.msra.mxu0 0
        %3012 = vmatprep.subr.bf16.mxu0 0
        %3013 = vmatpush1.bf16.msra.mxu0 0
        %3014 = vmatprep.mubr.bf16.mxu0 0
        %3015 = vmatmul.mubr.bf16.gmra.mrb[0].mxu0 %v2980
        %v3016 = vpop.f32.mrb[0].mxu0
        %v3017 = vadd.f32 0.0, %v3016
        %v3018 = vpop.f32.mrb[0].mxu0
        %v3019 = vpop.f32.mrb[0].mxu0
        %v3020 = vpop.f32.mrb[0].mxu0
        %3021 = vdwg.mxu0
        %v3022 = vadd.f32 %v2944, %v3017
        %s3023 = scalar_lea.vmem %s10, 192
        %v3024 = vld [vmem:[%s3023] sm:$0xf]
        %v3025 = vld [vmem:[%s3023 + $0x4] sm:$0xf]
        %v3026 = vld [vmem:[%s3023 + $0x8] sm:$0xf]
        %v3027 = vld [vmem:[%s3023 + $0xc] sm:$0xf]
        %v3028 = vld [vmem:[%s3023 + $0x10] sm:$0xf]
        %v3029 = vld [vmem:[%s3023 + $0x14] sm:$0xf]
        %v3030 = vld [vmem:[%s3023 + $0x18] sm:$0xf]
        %v3031 = vld [vmem:[%s3023 + $0x1c] sm:$0xf]
        %v3032 = vrot.slane %v2554, 3
        %v3041 = vunpack.c.l.b16 %v3024
        %v3042 = vunpack.c.l.b16 %v3025
        %v3043 = vunpack.c.l.b16 %v3026
        %v3044 = vunpack.c.l.b16 %v3027
        %v3045 = vunpack.c.l.b16 %v3028
        %v3046 = vunpack.c.l.b16 %v3029
        %v3047 = vunpack.c.l.b16 %v3030
        %v3048 = vunpack.c.l.b16 %v3031
        %v3049 = vpack.c.b16 %v3042, %v3041
        %v3050 = vpack.c.b16 %v3044, %v3043
        %v3051 = vpack.c.b16 %v3046, %v3045
        %v3052 = vpack.c.b16 %v3048, %v3047
        %v3058 = vsel %vm1068, %v3032, 0
        %3060 = vmatprep.subr.bf16.mxu0 0
        %3061 = vmatpush1.bf16.msra.mxu0 %v3049
        %3062 = vmatprep.subr.bf16.mxu0 0
        %3063 = vmatpush1.bf16.msra.mxu0 %v3050
        %3064 = vmatprep.subr.bf16.mxu0 0
        %3065 = vmatpush1.bf16.msra.mxu0 %v3051
        %3066 = vmatprep.subr.bf16.mxu0 0
        %3067 = vmatpush1.bf16.msra.mxu0 %v3052
        %3068 = vmatprep.subr.bf16.mxu0 0
        %3069 = vmatpush1.bf16.msra.mxu0 0
        %3070 = vmatprep.subr.bf16.mxu0 0
        %3071 = vmatpush1.bf16.msra.mxu0 0
        %3072 = vmatprep.subr.bf16.mxu0 0
        %3073 = vmatpush1.bf16.msra.mxu0 0
        %3074 = vmatprep.subr.bf16.mxu0 0
        %3075 = vmatpush1.bf16.msra.mxu0 0
        %3076 = vmatprep.subr.bf16.mxu0 0
        %3077 = vmatpush1.bf16.msra.mxu0 0
        %3078 = vmatprep.subr.bf16.mxu0 0
        %3079 = vmatpush1.bf16.msra.mxu0 0
        %3080 = vmatprep.subr.bf16.mxu0 0
        %3081 = vmatpush1.bf16.msra.mxu0 0
        %3082 = vmatprep.subr.bf16.mxu0 0
        %3083 = vmatpush1.bf16.msra.mxu0 0
        %3084 = vmatprep.subr.bf16.mxu0 0
        %3085 = vmatpush1.bf16.msra.mxu0 0
        %3086 = vmatprep.subr.bf16.mxu0 0
        %3087 = vmatpush1.bf16.msra.mxu0 0
        %3088 = vmatprep.subr.bf16.mxu0 0
        %3089 = vmatpush1.bf16.msra.mxu0 0
        %3090 = vmatprep.subr.bf16.mxu0 0
        %3091 = vmatpush1.bf16.msra.mxu0 0
        %3092 = vmatprep.mubr.bf16.mxu0 0
        %3093 = vmatmul.mubr.bf16.gmra.mrb[0].mxu0 %v3058
        %v3094 = vpop.f32.mrb[0].mxu0
        %v3095 = vadd.f32 0.0, %v3094
        %v3096 = vpop.f32.mrb[0].mxu0
        %v3097 = vpop.f32.mrb[0].mxu0
        %v3098 = vpop.f32.mrb[0].mxu0
        %3099 = vdwg.mxu0
        %v3100 = vadd.f32 %v3022, %v3095
        %s3101 = scalar_lea.vmem %s10, 224
        %v3102 = vld [vmem:[%s3101] sm:$0xf]
        %v3103 = vld [vmem:[%s3101 + $0x4] sm:$0xf]
        %v3104 = vld [vmem:[%s3101 + $0x8] sm:$0xf]
        %v3105 = vld [vmem:[%s3101 + $0xc] sm:$0xf]
        %v3106 = vld [vmem:[%s3101 + $0x10] sm:$0xf]
        %v3107 = vld [vmem:[%s3101 + $0x14] sm:$0xf]
        %v3108 = vld [vmem:[%s3101 + $0x18] sm:$0xf]
        %v3109 = vld [vmem:[%s3101 + $0x1c] sm:$0xf]
        %v3110 = vrot.slane %v2640, 3
        %v3119 = vunpack.c.l.b16 %v3102
        %v3120 = vunpack.c.l.b16 %v3103
        %v3121 = vunpack.c.l.b16 %v3104
        %v3122 = vunpack.c.l.b16 %v3105
        %v3123 = vunpack.c.l.b16 %v3106
        %v3124 = vunpack.c.l.b16 %v3107
        %v3125 = vunpack.c.l.b16 %v3108
        %v3126 = vunpack.c.l.b16 %v3109
        %v3127 = vpack.c.b16 %v3120, %v3119
        %v3128 = vpack.c.b16 %v3122, %v3121
        %v3129 = vpack.c.b16 %v3124, %v3123
        %v3130 = vpack.c.b16 %v3126, %v3125
        %v3136 = vsel %vm1068, %v3110, 0
        %3138 = vmatprep.subr.bf16.mxu0 0
        %3139 = vmatpush1.bf16.msra.mxu0 %v3127
        %3140 = vmatprep.subr.bf16.mxu0 0
        %3141 = vmatpush1.bf16.msra.mxu0 %v3128
        %3142 = vmatprep.subr.bf16.mxu0 0
        %3143 = vmatpush1.bf16.msra.mxu0 %v3129
        %3144 = vmatprep.subr.bf16.mxu0 0
        %3145 = vmatpush1.bf16.msra.mxu0 %v3130
        %3146 = vmatprep.subr.bf16.mxu0 0
        %3147 = vmatpush1.bf16.msra.mxu0 0
        %3148 = vmatprep.subr.bf16.mxu0 0
        %3149 = vmatpush1.bf16.msra.mxu0 0
        %3150 = vmatprep.subr.bf16.mxu0 0
        %3151 = vmatpush1.bf16.msra.mxu0 0
        %3152 = vmatprep.subr.bf16.mxu0 0
        %3153 = vmatpush1.bf16.msra.mxu0 0
        %3154 = vmatprep.subr.bf16.mxu0 0
        %3155 = vmatpush1.bf16.msra.mxu0 0
        %3156 = vmatprep.subr.bf16.mxu0 0
        %3157 = vmatpush1.bf16.msra.mxu0 0
        %3158 = vmatprep.subr.bf16.mxu0 0
        %3159 = vmatpush1.bf16.msra.mxu0 0
        %3160 = vmatprep.subr.bf16.mxu0 0
        %3161 = vmatpush1.bf16.msra.mxu0 0
        %3162 = vmatprep.subr.bf16.mxu0 0
        %3163 = vmatpush1.bf16.msra.mxu0 0
        %3164 = vmatprep.subr.bf16.mxu0 0
        %3165 = vmatpush1.bf16.msra.mxu0 0
        %3166 = vmatprep.subr.bf16.mxu0 0
        %3167 = vmatpush1.bf16.msra.mxu0 0
        %3168 = vmatprep.subr.bf16.mxu0 0
        %3169 = vmatpush1.bf16.msra.mxu0 0
        %3170 = vmatprep.mubr.bf16.mxu0 0
        %3171 = vmatmul.mubr.bf16.gmra.mrb[0].mxu0 %v3136
        %v3172 = vpop.f32.mrb[0].mxu0
        %v3173 = vadd.f32 0.0, %v3172
        %v3174 = vpop.f32.mrb[0].mxu0
        %v3175 = vpop.f32.mrb[0].mxu0
        %v3176 = vpop.f32.mrb[0].mxu0
        %3177 = vdwg.mxu0
        %v3178 = vadd.f32 %v3100, %v3173
        %3179 = vst [vmem:[%s408] sm:$0x1] %v3178
        %s3180 = sand.u32 %s291, 1
        %s3181 = scalar_lea.sflag [#allocation3], %s3180
        %s3182 = sand.u32 %s291, 1
        %s3183 = scalar_lea.vmem [#allocation2], %s3182
        // Predicated region
        $region69: #{forward.1} parent=67 // pred_check
          %p3184 = pneg %p301
        $region70: #{forward.1} parent=67 // pred_check_branch
          %3186 = sbr.rel (%p3184) target = $region72
        $region71: #{forward.1} parent=67 // pred_region
          %s3188 = ssub.s32 16, 16
          %3189 = vsyncadd %s3181, %s3188
          %s3190 = smul.addr %s26, 16
          %s3191 = scalar_lea.hbm %s12, %s3190
          %s3193 = sshll.u32 %s3183, 4
          %s3194 = int_to_ptr.vmem [resolvable:$true] %s3193
          %3196 = dma.vmem_to_hbm [thread:$0]  %s3194, 16, %s3191, %s3181
        $region72: #{forward.1} parent=67 // pred_fallthru
          _
      $region68: #{forward.1} parent=5 // pred_fallthru
        _
      %p3197 = scmp.le.s32.totalorder 2, %s21
      // Predicated region
      $region73: #{forward.1} parent=5 // pred_check
        %p3198 = pneg %p3197
      $region74: #{forward.1} parent=5 // pred_check_branch
        %3200 = sbr.rel (%p3198) target = $region76
      $region75: #{forward.1} parent=5 // pred_region
        %s3201 = ssub.s32 %s21, 2
        // Predicated region
        $region77: #{forward.1} parent=75 // pred_check
          %p3202 = pneg %p307
        $region78: #{forward.1} parent=75 // pred_check_branch
          %3204 = sbr.rel (%p3202) target = $region80
        $region79: #{forward.1} parent=75 // pred_region
          %s3205 = sand.u32 %s292, 1
          %s3206 = scalar_lea.sflag [#allocation3], %s3205
          %s3207 = sand.u32 %s292, 1
          %s3208 = scalar_lea.vmem [#allocation2], %s3207
          %3209 = dma.done %s3206, 16
        $region80: #{forward.1} parent=75 // pred_fallthru
          _
      $region76: #{forward.1} parent=5 // pred_fallthru
        _
    $region6: #{forward.1} parent=1 // loop_footer
      %s25 = sadd.s32 1, %s21
    $region7: #{forward.1} parent=1 // loop_footer_branch
      %20 = sbr.rel target = $region3
    $region8: #{forward.1} parent=1 // loop_exit
      _
    %3210 = vsyncpa [#allocation3], 1
    %s3211 = scalar_lea.sflag [#allocation3], 1
    %3212 = vsyncpa %s3211, 1

</llo_original>
